<compile_context>
chip_gen: v7x
topology: tpu7x:2x2x1
jax: 0.10.0
libtpu: 0.0.40
codegen_flags: <defaults>
</compile_context>

<pallas_src>
import numpy as np
import jax
import jax.numpy as jnp
from jax import lax
from jax.experimental import pallas as pl
from jax.experimental.pallas import tpu as pltpu

LANES = 128      # lane-dense channel padding for conv outputs / logits
K1PAD = 64       # conv1 packed-K (9*cin = 36) padded up to 64 lanes
RP2 = 16         # row padding around the conv2 source scratch (>= W/2 + 1 = 9)


def _tree_sum(parts):
    """Pairwise (tree) sum so the dots stay independent on the MXU."""
    parts = list(parts)
    while len(parts) > 1:
        nxt = [parts[i] + parts[i + 1] for i in range(0, len(parts) - 1, 2)]
        if len(parts) % 2:
            nxt.append(parts[-1])
        parts = nxt
    return parts[0]


# ------------------------------ fused kernel ------------------------------- #

def make_model2_kernel(B, H, W, c1, c2, hid, num_classes):
    H2, W2 = H // 2, W // 2
    H4, W4 = H // 4, W // 4
    M1 = B * H * W            # conv-1 rows
    P1 = B * H2 * W2          # pooled-1 / conv-2 rows
    P2 = B * H4 * W4          # pooled-2 rows
    NSP = H4 * W4             # spatial positions per image after pool 2

    def kernel(im1_ref, w1_ref, b1_ref, w2_ref, b2_ref, m2_ref, s2_ref,
               g_ref, fb1_ref, fw2_ref, fb2_ref, o_ref,
               a1_ref, p1_ref):
        # ---- conv1: single packed-K (im2col) matmul + bias + relu ----------
        act1 = jnp.dot(im1_ref[...], w1_ref[...],
                       preferred_element_type=jnp.float32)            # (M1,128)
        act1 = jnp.maximum(act1 + b1_ref[...], 0.0)
        # Stage grouped as [(b, h2), 2*W rows, 128 lanes] for strided pooling.
        a1_ref[...] = act1.reshape(B * H2, 2 * W, LANES)

        # ---- pool1: strided-slice maxes (no selection matmul) --------------
        q00 = a1_ref[:, pl.ds(0, W2, stride=2), :]
        q01 = a1_ref[:, pl.ds(1, W2, stride=2), :]
        q10 = a1_ref[:, pl.ds(W, W2, stride=2), :]
        q11 = a1_ref[:, pl.ds(W + 1, W2, stride=2), :]
        pooled1 = jnp.maximum(jnp.maximum(q00, q01), jnp.maximum(q10, q11))
        pooled1 = pooled1.reshape(P1, LANES)                           # (P1,128)

        # ---- stage pooled1 (c1 real channels) in a row-padded scratch ------
        p1_ref[pl.ds(0, RP2), :] = jnp.zeros((RP2, c1), jnp.float32)
        p1_ref[pl.ds(RP2 + P1, RP2), :] = jnp.zeros((RP2, c1), jnp.float32)
        p1_ref[pl.ds(RP2, P1), :] = pooled1[:, 0:c1]

        # ---- conv2: nine independent K=c1 tap dots, tree-summed ------------
        parts = []
        for k in range(9):
            dh, dw = k // 3 - 1, k % 3 - 1
            xs = p1_ref[pl.ds(RP2 + dh * W2 + dw, P1), :] * m2_ref[k]
            parts.append(jnp.dot(xs, w2_ref[k],
                                 preferred_element_type=jnp.float32))
        act2 = jnp.maximum(_tree_sum(parts) + b2_ref[...], 0.0)        # (P1,128)

        # ---- pool2: small 0/1 gather matmul; output rows ordered (n, b) ----
        pall = jnp.dot(s2_ref[...], act2, preferred_element_type=jnp.float32)
        p2 = jnp.maximum(jnp.maximum(pall[0:P2], pall[P2:2 * P2]),
                         jnp.maximum(pall[2 * P2:3 * P2], pall[3 * P2:4 * P2]))

        # ---- fc1: NSP independent (B,c2)x(c2,hid) dots, tree-summed --------
        hparts = []
        for n in range(NSP):
            xn = p2[n * B:(n + 1) * B, 0:c2]
            gn = g_ref[pl.ds(n * c2, c2), :]
            hparts.append(jnp.dot(xn, gn, preferred_element_type=jnp.float32))
        h = jnp.maximum(_tree_sum(hparts) + fb1_ref[...], 0.0)         # (B,hid)

        # ---- fc2 + exact masked softmax (classes zero-padded to 128) -------
        logits = jnp.dot(h, fw2_ref[...],
                         preferred_element_type=jnp.float32) + fb2_ref[...]
        col = lax.broadcasted_iota(jnp.int32, (B, LANES), 1)
        valid = col < num_classes
        m = jnp.max(jnp.where(valid, logits, -1e30), axis=-1, keepdims=True)
        e = jnp.where(valid, jnp.exp(logits - m), 0.0)
        s = jnp.sum(e, axis=-1, keepdims=True)
        o_ref[...] = (e / s).astype(o_ref.dtype)

    return kernel


# --------------------------- host-side constants ---------------------------- #

def _conv_boundary_masks(B, Hh, Ww):
    """(9, B*Hh*Ww, 1) 0/1 per-tap validity masks for a SAME 3x3 conv."""
    P = B * Hh * Ww
    m = np.zeros((9, P, 1), np.float32)
    for k in range(9):
        dh, dw = k // 3 - 1, k % 3 - 1
        for b in range(B):
            for h in range(Hh):
                for w in range(Ww):
                    if 0 <= h + dh < Hh and 0 <= w + dw < Ww:
                        m[k, b * Hh * Ww + h * Ww + w, 0] = 1.0
    return m


def _pool_select_stacked(B, Hin, Win):
    """(4*P, B*Hin*Win) 0/1 gather matrix; output rows ordered (n, b)."""
    Ph, Pw = Hin // 2, Win // 2
    P, M = B * Ph * Pw, B * Hin * Win
    S = np.zeros((4 * P, M), np.float32)
    for d, (dh, dw) in enumerate(((0, 0), (0, 1), (1, 0), (1, 1))):
        for b in range(B):
            for ph in range(Ph):
                for pw in range(Pw):
                    n = ph * Pw + pw
                    src = b * Hin * Win + (2 * ph + dh) * Win + (2 * pw + dw)
                    S[d * P + n * B + b, src] = 1.0
    return S


def build_model2_consts(params, B, input_shape, num_classes):
    cin, H, W = input_shape
    H2, W2, H4, W4 = H // 2, W // 2, H // 4, W // 4
    w1 = np.asarray(params["w1"], np.float32)     # (3,3,cin,32) HWIO
    b1 = np.asarray(params["b1"], np.float32)
    w2 = np.asarray(params["w2"], np.float32)     # (3,3,32,64) HWIO
    b2 = np.asarray(params["b2"], np.float32)
    fw1 = np.asarray(params["fw1"], np.float32)   # (64*H4*W4, 256)
    fb1 = np.asarray(params["fb1"], np.float32)
    fw2 = np.asarray(params["fw2"], np.float32)   # (256, num_classes)
    fb2 = np.asarray(params["fb2"], np.float32)

    c1, c2 = w1.shape[-1], w2.shape[-1]           # 32, 64
    hid = fw1.shape[1]                            # 256
    nsp = H4 * W4                                 # 16
    assert 9 * cin <= K1PAD

    # conv1 packed im2col weight: rows k*cin+i; output channels padded to 128.
    w1p = np.zeros((K1PAD, LANES), np.float32)
    w1p[:9 * cin, :c1] = w1.reshape(9 * cin, c1)
    b1p = np.zeros((1, LANES), np.float32); b1p[0, :c1] = b1

    # conv2 per-tap weights: contraction kept at K=c1 (no zero-padded K).
    w2k = np.zeros((9, c1, LANES), np.float32)
    w2k[:, :, :c2] = w2.reshape(9, c1, c2)
    b2p = np.zeros((1, LANES), np.float32); b2p[0, :c2] = b2

    m2 = _conv_boundary_masks(B, H2, W2)          # (9, B*H2*W2, 1)
    s2 = _pool_select_stacked(B, H2, W2)          # (4*B*H4*W4, B*H2*W2)

    # fc1 weight: torch NCHW-flatten index f = c*nsp + n  ->  row n*c2 + c.
    g = np.ascontiguousarray(
        fw1.reshape(c2, nsp, hid).transpose(1, 0, 2).reshape(nsp * c2, hid))

    fw2p = np.zeros((hid, LANES), np.float32); fw2p[:, :num_classes] = fw2
    fb2p = np.zeros((1, LANES), np.float32); fb2p[0, :num_classes] = fb2

    consts = dict(w1p=w1p, b1p=b1p, w2k=w2k, b2p=b2p, m2=m2, s2=s2,
                  g=g, fb1=fb1.reshape(1, hid), fw2p=fw2p, fb2p=fb2p)
    return {k: jnp.asarray(v) for k, v in consts.items()}


# ------------------------------ forward pass -------------------------------- #

def model2_forward(x_nchw, consts, num_classes):
    B, cin, H, W = x_nchw.shape
    H2, W2, H4, W4 = H // 2, W // 2, H // 4, W // 4
    M1 = B * H * W
    P1 = B * H2 * W2
    nsp = H4 * W4
    c1 = consts["w2k"].shape[1]
    hid = consts["g"].shape[1]
    c2 = consts["g"].shape[0] // nsp

    # Host/XLA-side im2col for conv1 (input is tiny): one packed-K operand.
    xh = jnp.transpose(x_nchw, (0, 2, 3, 1)).astype(jnp.float32)       # NHWC
    xp = jnp.pad(xh, ((0, 0), (1, 1), (1, 1), (0, 0)))
    taps = [xp[:, dh:dh + H, dw:dw + W, :] for dh in range(3) for dw in range(3)]
    im1 = jnp.concatenate(taps, axis=-1).reshape(M1, 9 * cin)
    im1 = jnp.pad(im1, ((0, 0), (0, K1PAD - 9 * cin)))

    kernel = make_model2_kernel(B, H, W, c1, c2, hid, num_classes)

    args = (im1, consts["w1p"], consts["b1p"], consts["w2k"], consts["b2p"],
            consts["m2"], consts["s2"], consts["g"], consts["fb1"],
            consts["fw2p"], consts["fb2p"])

    def full_spec(a):
        nd = a.ndim
        return pl.BlockSpec(a.shape, lambda i, _nd=nd: (0,) * _nd)

    out_padded = pl.pallas_call(
        kernel,
        out_shape=jax.ShapeDtypeStruct((B, LANES), jnp.float32),
        grid=(1,),
        in_specs=[full_spec(a) for a in args],
        out_specs=pl.BlockSpec((B, LANES), lambda i: (0, 0)),
        scratch_shapes=[
            pltpu.VMEM((B * H2, 2 * W, LANES), jnp.float32),   # conv1 acts (pool view)
            pltpu.VMEM((RP2 + P1 + RP2, c1), jnp.float32),     # row-padded pooled1
        ],
        compiler_params=pltpu.CompilerParams(
            dimension_semantics=("arbitrary",),
        ),
    )(*args)
    # Lane-dense (B,128) kernel output; slice to the real classes outside.
    return out_padded[:, :num_classes]


# -------------------------------- reference --------------------------------- #

def ref_forward(x_nchw, params):
    x = jnp.transpose(x_nchw, (0, 2, 3, 1)).astype(jnp.float32)
    dn = ("NHWC", "HWIO", "NHWC")

    def pool(a):
        return lax.reduce_window(a, -jnp.inf, lax.max,
                                 (1, 2, 2, 1), (1, 2, 2, 1), "VALID")

    x = lax.conv_general_dilated(x, params["w1"], (1, 1), "SAME",
                                 dimension_numbers=dn) + params["b1"]
    x = pool(jnp.maximum(x, 0.0))
    x = lax.conv_general_dilated(x, params["w2"], (1, 1), "SAME",
                                 dimension_numbers=dn) + params["b2"]
    x = pool(jnp.maximum(x, 0.0))
    B = x.shape[0]
    x = jnp.transpose(x, (0, 3, 1, 2)).reshape(B, -1)
    h = jnp.maximum(x @ params["fw1"] + params["fb1"], 0.0)
    logits = h @ params["fw2"] + params["fb2"]
    return jax.nn.softmax(logits, axis=1)


# ----------------------------------- main ------------------------------------ #

if __name__ == "__main__":
    # Small shapes consistent with the module: input_shape=(4, 16, 16), 10 classes.
    B, Cin, H, W = 2, 4, 16, 16
    num_classes = 10
    flattened_size = 64 * (H // 4) * (W // 4)     # module's self.flattened_size

    key = jax.random.PRNGKey(0)
    ks = jax.random.split(key, 9)
    params = {
        "w1": jax.random.normal(ks[0], (3, 3, Cin, 32), jnp.float32) * 0.10,
        "b1": jax.random.normal(ks[1], (32,), jnp.float32) * 0.05,
        "w2": jax.random.normal(ks[2], (3, 3, 32, 64), jnp.float32) * 0.05,
        "b2": jax.random.normal(ks[3], (64,), jnp.float32) * 0.05,
        "fw1": jax.random.normal(ks[4], (flattened_size, 256), jnp.float32) * 0.02,
        "fb1": jax.random.normal(ks[5], (256,), jnp.float32) * 0.05,
        "fw2": jax.random.normal(ks[6], (256, num_classes), jnp.float32) * 0.05,
        "fb2": jax.random.normal(ks[7], (num_classes,), jnp.float32) * 0.05,
    }
    x = jax.random.normal(ks[8], (B, Cin, H, W), jnp.float32)

    consts = build_model2_consts(params, B, (Cin, H, W), num_classes)

    fwd = jax.jit(model2_forward, static_argnums=(2,))
    out = jax.block_until_ready(fwd(x, consts, num_classes))

    ref = jax.block_until_ready(ref_forward(x, params))

    assert out.shape == (B, num_classes), out.shape
    assert np.allclose(np.asarray(jnp.sum(out, axis=1)), 1.0, atol=1e-3)
    assert np.allclose(np.asarray(out), np.asarray(ref), atol=5e-3, rtol=5e-3), (
        float(np.max(np.abs(np.asarray(out) - np.asarray(ref)))))

    print("KERNEL_OK")
</pallas_src>

<mosaic_0001>
module attributes {stable_mosaic.version = 11 : i64} {
  func.func @kernel(%arg0: i32, %arg1: memref<512x64xf32, #tpu.memory_space<vmem>>, %arg2: memref<64x128xf32, #tpu.memory_space<vmem>>, %arg3: memref<1x128xf32, #tpu.memory_space<vmem>>, %arg4: memref<9x32x128xf32, #tpu.memory_space<vmem>>, %arg5: memref<1x128xf32, #tpu.memory_space<vmem>>, %arg6: memref<9x128x1xf32, #tpu.memory_space<vmem>>, %arg7: memref<128x128xf32, #tpu.memory_space<vmem>>, %arg8: memref<1024x256xf32, #tpu.memory_space<vmem>>, %arg9: memref<1x256xf32, #tpu.memory_space<vmem>>, %arg10: memref<256x128xf32, #tpu.memory_space<vmem>>, %arg11: memref<1x128xf32, #tpu.memory_space<vmem>>, %arg12: memref<2x128xf32, #tpu.memory_space<vmem>>, %arg13: memref<16x32x128xf32, #tpu.memory_space<vmem>>, %arg14: memref<160x32xf32, #tpu.memory_space<vmem>>) attributes {dimension_semantics = [#tpu.dimension_semantics<arbitrary>], iteration_bounds = array<i64: 1>, scalar_prefetch = 0 : i64, scratch_operands = 2 : i64, tpu.core_type = #tpu.core_type<tc>, window_params = [{pipeline_mode = #tpu.pipeline_mode<synchronous>, transform_indices = @transform_0, window_bounds = array<i64: 512, 64>}, {pipeline_mode = #tpu.pipeline_mode<synchronous>, transform_indices = @transform_1, window_bounds = array<i64: 64, 128>}, {pipeline_mode = #tpu.pipeline_mode<synchronous>, transform_indices = @transform_2, window_bounds = array<i64: 1, 128>}, {pipeline_mode = #tpu.pipeline_mode<synchronous>, transform_indices = @transform_3, window_bounds = array<i64: 9, 32, 128>}, {pipeline_mode = #tpu.pipeline_mode<synchronous>, transform_indices = @transform_4, window_bounds = array<i64: 1, 128>}, {pipeline_mode = #tpu.pipeline_mode<synchronous>, transform_indices = @transform_5, window_bounds = array<i64: 9, 128, 1>}, {pipeline_mode = #tpu.pipeline_mode<synchronous>, transform_indices = @transform_6, window_bounds = array<i64: 128, 128>}, {pipeline_mode = #tpu.pipeline_mode<synchronous>, transform_indices = @transform_7, window_bounds = array<i64: 1024, 256>}, {pipeline_mode = #tpu.pipeline_mode<synchronous>, transform_indices = @transform_8, window_bounds = array<i64: 1, 256>}, {pipeline_mode = #tpu.pipeline_mode<synchronous>, transform_indices = @transform_9, window_bounds = array<i64: 256, 128>}, {pipeline_mode = #tpu.pipeline_mode<synchronous>, transform_indices = @transform_10, window_bounds = array<i64: 1, 128>}, {pipeline_mode = #tpu.pipeline_mode<synchronous>, transform_indices = @transform_11, window_bounds = array<i64: 2, 128>}]} {
    %c0 = arith.constant 0 : index
    %c0_0 = arith.constant 0 : index
    %0 = vector.load %arg1[%c0, %c0_0] : memref<512x64xf32, #tpu.memory_space<vmem>>, vector<512x64xf32>
    %c0_1 = arith.constant 0 : index
    %c0_2 = arith.constant 0 : index
    %1 = vector.load %arg2[%c0_1, %c0_2] : memref<64x128xf32, #tpu.memory_space<vmem>>, vector<64x128xf32>
    %cst = arith.constant dense<0.000000e+00> : vector<512x128xf32>
    %2 = tpu.matmul %0, %1, %cst {dimension_numbers = #tpu.dot_dimension_numbers<[1], [0], [0], [1], [0, 0, 1, 1], [], []>} : vector<512x64xf32>, vector<64x128xf32>, vector<512x128xf32> -> vector<512x128xf32>
    %c0_3 = arith.constant 0 : index
    %c0_4 = arith.constant 0 : index
    %3 = vector.load %arg3[%c0_3, %c0_4] : memref<1x128xf32, #tpu.memory_space<vmem>>, vector<1x128xf32>
    %4 = vector.broadcast %3 : vector<1x128xf32> to vector<512x128xf32>
    %5 = arith.addf %2, %4 : vector<512x128xf32>
    %cst_5 = arith.constant 0.000000e+00 : f32
    %6 = vector.broadcast %cst_5 : f32 to vector<512x128xf32>
    %7 = arith.maximumf %5, %6 : vector<512x128xf32>
    %8 = vector.shape_cast %7 : vector<512x128xf32> to vector<16x32x128xf32>
    %c0_6 = arith.constant 0 : index
    %c0_7 = arith.constant 0 : index
    %c0_8 = arith.constant 0 : index
    %9 = vector.load %arg13[%c0_6, %c0_7, %c0_8] : memref<16x32x128xf32, #tpu.memory_space<vmem>>, vector<16x32x128xf32>
    tpu.vector_store %arg13[%c0_6, %c0_7, %c0_8], %8 {strides = array<i32>} : memref<16x32x128xf32, #tpu.memory_space<vmem>>, vector<16x32x128xf32>,
    %c0_9 = arith.constant 0 : index
    %c0_10 = arith.constant 0 : index
    %c0_11 = arith.constant 0 : index
    %10 = tpu.strided_load %arg13[%c0_9, %c0_10, %c0_11] {strides = array<i32: 1, 2, 1>} : memref<16x32x128xf32, #tpu.memory_space<vmem>>, vector<16x8x128xf32>
    %c0_12 = arith.constant 0 : index
    %c1 = arith.constant 1 : index
    %c0_13 = arith.constant 0 : index
    %11 = tpu.strided_load %arg13[%c0_12, %c1, %c0_13] {strides = array<i32: 1, 2, 1>} : memref<16x32x128xf32, #tpu.memory_space<vmem>>, vector<16x8x128xf32>
    %c0_14 = arith.constant 0 : index
    %c16 = arith.constant 16 : index
    %c0_15 = arith.constant 0 : index
    %12 = tpu.strided_load %arg13[%c0_14, %c16, %c0_15] {strides = array<i32: 1, 2, 1>} : memref<16x32x128xf32, #tpu.memory_space<vmem>>, vector<16x8x128xf32>
    %c0_16 = arith.constant 0 : index
    %c17 = arith.constant 17 : index
    %c0_17 = arith.constant 0 : index
    %13 = tpu.strided_load %arg13[%c0_16, %c17, %c0_17] {strides = array<i32: 1, 2, 1>} : memref<16x32x128xf32, #tpu.memory_space<vmem>>, vector<16x8x128xf32>
    %14 = arith.maximumf %10, %11 : vector<16x8x128xf32>
    %15 = arith.maximumf %12, %13 : vector<16x8x128xf32>
    %16 = arith.maximumf %14, %15 : vector<16x8x128xf32>
    %17 = vector.shape_cast %16 : vector<16x8x128xf32> to vector<128x128xf32>
    %cst_18 = arith.constant 0.000000e+00 : f32
    %18 = vector.broadcast %cst_18 : f32 to vector<16x32xf32>
    %c0_19 = arith.constant 0 : index
    %c0_20 = arith.constant 0 : index
    %19 = vector.load %arg14[%c0_19, %c0_20] : memref<160x32xf32, #tpu.memory_space<vmem>>, vector<16x32xf32>
    tpu.vector_store %arg14[%c0_19, %c0_20], %18 {strides = array<i32>} : memref<160x32xf32, #tpu.memory_space<vmem>>, vector<16x32xf32>,
    %cst_21 = arith.constant 0.000000e+00 : f32
    %20 = vector.broadcast %cst_21 : f32 to vector<16x32xf32>
    %c144 = arith.constant 144 : index
    %c0_22 = arith.constant 0 : index
    %21 = vector.load %arg14[%c144, %c0_22] : memref<160x32xf32, #tpu.memory_space<vmem>>, vector<16x32xf32>
    tpu.vector_store %arg14[%c144, %c0_22], %20 {strides = array<i32>} : memref<160x32xf32, #tpu.memory_space<vmem>>, vector<16x32xf32>,
    %22 = vector.extract_strided_slice %17 {offsets = [0, 0], sizes = [128, 32], strides = [1, 1]} : vector<128x128xf32> to vector<128x32xf32>
    %c16_23 = arith.constant 16 : index
    %c0_24 = arith.constant 0 : index
    %23 = vector.load %arg14[%c16_23, %c0_24] : memref<160x32xf32, #tpu.memory_space<vmem>>, vector<128x32xf32>
    tpu.vector_store %arg14[%c16_23, %c0_24], %22 {strides = array<i32>} : memref<160x32xf32, #tpu.memory_space<vmem>>, vector<128x32xf32>,
    %c7 = arith.constant 7 : index
    %c0_25 = arith.constant 0 : index
    %24 = vector.load %arg14[%c7, %c0_25] : memref<160x32xf32, #tpu.memory_space<vmem>>, vector<128x32xf32>
    %c0_26 = arith.constant 0 : index
    %c0_27 = arith.constant 0 : index
    %c0_28 = arith.constant 0 : index
    %25 = vector.load %arg6[%c0_26, %c0_27, %c0_28] : memref<9x128x1xf32, #tpu.memory_space<vmem>>, vector<1x128x1xf32>
    %26 = vector.shape_cast %25 : vector<1x128x1xf32> to vector<128x1xf32>
    %27 = vector.broadcast %26 : vector<128x1xf32> to vector<128x32xf32>
    %28 = arith.mulf %24, %27 : vector<128x32xf32>
    %c0_29 = arith.constant 0 : index
    %c0_30 = arith.constant 0 : index
    %c0_31 = arith.constant 0 : index
    %29 = vector.load %arg4[%c0_29, %c0_30, %c0_31] : memref<9x32x128xf32, #tpu.memory_space<vmem>>, vector<1x32x128xf32>
    %30 = vector.shape_cast %29 : vector<1x32x128xf32> to vector<32x128xf32>
    %cst_32 = arith.constant dense<0.000000e+00> : vector<128x128xf32>
    %31 = tpu.matmul %28, %30, %cst_32 {dimension_numbers = #tpu.dot_dimension_numbers<[1], [0], [0], [1], [0, 0, 1, 1], [], []>} : vector<128x32xf32>, vector<32x128xf32>, vector<128x128xf32> -> vector<128x128xf32>
    %c8 = arith.constant 8 : index
    %c0_33 = arith.constant 0 : index
    %32 = vector.load %arg14[%c8, %c0_33] : memref<160x32xf32, #tpu.memory_space<vmem>>, vector<128x32xf32>
    %c1_34 = arith.constant 1 : index
    %c0_35 = arith.constant 0 : index
    %c0_36 = arith.constant 0 : index
    %33 = vector.load %arg6[%c1_34, %c0_35, %c0_36] : memref<9x128x1xf32, #tpu.memory_space<vmem>>, vector<1x128x1xf32>
    %34 = vector.shape_cast %33 : vector<1x128x1xf32> to vector<128x1xf32>
    %35 = vector.broadcast %34 : vector<128x1xf32> to vector<128x32xf32>
    %36 = arith.mulf %32, %35 : vector<128x32xf32>
    %c1_37 = arith.constant 1 : index
    %c0_38 = arith.constant 0 : index
    %c0_39 = arith.constant 0 : index
    %37 = vector.load %arg4[%c1_37, %c0_38, %c0_39] : memref<9x32x128xf32, #tpu.memory_space<vmem>>, vector<1x32x128xf32>
    %38 = vector.shape_cast %37 : vector<1x32x128xf32> to vector<32x128xf32>
    %cst_40 = arith.constant dense<0.000000e+00> : vector<128x128xf32>
    %39 = tpu.matmul %36, %38, %cst_40 {dimension_numbers = #tpu.dot_dimension_numbers<[1], [0], [0], [1], [0, 0, 1, 1], [], []>} : vector<128x32xf32>, vector<32x128xf32>, vector<128x128xf32> -> vector<128x128xf32>
    %c9 = arith.constant 9 : index
    %c0_41 = arith.constant 0 : index
    %40 = vector.load %arg14[%c9, %c0_41] : memref<160x32xf32, #tpu.memory_space<vmem>>, vector<128x32xf32>
    %c2 = arith.constant 2 : index
    %c0_42 = arith.constant 0 : index
    %c0_43 = arith.constant 0 : index
    %41 = vector.load %arg6[%c2, %c0_42, %c0_43] : memref<9x128x1xf32, #tpu.memory_space<vmem>>, vector<1x128x1xf32>
    %42 = vector.shape_cast %41 : vector<1x128x1xf32> to vector<128x1xf32>
    %43 = vector.broadcast %42 : vector<128x1xf32> to vector<128x32xf32>
    %44 = arith.mulf %40, %43 : vector<128x32xf32>
    %c2_44 = arith.constant 2 : index
    %c0_45 = arith.constant 0 : index
    %c0_46 = arith.constant 0 : index
    %45 = vector.load %arg4[%c2_44, %c0_45, %c0_46] : memref<9x32x128xf32, #tpu.memory_space<vmem>>, vector<1x32x128xf32>
    %46 = vector.shape_cast %45 : vector<1x32x128xf32> to vector<32x128xf32>
    %cst_47 = arith.constant dense<0.000000e+00> : vector<128x128xf32>
    %47 = tpu.matmul %44, %46, %cst_47 {dimension_numbers = #tpu.dot_dimension_numbers<[1], [0], [0], [1], [0, 0, 1, 1], [], []>} : vector<128x32xf32>, vector<32x128xf32>, vector<128x128xf32> -> vector<128x128xf32>
    %c15 = arith.constant 15 : index
    %c0_48 = arith.constant 0 : index
    %48 = vector.load %arg14[%c15, %c0_48] : memref<160x32xf32, #tpu.memory_space<vmem>>, vector<128x32xf32>
    %c3 = arith.constant 3 : index
    %c0_49 = arith.constant 0 : index
    %c0_50 = arith.constant 0 : index
    %49 = vector.load %arg6[%c3, %c0_49, %c0_50] : memref<9x128x1xf32, #tpu.memory_space<vmem>>, vector<1x128x1xf32>
    %50 = vector.shape_cast %49 : vector<1x128x1xf32> to vector<128x1xf32>
    %51 = vector.broadcast %50 : vector<128x1xf32> to vector<128x32xf32>
    %52 = arith.mulf %48, %51 : vector<128x32xf32>
    %c3_51 = arith.constant 3 : index
    %c0_52 = arith.constant 0 : index
    %c0_53 = arith.constant 0 : index
    %53 = vector.load %arg4[%c3_51, %c0_52, %c0_53] : memref<9x32x128xf32, #tpu.memory_space<vmem>>, vector<1x32x128xf32>
    %54 = vector.shape_cast %53 : vector<1x32x128xf32> to vector<32x128xf32>
    %cst_54 = arith.constant dense<0.000000e+00> : vector<128x128xf32>
    %55 = tpu.matmul %52, %54, %cst_54 {dimension_numbers = #tpu.dot_dimension_numbers<[1], [0], [0], [1], [0, 0, 1, 1], [], []>} : vector<128x32xf32>, vector<32x128xf32>, vector<128x128xf32> -> vector<128x128xf32>
    %c16_55 = arith.constant 16 : index
    %c0_56 = arith.constant 0 : index
    %56 = vector.load %arg14[%c16_55, %c0_56] : memref<160x32xf32, #tpu.memory_space<vmem>>, vector<128x32xf32>
    %c4 = arith.constant 4 : index
    %c0_57 = arith.constant 0 : index
    %c0_58 = arith.constant 0 : index
    %57 = vector.load %arg6[%c4, %c0_57, %c0_58] : memref<9x128x1xf32, #tpu.memory_space<vmem>>, vector<1x128x1xf32>
    %58 = vector.shape_cast %57 : vector<1x128x1xf32> to vector<128x1xf32>
    %59 = vector.broadcast %58 : vector<128x1xf32> to vector<128x32xf32>
    %60 = arith.mulf %56, %59 : vector<128x32xf32>
    %c4_59 = arith.constant 4 : index
    %c0_60 = arith.constant 0 : index
    %c0_61 = arith.constant 0 : index
    %61 = vector.load %arg4[%c4_59, %c0_60, %c0_61] : memref<9x32x128xf32, #tpu.memory_space<vmem>>, vector<1x32x128xf32>
    %62 = vector.shape_cast %61 : vector<1x32x128xf32> to vector<32x128xf32>
    %cst_62 = arith.constant dense<0.000000e+00> : vector<128x128xf32>
    %63 = tpu.matmul %60, %62, %cst_62 {dimension_numbers = #tpu.dot_dimension_numbers<[1], [0], [0], [1], [0, 0, 1, 1], [], []>} : vector<128x32xf32>, vector<32x128xf32>, vector<128x128xf32> -> vector<128x128xf32>
    %c17_63 = arith.constant 17 : index
    %c0_64 = arith.constant 0 : index
    %64 = vector.load %arg14[%c17_63, %c0_64] : memref<160x32xf32, #tpu.memory_space<vmem>>, vector<128x32xf32>
    %c5 = arith.constant 5 : index
    %c0_65 = arith.constant 0 : index
    %c0_66 = arith.constant 0 : index
    %65 = vector.load %arg6[%c5, %c0_65, %c0_66] : memref<9x128x1xf32, #tpu.memory_space<vmem>>, vector<1x128x1xf32>
    %66 = vector.shape_cast %65 : vector<1x128x1xf32> to vector<128x1xf32>
    %67 = vector.broadcast %66 : vector<128x1xf32> to vector<128x32xf32>
    %68 = arith.mulf %64, %67 : vector<128x32xf32>
    %c5_67 = arith.constant 5 : index
    %c0_68 = arith.constant 0 : index
    %c0_69 = arith.constant 0 : index
    %69 = vector.load %arg4[%c5_67, %c0_68, %c0_69] : memref<9x32x128xf32, #tpu.memory_space<vmem>>, vector<1x32x128xf32>
    %70 = vector.shape_cast %69 : vector<1x32x128xf32> to vector<32x128xf32>
    %cst_70 = arith.constant dense<0.000000e+00> : vector<128x128xf32>
    %71 = tpu.matmul %68, %70, %cst_70 {dimension_numbers = #tpu.dot_dimension_numbers<[1], [0], [0], [1], [0, 0, 1, 1], [], []>} : vector<128x32xf32>, vector<32x128xf32>, vector<128x128xf32> -> vector<128x128xf32>
    %c23 = arith.constant 23 : index
    %c0_71 = arith.constant 0 : index
    %72 = vector.load %arg14[%c23, %c0_71] : memref<160x32xf32, #tpu.memory_space<vmem>>, vector<128x32xf32>
    %c6 = arith.constant 6 : index
    %c0_72 = arith.constant 0 : index
    %c0_73 = arith.constant 0 : index
    %73 = vector.load %arg6[%c6, %c0_72, %c0_73] : memref<9x128x1xf32, #tpu.memory_space<vmem>>, vector<1x128x1xf32>
    %74 = vector.shape_cast %73 : vector<1x128x1xf32> to vector<128x1xf32>
    %75 = vector.broadcast %74 : vector<128x1xf32> to vector<128x32xf32>
    %76 = arith.mulf %72, %75 : vector<128x32xf32>
    %c6_74 = arith.constant 6 : index
    %c0_75 = arith.constant 0 : index
    %c0_76 = arith.constant 0 : index
    %77 = vector.load %arg4[%c6_74, %c0_75, %c0_76] : memref<9x32x128xf32, #tpu.memory_space<vmem>>, vector<1x32x128xf32>
    %78 = vector.shape_cast %77 : vector<1x32x128xf32> to vector<32x128xf32>
    %cst_77 = arith.constant dense<0.000000e+00> : vector<128x128xf32>
    %79 = tpu.matmul %76, %78, %cst_77 {dimension_numbers = #tpu.dot_dimension_numbers<[1], [0], [0], [1], [0, 0, 1, 1], [], []>} : vector<128x32xf32>, vector<32x128xf32>, vector<128x128xf32> -> vector<128x128xf32>
    %c24 = arith.constant 24 : index
    %c0_78 = arith.constant 0 : index
    %80 = vector.load %arg14[%c24, %c0_78] : memref<160x32xf32, #tpu.memory_space<vmem>>, vector<128x32xf32>
    %c7_79 = arith.constant 7 : index
    %c0_80 = arith.constant 0 : index
    %c0_81 = arith.constant 0 : index
    %81 = vector.load %arg6[%c7_79, %c0_80, %c0_81] : memref<9x128x1xf32, #tpu.memory_space<vmem>>, vector<1x128x1xf32>
    %82 = vector.shape_cast %81 : vector<1x128x1xf32> to vector<128x1xf32>
    %83 = vector.broadcast %82 : vector<128x1xf32> to vector<128x32xf32>
    %84 = arith.mulf %80, %83 : vector<128x32xf32>
    %c7_82 = arith.constant 7 : index
    %c0_83 = arith.constant 0 : index
    %c0_84 = arith.constant 0 : index
    %85 = vector.load %arg4[%c7_82, %c0_83, %c0_84] : memref<9x32x128xf32, #tpu.memory_space<vmem>>, vector<1x32x128xf32>
    %86 = vector.shape_cast %85 : vector<1x32x128xf32> to vector<32x128xf32>
    %cst_85 = arith.constant dense<0.000000e+00> : vector<128x128xf32>
    %87 = tpu.matmul %84, %86, %cst_85 {dimension_numbers = #tpu.dot_dimension_numbers<[1], [0], [0], [1], [0, 0, 1, 1], [], []>} : vector<128x32xf32>, vector<32x128xf32>, vector<128x128xf32> -> vector<128x128xf32>
    %c25 = arith.constant 25 : index
    %c0_86 = arith.constant 0 : index
    %88 = vector.load %arg14[%c25, %c0_86] : memref<160x32xf32, #tpu.memory_space<vmem>>, vector<128x32xf32>
    %c8_87 = arith.constant 8 : index
    %c0_88 = arith.constant 0 : index
    %c0_89 = arith.constant 0 : index
    %89 = vector.load %arg6[%c8_87, %c0_88, %c0_89] : memref<9x128x1xf32, #tpu.memory_space<vmem>>, vector<1x128x1xf32>
    %90 = vector.shape_cast %89 : vector<1x128x1xf32> to vector<128x1xf32>
    %91 = vector.broadcast %90 : vector<128x1xf32> to vector<128x32xf32>
    %92 = arith.mulf %88, %91 : vector<128x32xf32>
    %c8_90 = arith.constant 8 : index
    %c0_91 = arith.constant 0 : index
    %c0_92 = arith.constant 0 : index
    %93 = vector.load %arg4[%c8_90, %c0_91, %c0_92] : memref<9x32x128xf32, #tpu.memory_space<vmem>>, vector<1x32x128xf32>
    %94 = vector.shape_cast %93 : vector<1x32x128xf32> to vector<32x128xf32>
    %cst_93 = arith.constant dense<0.000000e+00> : vector<128x128xf32>
    %95 = tpu.matmul %92, %94, %cst_93 {dimension_numbers = #tpu.dot_dimension_numbers<[1], [0], [0], [1], [0, 0, 1, 1], [], []>} : vector<128x32xf32>, vector<32x128xf32>, vector<128x128xf32> -> vector<128x128xf32>
    %96 = arith.addf %31, %39 : vector<128x128xf32>
    %97 = arith.addf %47, %55 : vector<128x128xf32>
    %98 = arith.addf %63, %71 : vector<128x128xf32>
    %99 = arith.addf %79, %87 : vector<128x128xf32>
    %100 = arith.addf %96, %97 : vector<128x128xf32>
    %101 = arith.addf %98, %99 : vector<128x128xf32>
    %102 = arith.addf %100, %101 : vector<128x128xf32>
    %103 = arith.addf %102, %95 : vector<128x128xf32>
    %c0_94 = arith.constant 0 : index
    %c0_95 = arith.constant 0 : index
    %104 = vector.load %arg5[%c0_94, %c0_95] : memref<1x128xf32, #tpu.memory_space<vmem>>, vector<1x128xf32>
    %105 = vector.broadcast %104 : vector<1x128xf32> to vector<128x128xf32>
    %106 = arith.addf %103, %105 : vector<128x128xf32>
    %cst_96 = arith.constant 0.000000e+00 : f32
    %107 = vector.broadcast %cst_96 : f32 to vector<128x128xf32>
    %108 = arith.maximumf %106, %107 : vector<128x128xf32>
    %c0_97 = arith.constant 0 : index
    %c0_98 = arith.constant 0 : index
    %109 = vector.load %arg7[%c0_97, %c0_98] : memref<128x128xf32, #tpu.memory_space<vmem>>, vector<128x128xf32>
    %cst_99 = arith.constant dense<0.000000e+00> : vector<128x128xf32>
    %110 = tpu.matmul %109, %108, %cst_99 {dimension_numbers = #tpu.dot_dimension_numbers<[1], [0], [0], [1], [0, 0, 1, 1], [], []>} : vector<128x128xf32>, vector<128x128xf32>, vector<128x128xf32> -> vector<128x128xf32>
    %111 = vector.extract_strided_slice %110 {offsets = [0, 0], sizes = [32, 128], strides = [1, 1]} : vector<128x128xf32> to vector<32x128xf32>
    %112 = vector.extract_strided_slice %110 {offsets = [32, 0], sizes = [32, 128], strides = [1, 1]} : vector<128x128xf32> to vector<32x128xf32>
    %113 = arith.maximumf %111, %112 : vector<32x128xf32>
    %114 = vector.extract_strided_slice %110 {offsets = [64, 0], sizes = [32, 128], strides = [1, 1]} : vector<128x128xf32> to vector<32x128xf32>
    %115 = vector.extract_strided_slice %110 {offsets = [96, 0], sizes = [32, 128], strides = [1, 1]} : vector<128x128xf32> to vector<32x128xf32>
    %116 = arith.maximumf %114, %115 : vector<32x128xf32>
    %117 = arith.maximumf %113, %116 : vector<32x128xf32>
    %118 = vector.extract_strided_slice %117 {offsets = [0, 0], sizes = [2, 64], strides = [1, 1]} : vector<32x128xf32> to vector<2x64xf32>
    %c0_100 = arith.constant 0 : index
    %c0_101 = arith.constant 0 : index
    %119 = vector.load %arg8[%c0_100, %c0_101] : memref<1024x256xf32, #tpu.memory_space<vmem>>, vector<64x256xf32>
    %cst_102 = arith.constant dense<0.000000e+00> : vector<2x256xf32>
    %120 = tpu.matmul %118, %119, %cst_102 {dimension_numbers = #tpu.dot_dimension_numbers<[1], [0], [0], [1], [0, 0, 1, 1], [], []>} : vector<2x64xf32>, vector<64x256xf32>, vector<2x256xf32> -> vector<2x256xf32>
    %121 = vector.extract_strided_slice %117 {offsets = [2, 0], sizes = [2, 64], strides = [1, 1]} : vector<32x128xf32> to vector<2x64xf32>
    %c64 = arith.constant 64 : index
    %c0_103 = arith.constant 0 : index
    %122 = vector.load %arg8[%c64, %c0_103] : memref<1024x256xf32, #tpu.memory_space<vmem>>, vector<64x256xf32>
    %cst_104 = arith.constant dense<0.000000e+00> : vector<2x256xf32>
    %123 = tpu.matmul %121, %122, %cst_104 {dimension_numbers = #tpu.dot_dimension_numbers<[1], [0], [0], [1], [0, 0, 1, 1], [], []>} : vector<2x64xf32>, vector<64x256xf32>, vector<2x256xf32> -> vector<2x256xf32>
    %124 = vector.extract_strided_slice %117 {offsets = [4, 0], sizes = [2, 64], strides = [1, 1]} : vector<32x128xf32> to vector<2x64xf32>
    %c128 = arith.constant 128 : index
    %c0_105 = arith.constant 0 : index
    %125 = vector.load %arg8[%c128, %c0_105] : memref<1024x256xf32, #tpu.memory_space<vmem>>, vector<64x256xf32>
    %cst_106 = arith.constant dense<0.000000e+00> : vector<2x256xf32>
    %126 = tpu.matmul %124, %125, %cst_106 {dimension_numbers = #tpu.dot_dimension_numbers<[1], [0], [0], [1], [0, 0, 1, 1], [], []>} : vector<2x64xf32>, vector<64x256xf32>, vector<2x256xf32> -> vector<2x256xf32>
    %127 = vector.extract_strided_slice %117 {offsets = [6, 0], sizes = [2, 64], strides = [1, 1]} : vector<32x128xf32> to vector<2x64xf32>
    %c192 = arith.constant 192 : index
    %c0_107 = arith.constant 0 : index
    %128 = vector.load %arg8[%c192, %c0_107] : memref<1024x256xf32, #tpu.memory_space<vmem>>, vector<64x256xf32>
    %cst_108 = arith.constant dense<0.000000e+00> : vector<2x256xf32>
    %129 = tpu.matmul %127, %128, %cst_108 {dimension_numbers = #tpu.dot_dimension_numbers<[1], [0], [0], [1], [0, 0, 1, 1], [], []>} : vector<2x64xf32>, vector<64x256xf32>, vector<2x256xf32> -> vector<2x256xf32>
    %130 = vector.extract_strided_slice %117 {offsets = [8, 0], sizes = [2, 64], strides = [1, 1]} : vector<32x128xf32> to vector<2x64xf32>
    %c256 = arith.constant 256 : index
    %c0_109 = arith.constant 0 : index
    %131 = vector.load %arg8[%c256, %c0_109] : memref<1024x256xf32, #tpu.memory_space<vmem>>, vector<64x256xf32>
    %cst_110 = arith.constant dense<0.000000e+00> : vector<2x256xf32>
    %132 = tpu.matmul %130, %131, %cst_110 {dimension_numbers = #tpu.dot_dimension_numbers<[1], [0], [0], [1], [0, 0, 1, 1], [], []>} : vector<2x64xf32>, vector<64x256xf32>, vector<2x256xf32> -> vector<2x256xf32>
    %133 = vector.extract_strided_slice %117 {offsets = [10, 0], sizes = [2, 64], strides = [1, 1]} : vector<32x128xf32> to vector<2x64xf32>
    %c320 = arith.constant 320 : index
    %c0_111 = arith.constant 0 : index
    %134 = vector.load %arg8[%c320, %c0_111] : memref<1024x256xf32, #tpu.memory_space<vmem>>, vector<64x256xf32>
    %cst_112 = arith.constant dense<0.000000e+00> : vector<2x256xf32>
    %135 = tpu.matmul %133, %134, %cst_112 {dimension_numbers = #tpu.dot_dimension_numbers<[1], [0], [0], [1], [0, 0, 1, 1], [], []>} : vector<2x64xf32>, vector<64x256xf32>, vector<2x256xf32> -> vector<2x256xf32>
    %136 = vector.extract_strided_slice %117 {offsets = [12, 0], sizes = [2, 64], strides = [1, 1]} : vector<32x128xf32> to vector<2x64xf32>
    %c384 = arith.constant 384 : index
    %c0_113 = arith.constant 0 : index
    %137 = vector.load %arg8[%c384, %c0_113] : memref<1024x256xf32, #tpu.memory_space<vmem>>, vector<64x256xf32>
    %cst_114 = arith.constant dense<0.000000e+00> : vector<2x256xf32>
    %138 = tpu.matmul %136, %137, %cst_114 {dimension_numbers = #tpu.dot_dimension_numbers<[1], [0], [0], [1], [0, 0, 1, 1], [], []>} : vector<2x64xf32>, vector<64x256xf32>, vector<2x256xf32> -> vector<2x256xf32>
    %139 = vector.extract_strided_slice %117 {offsets = [14, 0], sizes = [2, 64], strides = [1, 1]} : vector<32x128xf32> to vector<2x64xf32>
    %c448 = arith.constant 448 : index
    %c0_115 = arith.constant 0 : index
    %140 = vector.load %arg8[%c448, %c0_115] : memref<1024x256xf32, #tpu.memory_space<vmem>>, vector<64x256xf32>
    %cst_116 = arith.constant dense<0.000000e+00> : vector<2x256xf32>
    %141 = tpu.matmul %139, %140, %cst_116 {dimension_numbers = #tpu.dot_dimension_numbers<[1], [0], [0], [1], [0, 0, 1, 1], [], []>} : vector<2x64xf32>, vector<64x256xf32>, vector<2x256xf32> -> vector<2x256xf32>
    %142 = vector.extract_strided_slice %117 {offsets = [16, 0], sizes = [2, 64], strides = [1, 1]} : vector<32x128xf32> to vector<2x64xf32>
    %c512 = arith.constant 512 : index
    %c0_117 = arith.constant 0 : index
    %143 = vector.load %arg8[%c512, %c0_117] : memref<1024x256xf32, #tpu.memory_space<vmem>>, vector<64x256xf32>
    %cst_118 = arith.constant dense<0.000000e+00> : vector<2x256xf32>
    %144 = tpu.matmul %142, %143, %cst_118 {dimension_numbers = #tpu.dot_dimension_numbers<[1], [0], [0], [1], [0, 0, 1, 1], [], []>} : vector<2x64xf32>, vector<64x256xf32>, vector<2x256xf32> -> vector<2x256xf32>
    %145 = vector.extract_strided_slice %117 {offsets = [18, 0], sizes = [2, 64], strides = [1, 1]} : vector<32x128xf32> to vector<2x64xf32>
    %c576 = arith.constant 576 : index
    %c0_119 = arith.constant 0 : index
    %146 = vector.load %arg8[%c576, %c0_119] : memref<1024x256xf32, #tpu.memory_space<vmem>>, vector<64x256xf32>
    %cst_120 = arith.constant dense<0.000000e+00> : vector<2x256xf32>
    %147 = tpu.matmul %145, %146, %cst_120 {dimension_numbers = #tpu.dot_dimension_numbers<[1], [0], [0], [1], [0, 0, 1, 1], [], []>} : vector<2x64xf32>, vector<64x256xf32>, vector<2x256xf32> -> vector<2x256xf32>
    %148 = vector.extract_strided_slice %117 {offsets = [20, 0], sizes = [2, 64], strides = [1, 1]} : vector<32x128xf32> to vector<2x64xf32>
    %c640 = arith.constant 640 : index
    %c0_121 = arith.constant 0 : index
    %149 = vector.load %arg8[%c640, %c0_121] : memref<1024x256xf32, #tpu.memory_space<vmem>>, vector<64x256xf32>
    %cst_122 = arith.constant dense<0.000000e+00> : vector<2x256xf32>
    %150 = tpu.matmul %148, %149, %cst_122 {dimension_numbers = #tpu.dot_dimension_numbers<[1], [0], [0], [1], [0, 0, 1, 1], [], []>} : vector<2x64xf32>, vector<64x256xf32>, vector<2x256xf32> -> vector<2x256xf32>
    %151 = vector.extract_strided_slice %117 {offsets = [22, 0], sizes = [2, 64], strides = [1, 1]} : vector<32x128xf32> to vector<2x64xf32>
    %c704 = arith.constant 704 : index
    %c0_123 = arith.constant 0 : index
    %152 = vector.load %arg8[%c704, %c0_123] : memref<1024x256xf32, #tpu.memory_space<vmem>>, vector<64x256xf32>
    %cst_124 = arith.constant dense<0.000000e+00> : vector<2x256xf32>
    %153 = tpu.matmul %151, %152, %cst_124 {dimension_numbers = #tpu.dot_dimension_numbers<[1], [0], [0], [1], [0, 0, 1, 1], [], []>} : vector<2x64xf32>, vector<64x256xf32>, vector<2x256xf32> -> vector<2x256xf32>
    %154 = vector.extract_strided_slice %117 {offsets = [24, 0], sizes = [2, 64], strides = [1, 1]} : vector<32x128xf32> to vector<2x64xf32>
    %c768 = arith.constant 768 : index
    %c0_125 = arith.constant 0 : index
    %155 = vector.load %arg8[%c768, %c0_125] : memref<1024x256xf32, #tpu.memory_space<vmem>>, vector<64x256xf32>
    %cst_126 = arith.constant dense<0.000000e+00> : vector<2x256xf32>
    %156 = tpu.matmul %154, %155, %cst_126 {dimension_numbers = #tpu.dot_dimension_numbers<[1], [0], [0], [1], [0, 0, 1, 1], [], []>} : vector<2x64xf32>, vector<64x256xf32>, vector<2x256xf32> -> vector<2x256xf32>
    %157 = vector.extract_strided_slice %117 {offsets = [26, 0], sizes = [2, 64], strides = [1, 1]} : vector<32x128xf32> to vector<2x64xf32>
    %c832 = arith.constant 832 : index
    %c0_127 = arith.constant 0 : index
    %158 = vector.load %arg8[%c832, %c0_127] : memref<1024x256xf32, #tpu.memory_space<vmem>>, vector<64x256xf32>
    %cst_128 = arith.constant dense<0.000000e+00> : vector<2x256xf32>
    %159 = tpu.matmul %157, %158, %cst_128 {dimension_numbers = #tpu.dot_dimension_numbers<[1], [0], [0], [1], [0, 0, 1, 1], [], []>} : vector<2x64xf32>, vector<64x256xf32>, vector<2x256xf32> -> vector<2x256xf32>
    %160 = vector.extract_strided_slice %117 {offsets = [28, 0], sizes = [2, 64], strides = [1, 1]} : vector<32x128xf32> to vector<2x64xf32>
    %c896 = arith.constant 896 : index
    %c0_129 = arith.constant 0 : index
    %161 = vector.load %arg8[%c896, %c0_129] : memref<1024x256xf32, #tpu.memory_space<vmem>>, vector<64x256xf32>
    %cst_130 = arith.constant dense<0.000000e+00> : vector<2x256xf32>
    %162 = tpu.matmul %160, %161, %cst_130 {dimension_numbers = #tpu.dot_dimension_numbers<[1], [0], [0], [1], [0, 0, 1, 1], [], []>} : vector<2x64xf32>, vector<64x256xf32>, vector<2x256xf32> -> vector<2x256xf32>
    %163 = vector.extract_strided_slice %117 {offsets = [30, 0], sizes = [2, 64], strides = [1, 1]} : vector<32x128xf32> to vector<2x64xf32>
    %c960 = arith.constant 960 : index
    %c0_131 = arith.constant 0 : index
    %164 = vector.load %arg8[%c960, %c0_131] : memref<1024x256xf32, #tpu.memory_space<vmem>>, vector<64x256xf32>
    %cst_132 = arith.constant dense<0.000000e+00> : vector<2x256xf32>
    %165 = tpu.matmul %163, %164, %cst_132 {dimension_numbers = #tpu.dot_dimension_numbers<[1], [0], [0], [1], [0, 0, 1, 1], [], []>} : vector<2x64xf32>, vector<64x256xf32>, vector<2x256xf32> -> vector<2x256xf32>
    %166 = arith.addf %120, %123 : vector<2x256xf32>
    %167 = arith.addf %126, %129 : vector<2x256xf32>
    %168 = arith.addf %132, %135 : vector<2x256xf32>
    %169 = arith.addf %138, %141 : vector<2x256xf32>
    %170 = arith.addf %144, %147 : vector<2x256xf32>
    %171 = arith.addf %150, %153 : vector<2x256xf32>
    %172 = arith.addf %156, %159 : vector<2x256xf32>
    %173 = arith.addf %162, %165 : vector<2x256xf32>
    %174 = arith.addf %166, %167 : vector<2x256xf32>
    %175 = arith.addf %168, %169 : vector<2x256xf32>
    %176 = arith.addf %170, %171 : vector<2x256xf32>
    %177 = arith.addf %172, %173 : vector<2x256xf32>
    %178 = arith.addf %174, %175 : vector<2x256xf32>
    %179 = arith.addf %176, %177 : vector<2x256xf32>
    %180 = arith.addf %178, %179 : vector<2x256xf32>
    %c0_133 = arith.constant 0 : index
    %c0_134 = arith.constant 0 : index
    %181 = vector.load %arg9[%c0_133, %c0_134] : memref<1x256xf32, #tpu.memory_space<vmem>>, vector<1x256xf32>
    %182 = vector.broadcast %181 : vector<1x256xf32> to vector<2x256xf32>
    %183 = arith.addf %180, %182 : vector<2x256xf32>
    %cst_135 = arith.constant 0.000000e+00 : f32
    %184 = vector.broadcast %cst_135 : f32 to vector<2x256xf32>
    %185 = arith.maximumf %183, %184 : vector<2x256xf32>
    %c0_136 = arith.constant 0 : index
    %c0_137 = arith.constant 0 : index
    %186 = vector.load %arg10[%c0_136, %c0_137] : memref<256x128xf32, #tpu.memory_space<vmem>>, vector<256x128xf32>
    %cst_138 = arith.constant dense<0.000000e+00> : vector<2x128xf32>
    %187 = tpu.matmul %185, %186, %cst_138 {dimension_numbers = #tpu.dot_dimension_numbers<[1], [0], [0], [1], [0, 0, 1, 1], [], []>} : vector<2x256xf32>, vector<256x128xf32>, vector<2x128xf32> -> vector<2x128xf32>
    %c0_139 = arith.constant 0 : index
    %c0_140 = arith.constant 0 : index
    %188 = vector.load %arg11[%c0_139, %c0_140] : memref<1x128xf32, #tpu.memory_space<vmem>>, vector<1x128xf32>
    %189 = vector.broadcast %188 : vector<1x128xf32> to vector<2x128xf32>
    %190 = arith.addf %187, %189 : vector<2x128xf32>
    %191 = tpu.iota {dimensions = array<i32: 1>} : vector<2x128xi32>
    %c10_i32 = arith.constant 10 : i32
    %192 = vector.broadcast %c10_i32 : i32 to vector<2x128xi32>
    %193 = arith.cmpi slt, %191, %192 : vector<2x128xi32>
    %cst_141 = arith.constant -1.000000e+30 : f32
    %194 = vector.broadcast %cst_141 : f32 to vector<2x128xf32>
    %195 = arith.select %193, %190, %194 : vector<2x128xi1>, vector<2x128xf32>
    %cst_142 = arith.constant dense<0xFF800000> : vector<2xf32>
    %196 = vector.multi_reduction <maximumf>, %195, %cst_142 [1] : vector<2x128xf32> to vector<2xf32>
    %197 = vector.shape_cast %196 : vector<2xf32> to vector<2x1xf32>
    %198 = vector.broadcast %197 : vector<2x1xf32> to vector<2x128xf32>
    %199 = arith.subf %190, %198 : vector<2x128xf32>
    %200 = math.exp %199 : vector<2x128xf32>
    %cst_143 = arith.constant 0.000000e+00 : f32
    %201 = vector.broadcast %cst_143 : f32 to vector<2x128xf32>
    %202 = arith.select %193, %200, %201 : vector<2x128xi1>, vector<2x128xf32>
    %cst_144 = arith.constant dense<0.000000e+00> : vector<2xf32>
    %203 = vector.multi_reduction <add>, %202, %cst_144 [1] : vector<2x128xf32> to vector<2xf32>
    %204 = vector.shape_cast %203 : vector<2xf32> to vector<2x1xf32>
    %205 = vector.broadcast %204 : vector<2x1xf32> to vector<2x128xf32>
    %206 = arith.divf %202, %205 : vector<2x128xf32>
    %c0_145 = arith.constant 0 : index
    %c0_146 = arith.constant 0 : index
    %207 = vector.load %arg12[%c0_145, %c0_146] : memref<2x128xf32, #tpu.memory_space<vmem>>, vector<2x128xf32>
    tpu.vector_store %arg12[%c0_145, %c0_146], %206 {strides = array<i32>} : memref<2x128xf32, #tpu.memory_space<vmem>>, vector<2x128xf32>,
    return
  }
  func.func @transform_0(%arg0: i32) -> (i32, i32) {
    %c0_i32 = arith.constant 0 : i32
    %c0_i32_0 = arith.constant 0 : i32
    %c0_i32_1 = arith.constant 0 : i32
    return %c0_i32, %c0_i32_0 : i32, i32
  }
  func.func @transform_1(%arg0: i32) -> (i32, i32) {
    %c0_i32 = arith.constant 0 : i32
    %c0_i32_0 = arith.constant 0 : i32
    %c0_i32_1 = arith.constant 0 : i32
    return %c0_i32, %c0_i32_0 : i32, i32
  }
  func.func @transform_2(%arg0: i32) -> (i32, i32) {
    %c0_i32 = arith.constant 0 : i32
    %c0_i32_0 = arith.constant 0 : i32
    %c0_i32_1 = arith.constant 0 : i32
    return %c0_i32, %c0_i32_0 : i32, i32
  }
  func.func @transform_3(%arg0: i32) -> (i32, i32, i32) {
    %c0_i32 = arith.constant 0 : i32
    %c0_i32_0 = arith.constant 0 : i32
    %c0_i32_1 = arith.constant 0 : i32
    %c0_i32_2 = arith.constant 0 : i32
    return %c0_i32, %c0_i32_0, %c0_i32_1 : i32, i32, i32
  }
  func.func @transform_4(%arg0: i32) -> (i32, i32) {
    %c0_i32 = arith.constant 0 : i32
    %c0_i32_0 = arith.constant 0 : i32
    %c0_i32_1 = arith.constant 0 : i32
    return %c0_i32, %c0_i32_0 : i32, i32
  }
  func.func @transform_5(%arg0: i32) -> (i32, i32, i32) {
    %c0_i32 = arith.constant 0 : i32
    %c0_i32_0 = arith.constant 0 : i32
    %c0_i32_1 = arith.constant 0 : i32
    %c0_i32_2 = arith.constant 0 : i32
    return %c0_i32, %c0_i32_0, %c0_i32_1 : i32, i32, i32
  }
  func.func @transform_6(%arg0: i32) -> (i32, i32) {
    %c0_i32 = arith.constant 0 : i32
    %c0_i32_0 = arith.constant 0 : i32
    %c0_i32_1 = arith.constant 0 : i32
    return %c0_i32, %c0_i32_0 : i32, i32
  }
  func.func @transform_7(%arg0: i32) -> (i32, i32) {
    %c0_i32 = arith.constant 0 : i32
    %c0_i32_0 = arith.constant 0 : i32
    %c0_i32_1 = arith.constant 0 : i32
    return %c0_i32, %c0_i32_0 : i32, i32
  }
  func.func @transform_8(%arg0: i32) -> (i32, i32) {
    %c0_i32 = arith.constant 0 : i32
    %c0_i32_0 = arith.constant 0 : i32
    %c0_i32_1 = arith.constant 0 : i32
    return %c0_i32, %c0_i32_0 : i32, i32
  }
  func.func @transform_9(%arg0: i32) -> (i32, i32) {
    %c0_i32 = arith.constant 0 : i32
    %c0_i32_0 = arith.constant 0 : i32
    %c0_i32_1 = arith.constant 0 : i32
    return %c0_i32, %c0_i32_0 : i32, i32
  }
  func.func @transform_10(%arg0: i32) -> (i32, i32) {
    %c0_i32 = arith.constant 0 : i32
    %c0_i32_0 = arith.constant 0 : i32
    %c0_i32_1 = arith.constant 0 : i32
    return %c0_i32, %c0_i32_0 : i32, i32
  }
  func.func @transform_11(%arg0: i32) -> (i32, i32) {
    %c0_i32 = arith.constant 0 : i32
    %c0_i32_0 = arith.constant 0 : i32
    %c0_i32_1 = arith.constant 0 : i32
    return %c0_i32, %c0_i32_0 : i32, i32
  }
}

</mosaic_0001>

<llo_original>
// kernel: model2_forward.1
$region0: #{model2_forward.1}
  #allocation0 [shape = 'u32[]', space=smem, size = 0x4, offset = 0x4, fixed_abs, tag = 'smem constant byte address 0x4 - core index']
  #allocation1 [shape = 'u32[144,128]{1,0:T(1,128)}', space=vmem, size = 0x12000, scoped, tag = 'internal scratch']
  #allocation2 [shape = 'f32[16,32,128]{2,1,0:T(8,128)}', space=vmem, size = 0x40000, scoped, tag = 'scratch operand']
  #allocation3 [shape = 'f32[160,32]{1,0:T(8,128)}', space=vmem, size = 0x14000, scoped, tag = 'scratch operand']
  %s0 = inlined_call_operand.vmem [shape: f32[512,64], index: 0, kind: input, shape index: {}]
  %s1 = inlined_call_operand.vmem [shape: f32[64,128], index: 1, kind: input, shape index: {}]
  %s2 = inlined_call_operand.vmem [shape: f32[1,128], index: 2, kind: input, shape index: {}]
  %s3 = inlined_call_operand.vmem [shape: f32[9,32,128], index: 3, kind: input, shape index: {}]
  %s4 = inlined_call_operand.vmem [shape: f32[1,128], index: 4, kind: input, shape index: {}]
  %s5 = inlined_call_operand.vmem [shape: f32[9,128,1], index: 5, kind: input, shape index: {}]
  %s6 = inlined_call_operand.vmem [shape: f32[128,128], index: 6, kind: input, shape index: {}]
  %s7 = inlined_call_operand.vmem [shape: f32[1024,256], index: 7, kind: input, shape index: {}]
  %s8 = inlined_call_operand.vmem [shape: f32[1,256], index: 8, kind: input, shape index: {}]
  %s9 = inlined_call_operand.vmem [shape: f32[256,128], index: 9, kind: input, shape index: {}]
  %s10 = inlined_call_operand.vmem [shape: f32[1,128], index: 10, kind: input, shape index: {}]
  %s11 = inlined_call_operand.hbm [shape: f32[2,128], index: 11, kind: output, shape index: {}]
  %s12 = sld [smem:[#allocation0]]
  $region54: #{model2_forward.1} parent=0
    _
  %s14 = ssub.s32 1, %s12
  %s15 = scalar_select 0, %s14, %s12
  $region1: #{model2_forward.1} parent=0
    #allocation4 [shape = 'u8[1024]{0}', space=vmem, size = 0x400, scoped, tag = 'output window, operand 0, single buffered']
    #allocation5 [shape = 's32[1]{0}', space=sflag, size = 0x4, scoped, tag = 'scoped memory for model2_forward.1']
    %16 = vsyncpa [#allocation5], 0
    // Predicated region
    $region2: #{model2_forward.1} parent=1 // pred_check
      _
    $region3: #{model2_forward.1} parent=1 // pred_check_branch
      %18 = sbr.rel (0) target = $region5
    $region4: #{model2_forward.1} parent=1 // pred_region
      _
    $region5: #{model2_forward.1} parent=1 // pred_fallthru
      _
    // Predicated region
    $region6: #{model2_forward.1} parent=1 // pred_check
      _
    $region7: #{model2_forward.1} parent=1 // pred_check_branch
      %20 = sbr.rel (0) target = $region9
    $region8: #{model2_forward.1} parent=1 // pred_region
      _
    $region9: #{model2_forward.1} parent=1 // pred_fallthru
      _
    // Predicated region
    $region10: #{model2_forward.1} parent=1 // pred_check
      _
    $region11: #{model2_forward.1} parent=1 // pred_check_branch
      %22 = sbr.rel (0) target = $region13
    $region12: #{model2_forward.1} parent=1 // pred_region
      _
    $region13: #{model2_forward.1} parent=1 // pred_fallthru
      _
    // Predicated region
    $region14: #{model2_forward.1} parent=1 // pred_check
      _
    $region15: #{model2_forward.1} parent=1 // pred_check_branch
      %24 = sbr.rel (0) target = $region17
    $region16: #{model2_forward.1} parent=1 // pred_region
      _
    $region17: #{model2_forward.1} parent=1 // pred_fallthru
      _
    // Predicated region
    $region18: #{model2_forward.1} parent=1 // pred_check
      _
    $region19: #{model2_forward.1} parent=1 // pred_check_branch
      %26 = sbr.rel (0) target = $region21
    $region20: #{model2_forward.1} parent=1 // pred_region
      _
    $region21: #{model2_forward.1} parent=1 // pred_fallthru
      _
    // Predicated region
    $region22: #{model2_forward.1} parent=1 // pred_check
      _
    $region23: #{model2_forward.1} parent=1 // pred_check_branch
      %28 = sbr.rel (0) target = $region25
    $region24: #{model2_forward.1} parent=1 // pred_region
      _
    $region25: #{model2_forward.1} parent=1 // pred_fallthru
      _
    // Predicated region
    $region26: #{model2_forward.1} parent=1 // pred_check
      _
    $region27: #{model2_forward.1} parent=1 // pred_check_branch
      %30 = sbr.rel (0) target = $region29
    $region28: #{model2_forward.1} parent=1 // pred_region
      _
    $region29: #{model2_forward.1} parent=1 // pred_fallthru
      _
    // Predicated region
    $region30: #{model2_forward.1} parent=1 // pred_check
      _
    $region31: #{model2_forward.1} parent=1 // pred_check_branch
      %32 = sbr.rel (0) target = $region33
    $region32: #{model2_forward.1} parent=1 // pred_region
      _
    $region33: #{model2_forward.1} parent=1 // pred_fallthru
      _
    // Predicated region
    $region34: #{model2_forward.1} parent=1 // pred_check
      _
    $region35: #{model2_forward.1} parent=1 // pred_check_branch
      %34 = sbr.rel (0) target = $region37
    $region36: #{model2_forward.1} parent=1 // pred_region
      _
    $region37: #{model2_forward.1} parent=1 // pred_fallthru
      _
    // Predicated region
    $region38: #{model2_forward.1} parent=1 // pred_check
      _
    $region39: #{model2_forward.1} parent=1 // pred_check_branch
      %36 = sbr.rel (0) target = $region41
    $region40: #{model2_forward.1} parent=1 // pred_region
      _
    $region41: #{model2_forward.1} parent=1 // pred_fallthru
      _
    // Predicated region
    $region42: #{model2_forward.1} parent=1 // pred_check
      _
    $region43: #{model2_forward.1} parent=1 // pred_check_branch
      %38 = sbr.rel (0) target = $region45
    $region44: #{model2_forward.1} parent=1 // pred_region
      _
    $region45: #{model2_forward.1} parent=1 // pred_fallthru
      _
    %v39 = vld [vmem:[%s0] sm:$0xff]
    %v40 = vld [vmem:[%s0 + $0x8] sm:$0xff]
    %v41 = vld [vmem:[%s0 + $0x10] sm:$0xff]
    %v42 = vld [vmem:[%s0 + $0x18] sm:$0xff]
    %v43 = vld [vmem:[%s0 + $0x20] sm:$0xff]
    %v44 = vld [vmem:[%s0 + $0x28] sm:$0xff]
    %v45 = vld [vmem:[%s0 + $0x30] sm:$0xff]
    %v46 = vld [vmem:[%s0 + $0x38] sm:$0xff]
    %v47 = vld [vmem:[%s0 + $0x40] sm:$0xff]
    %v48 = vld [vmem:[%s0 + $0x48] sm:$0xff]
    %v49 = vld [vmem:[%s0 + $0x50] sm:$0xff]
    %v50 = vld [vmem:[%s0 + $0x58] sm:$0xff]
    %v51 = vld [vmem:[%s0 + $0x60] sm:$0xff]
    %v52 = vld [vmem:[%s0 + $0x68] sm:$0xff]
    %v53 = vld [vmem:[%s0 + $0x70] sm:$0xff]
    %v54 = vld [vmem:[%s0 + $0x78] sm:$0xff]
    %v55 = vld [vmem:[%s0 + $0x80] sm:$0xff]
    %v56 = vld [vmem:[%s0 + $0x88] sm:$0xff]
    %v57 = vld [vmem:[%s0 + $0x90] sm:$0xff]
    %v58 = vld [vmem:[%s0 + $0x98] sm:$0xff]
    %v59 = vld [vmem:[%s0 + $0xa0] sm:$0xff]
    %v60 = vld [vmem:[%s0 + $0xa8] sm:$0xff]
    %v61 = vld [vmem:[%s0 + $0xb0] sm:$0xff]
    %v62 = vld [vmem:[%s0 + $0xb8] sm:$0xff]
    %v63 = vld [vmem:[%s0 + $0xc0] sm:$0xff]
    %v64 = vld [vmem:[%s0 + $0xc8] sm:$0xff]
    %v65 = vld [vmem:[%s0 + $0xd0] sm:$0xff]
    %v66 = vld [vmem:[%s0 + $0xd8] sm:$0xff]
    %v67 = vld [vmem:[%s0 + $0xe0] sm:$0xff]
    %v68 = vld [vmem:[%s0 + $0xe8] sm:$0xff]
    %v69 = vld [vmem:[%s0 + $0xf0] sm:$0xff]
    %v70 = vld [vmem:[%s0 + $0xf8] sm:$0xff]
    %v71 = vld [vmem:[%s0 + $0x100] sm:$0xff]
    %v72 = vld [vmem:[%s0 + $0x108] sm:$0xff]
    %v73 = vld [vmem:[%s0 + $0x110] sm:$0xff]
    %v74 = vld [vmem:[%s0 + $0x118] sm:$0xff]
    %v75 = vld [vmem:[%s0 + $0x120] sm:$0xff]
    %v76 = vld [vmem:[%s0 + $0x128] sm:$0xff]
    %v77 = vld [vmem:[%s0 + $0x130] sm:$0xff]
    %v78 = vld [vmem:[%s0 + $0x138] sm:$0xff]
    %v79 = vld [vmem:[%s0 + $0x140] sm:$0xff]
    %v80 = vld [vmem:[%s0 + $0x148] sm:$0xff]
    %v81 = vld [vmem:[%s0 + $0x150] sm:$0xff]
    %v82 = vld [vmem:[%s0 + $0x158] sm:$0xff]
    %v83 = vld [vmem:[%s0 + $0x160] sm:$0xff]
    %v84 = vld [vmem:[%s0 + $0x168] sm:$0xff]
    %v85 = vld [vmem:[%s0 + $0x170] sm:$0xff]
    %v86 = vld [vmem:[%s0 + $0x178] sm:$0xff]
    %v87 = vld [vmem:[%s0 + $0x180] sm:$0xff]
    %v88 = vld [vmem:[%s0 + $0x188] sm:$0xff]
    %v89 = vld [vmem:[%s0 + $0x190] sm:$0xff]
    %v90 = vld [vmem:[%s0 + $0x198] sm:$0xff]
    %v91 = vld [vmem:[%s0 + $0x1a0] sm:$0xff]
    %v92 = vld [vmem:[%s0 + $0x1a8] sm:$0xff]
    %v93 = vld [vmem:[%s0 + $0x1b0] sm:$0xff]
    %v94 = vld [vmem:[%s0 + $0x1b8] sm:$0xff]
    %v95 = vld [vmem:[%s0 + $0x1c0] sm:$0xff]
    %v96 = vld [vmem:[%s0 + $0x1c8] sm:$0xff]
    %v97 = vld [vmem:[%s0 + $0x1d0] sm:$0xff]
    %v98 = vld [vmem:[%s0 + $0x1d8] sm:$0xff]
    %v99 = vld [vmem:[%s0 + $0x1e0] sm:$0xff]
    %v100 = vld [vmem:[%s0 + $0x1e8] sm:$0xff]
    %v101 = vld [vmem:[%s0 + $0x1f0] sm:$0xff]
    %v102 = vld [vmem:[%s0 + $0x1f8] sm:$0xff]
    %v103 = vld [vmem:[%s1] sm:$0xff]
    %v104 = vld [vmem:[%s1 + $0x8] sm:$0xff]
    %v105 = vld [vmem:[%s1 + $0x10] sm:$0xff]
    %v106 = vld [vmem:[%s1 + $0x18] sm:$0xff]
    %v107 = vld [vmem:[%s1 + $0x20] sm:$0xff]
    %v108 = vld [vmem:[%s1 + $0x28] sm:$0xff]
    %v109 = vld [vmem:[%s1 + $0x30] sm:$0xff]
    %v110 = vld [vmem:[%s1 + $0x38] sm:$0xff]
    %v111 = vld [vmem:[%s2] sm:$0x1]
    %v113 = vlaneseq
    %v114 = vshrl.u32 %v113, 7
    %v115 = vsub.s32 0, %v114
    %v116 = vrot.slane %v111, %v115
    %vm118 = vcmask 523264
    %v120 = vsel %vm118, %v39, 0
    %v123 = vsel %vm118, %v40, 0
    %v126 = vsel %vm118, %v41, 0
    %v129 = vsel %vm118, %v42, 0
    %v132 = vsel %vm118, %v43, 0
    %v135 = vsel %vm118, %v44, 0
    %v138 = vsel %vm118, %v45, 0
    %v141 = vsel %vm118, %v46, 0
    %v144 = vsel %vm118, %v47, 0
    %v147 = vsel %vm118, %v48, 0
    %v150 = vsel %vm118, %v49, 0
    %v153 = vsel %vm118, %v50, 0
    %v156 = vsel %vm118, %v51, 0
    %v159 = vsel %vm118, %v52, 0
    %v162 = vsel %vm118, %v53, 0
    %v165 = vsel %vm118, %v54, 0
    %v168 = vsel %vm118, %v55, 0
    %v171 = vsel %vm118, %v56, 0
    %v174 = vsel %vm118, %v57, 0
    %v177 = vsel %vm118, %v58, 0
    %v180 = vsel %vm118, %v59, 0
    %v183 = vsel %vm118, %v60, 0
    %v186 = vsel %vm118, %v61, 0
    %v189 = vsel %vm118, %v62, 0
    %v192 = vsel %vm118, %v63, 0
    %v195 = vsel %vm118, %v64, 0
    %v198 = vsel %vm118, %v65, 0
    %v201 = vsel %vm118, %v66, 0
    %v204 = vsel %vm118, %v67, 0
    %v207 = vsel %vm118, %v68, 0
    %v210 = vsel %vm118, %v69, 0
    %v213 = vsel %vm118, %v70, 0
    %v216 = vsel %vm118, %v71, 0
    %v219 = vsel %vm118, %v72, 0
    %v222 = vsel %vm118, %v73, 0
    %v225 = vsel %vm118, %v74, 0
    %v228 = vsel %vm118, %v75, 0
    %v231 = vsel %vm118, %v76, 0
    %v234 = vsel %vm118, %v77, 0
    %v237 = vsel %vm118, %v78, 0
    %v240 = vsel %vm118, %v79, 0
    %v243 = vsel %vm118, %v80, 0
    %v246 = vsel %vm118, %v81, 0
    %v249 = vsel %vm118, %v82, 0
    %v252 = vsel %vm118, %v83, 0
    %v255 = vsel %vm118, %v84, 0
    %v258 = vsel %vm118, %v85, 0
    %v261 = vsel %vm118, %v86, 0
    %v264 = vsel %vm118, %v87, 0
    %v267 = vsel %vm118, %v88, 0
    %v270 = vsel %vm118, %v89, 0
    %v273 = vsel %vm118, %v90, 0
    %v276 = vsel %vm118, %v91, 0
    %v279 = vsel %vm118, %v92, 0
    %v282 = vsel %vm118, %v93, 0
    %v285 = vsel %vm118, %v94, 0
    %v288 = vsel %vm118, %v95, 0
    %v291 = vsel %vm118, %v96, 0
    %v294 = vsel %vm118, %v97, 0
    %v297 = vsel %vm118, %v98, 0
    %v300 = vsel %vm118, %v99, 0
    %v303 = vsel %vm118, %v100, 0
    %v306 = vsel %vm118, %v101, 0
    %v309 = vsel %vm118, %v102, 0
    %311 = vmatprep.subr.mxu0 0.0
    %312 = vmatpush1.msra.mxu0 %v103
    %313 = vmatprep.subr.mxu0 0.0
    %314 = vmatpush1.msra.mxu0 %v104
    %315 = vmatprep.subr.mxu0 0.0
    %316 = vmatpush1.msra.mxu0 %v105
    %317 = vmatprep.subr.mxu0 0.0
    %318 = vmatpush1.msra.mxu0 %v106
    %319 = vmatprep.subr.mxu0 0.0
    %320 = vmatpush1.msra.mxu0 %v107
    %321 = vmatprep.subr.mxu0 0.0
    %322 = vmatpush1.msra.mxu0 %v108
    %323 = vmatprep.subr.mxu0 0.0
    %324 = vmatpush1.msra.mxu0 %v109
    %325 = vmatprep.subr.mxu0 0.0
    %326 = vmatpush1.msra.mxu0 %v110
    %327 = vmatprep.subr.mxu0 0.0
    %328 = vmatpush1.msra.mxu0 0.0
    %329 = vmatprep.subr.mxu0 0.0
    %330 = vmatpush1.msra.mxu0 0.0
    %331 = vmatprep.subr.mxu0 0.0
    %332 = vmatpush1.msra.mxu0 0.0
    %333 = vmatprep.subr.mxu0 0.0
    %334 = vmatpush1.msra.mxu0 0.0
    %335 = vmatprep.subr.mxu0 0.0
    %336 = vmatpush1.msra.mxu0 0.0
    %337 = vmatprep.subr.mxu0 0.0
    %338 = vmatpush1.msra.mxu0 0.0
    %339 = vmatprep.subr.mxu0 0.0
    %340 = vmatpush1.msra.mxu0 0.0
    %341 = vmatprep.subr.mxu0 0.0
    %342 = vmatpush1.msra.mxu0 0.0
    %343 = vmatprep.subr.mxu0 0.0
    %344 = vmatpush1.msra.mxu0 0.0
    %345 = vmatprep.subr.mxu0 0.0
    %346 = vmatpush1.msra.mxu0 0.0
    %347 = vmatprep.subr.mxu0 0.0
    %348 = vmatpush1.msra.mxu0 0.0
    %349 = vmatprep.subr.mxu0 0.0
    %350 = vmatpush1.msra.mxu0 0.0
    %351 = vmatprep.subr.mxu0 0.0
    %352 = vmatpush1.msra.mxu0 0.0
    %353 = vmatprep.subr.mxu0 0.0
    %354 = vmatpush1.msra.mxu0 0.0
    %355 = vmatprep.subr.mxu0 0.0
    %356 = vmatpush1.msra.mxu0 0.0
    %357 = vmatprep.subr.mxu0 0.0
    %358 = vmatpush1.msra.mxu0 0.0
    %359 = vmatprep.subr.mxu0 0.0
    %360 = vmatpush1.msra.mxu0 0.0
    %361 = vmatprep.subr.mxu0 0.0
    %362 = vmatpush1.msra.mxu0 0.0
    %363 = vmatprep.subr.mxu0 0.0
    %364 = vmatpush1.msra.mxu0 0.0
    %365 = vmatprep.subr.mxu0 0.0
    %366 = vmatpush1.msra.mxu0 0.0
    %367 = vmatprep.subr.mxu0 0.0
    %368 = vmatpush1.msra.mxu0 0.0
    %369 = vmatprep.subr.mxu0 0.0
    %370 = vmatpush1.msra.mxu0 0.0
    %371 = vmatprep.subr.mxu0 0.0
    %372 = vmatpush1.msra.mxu0 0.0
    %373 = vmatprep.subr.mxu0 0.0
    %374 = vmatpush1.msra.mxu0 0.0
    %375 = vmatprep.mubr.f32.mxu0 0.0
    %376 = vmatmul.mubr.f32.gmra.mrb[0].mxu0 %v120
    %v377 = vpop.f32.mrb[0].mxu0
    %v378 = vadd.f32 %v116, %v377
    %v379 = vpop.f32.mrb[0].mxu0
    %380 = vmatprep.mubr.f32.mxu0 0.0
    %381 = vmatmul.mubr.f32.gmra.mrb[0].mxu0 %v123
    %v382 = vpop.f32.mrb[0].mxu0
    %v383 = vadd.f32 %v116, %v382
    %v384 = vpop.f32.mrb[0].mxu0
    %385 = vmatprep.mubr.f32.mxu0 0.0
    %386 = vmatmul.mubr.f32.gmra.mrb[0].mxu0 %v126
    %v387 = vpop.f32.mrb[0].mxu0
    %v388 = vadd.f32 %v116, %v387
    %v389 = vpop.f32.mrb[0].mxu0
    %390 = vmatprep.mubr.f32.mxu0 0.0
    %391 = vmatmul.mubr.f32.gmra.mrb[0].mxu0 %v129
    %v392 = vpop.f32.mrb[0].mxu0
    %v393 = vadd.f32 %v116, %v392
    %v394 = vpop.f32.mrb[0].mxu0
    %395 = vmatprep.mubr.f32.mxu0 0.0
    %396 = vmatmul.mubr.f32.gmra.mrb[0].mxu0 %v132
    %v397 = vpop.f32.mrb[0].mxu0
    %v398 = vadd.f32 %v116, %v397
    %v399 = vpop.f32.mrb[0].mxu0
    %400 = vmatprep.mubr.f32.mxu0 0.0
    %401 = vmatmul.mubr.f32.gmra.mrb[0].mxu0 %v135
    %v402 = vpop.f32.mrb[0].mxu0
    %v403 = vadd.f32 %v116, %v402
    %v404 = vpop.f32.mrb[0].mxu0
    %405 = vmatprep.mubr.f32.mxu0 0.0
    %406 = vmatmul.mubr.f32.gmra.mrb[0].mxu0 %v138
    %v407 = vpop.f32.mrb[0].mxu0
    %v408 = vadd.f32 %v116, %v407
    %v409 = vpop.f32.mrb[0].mxu0
    %410 = vmatprep.mubr.f32.mxu0 0.0
    %411 = vmatmul.mubr.f32.gmra.mrb[0].mxu0 %v141
    %v412 = vpop.f32.mrb[0].mxu0
    %v413 = vadd.f32 %v116, %v412
    %v414 = vpop.f32.mrb[0].mxu0
    %415 = vmatprep.mubr.f32.mxu0 0.0
    %416 = vmatmul.mubr.f32.gmra.mrb[0].mxu0 %v144
    %v417 = vpop.f32.mrb[0].mxu0
    %v418 = vadd.f32 %v116, %v417
    %v419 = vpop.f32.mrb[0].mxu0
    %420 = vmatprep.mubr.f32.mxu0 0.0
    %421 = vmatmul.mubr.f32.gmra.mrb[0].mxu0 %v147
    %v422 = vpop.f32.mrb[0].mxu0
    %v423 = vadd.f32 %v116, %v422
    %v424 = vpop.f32.mrb[0].mxu0
    %425 = vmatprep.mubr.f32.mxu0 0.0
    %426 = vmatmul.mubr.f32.gmra.mrb[0].mxu0 %v150
    %v427 = vpop.f32.mrb[0].mxu0
    %v428 = vadd.f32 %v116, %v427
    %v429 = vpop.f32.mrb[0].mxu0
    %430 = vmatprep.mubr.f32.mxu0 0.0
    %431 = vmatmul.mubr.f32.gmra.mrb[0].mxu0 %v153
    %v432 = vpop.f32.mrb[0].mxu0
    %v433 = vadd.f32 %v116, %v432
    %v434 = vpop.f32.mrb[0].mxu0
    %435 = vmatprep.mubr.f32.mxu0 0.0
    %436 = vmatmul.mubr.f32.gmra.mrb[0].mxu0 %v156
    %v437 = vpop.f32.mrb[0].mxu0
    %v438 = vadd.f32 %v116, %v437
    %v439 = vpop.f32.mrb[0].mxu0
    %440 = vmatprep.mubr.f32.mxu0 0.0
    %441 = vmatmul.mubr.f32.gmra.mrb[0].mxu0 %v159
    %v442 = vpop.f32.mrb[0].mxu0
    %v443 = vadd.f32 %v116, %v442
    %v444 = vpop.f32.mrb[0].mxu0
    %445 = vmatprep.mubr.f32.mxu0 0.0
    %446 = vmatmul.mubr.f32.gmra.mrb[0].mxu0 %v162
    %v447 = vpop.f32.mrb[0].mxu0
    %v448 = vadd.f32 %v116, %v447
    %v449 = vpop.f32.mrb[0].mxu0
    %450 = vmatprep.mubr.f32.mxu0 0.0
    %451 = vmatmul.mubr.f32.gmra.mrb[0].mxu0 %v165
    %v452 = vpop.f32.mrb[0].mxu0
    %v453 = vadd.f32 %v116, %v452
    %v454 = vpop.f32.mrb[0].mxu0
    %455 = vmatprep.mubr.f32.mxu0 0.0
    %456 = vmatmul.mubr.f32.gmra.mrb[0].mxu0 %v168
    %v457 = vpop.f32.mrb[0].mxu0
    %v458 = vadd.f32 %v116, %v457
    %v459 = vpop.f32.mrb[0].mxu0
    %460 = vmatprep.mubr.f32.mxu0 0.0
    %461 = vmatmul.mubr.f32.gmra.mrb[0].mxu0 %v171
    %v462 = vpop.f32.mrb[0].mxu0
    %v463 = vadd.f32 %v116, %v462
    %v464 = vpop.f32.mrb[0].mxu0
    %465 = vmatprep.mubr.f32.mxu0 0.0
    %466 = vmatmul.mubr.f32.gmra.mrb[0].mxu0 %v174
    %v467 = vpop.f32.mrb[0].mxu0
    %v468 = vadd.f32 %v116, %v467
    %v469 = vpop.f32.mrb[0].mxu0
    %470 = vmatprep.mubr.f32.mxu0 0.0
    %471 = vmatmul.mubr.f32.gmra.mrb[0].mxu0 %v177
    %v472 = vpop.f32.mrb[0].mxu0
    %v473 = vadd.f32 %v116, %v472
    %v474 = vpop.f32.mrb[0].mxu0
    %475 = vmatprep.mubr.f32.mxu0 0.0
    %476 = vmatmul.mubr.f32.gmra.mrb[0].mxu0 %v180
    %v477 = vpop.f32.mrb[0].mxu0
    %v478 = vadd.f32 %v116, %v477
    %v479 = vpop.f32.mrb[0].mxu0
    %480 = vmatprep.mubr.f32.mxu0 0.0
    %481 = vmatmul.mubr.f32.gmra.mrb[0].mxu0 %v183
    %v482 = vpop.f32.mrb[0].mxu0
    %v483 = vadd.f32 %v116, %v482
    %v484 = vpop.f32.mrb[0].mxu0
    %485 = vmatprep.mubr.f32.mxu0 0.0
    %486 = vmatmul.mubr.f32.gmra.mrb[0].mxu0 %v186
    %v487 = vpop.f32.mrb[0].mxu0
    %v488 = vadd.f32 %v116, %v487
    %v489 = vpop.f32.mrb[0].mxu0
    %490 = vmatprep.mubr.f32.mxu0 0.0
    %491 = vmatmul.mubr.f32.gmra.mrb[0].mxu0 %v189
    %v492 = vpop.f32.mrb[0].mxu0
    %v493 = vadd.f32 %v116, %v492
    %v494 = vpop.f32.mrb[0].mxu0
    %495 = vmatprep.mubr.f32.mxu0 0.0
    %496 = vmatmul.mubr.f32.gmra.mrb[0].mxu0 %v192
    %v497 = vpop.f32.mrb[0].mxu0
    %v498 = vadd.f32 %v116, %v497
    %v499 = vpop.f32.mrb[0].mxu0
    %500 = vmatprep.mubr.f32.mxu0 0.0
    %501 = vmatmul.mubr.f32.gmra.mrb[0].mxu0 %v195
    %v502 = vpop.f32.mrb[0].mxu0
    %v503 = vadd.f32 %v116, %v502
    %v504 = vpop.f32.mrb[0].mxu0
    %505 = vmatprep.mubr.f32.mxu0 0.0
    %506 = vmatmul.mubr.f32.gmra.mrb[0].mxu0 %v198
    %v507 = vpop.f32.mrb[0].mxu0
    %v508 = vadd.f32 %v116, %v507
    %v509 = vpop.f32.mrb[0].mxu0
    %510 = vmatprep.mubr.f32.mxu0 0.0
    %511 = vmatmul.mubr.f32.gmra.mrb[0].mxu0 %v201
    %v512 = vpop.f32.mrb[0].mxu0
    %v513 = vadd.f32 %v116, %v512
    %v514 = vpop.f32.mrb[0].mxu0
    %515 = vmatprep.mubr.f32.mxu0 0.0
    %516 = vmatmul.mubr.f32.gmra.mrb[0].mxu0 %v204
    %v517 = vpop.f32.mrb[0].mxu0
    %v518 = vadd.f32 %v116, %v517
    %v519 = vpop.f32.mrb[0].mxu0
    %520 = vmatprep.mubr.f32.mxu0 0.0
    %521 = vmatmul.mubr.f32.gmra.mrb[0].mxu0 %v207
    %v522 = vpop.f32.mrb[0].mxu0
    %v523 = vadd.f32 %v116, %v522
    %v524 = vpop.f32.mrb[0].mxu0
    %525 = vmatprep.mubr.f32.mxu0 0.0
    %526 = vmatmul.mubr.f32.gmra.mrb[0].mxu0 %v210
    %v527 = vpop.f32.mrb[0].mxu0
    %v528 = vadd.f32 %v116, %v527
    %v529 = vpop.f32.mrb[0].mxu0
    %530 = vmatprep.mubr.f32.mxu0 0.0
    %531 = vmatmul.mubr.f32.gmra.mrb[0].mxu0 %v213
    %v532 = vpop.f32.mrb[0].mxu0
    %v533 = vadd.f32 %v116, %v532
    %v534 = vpop.f32.mrb[0].mxu0
    %535 = vmatprep.mubr.f32.mxu0 0.0
    %536 = vmatmul.mubr.f32.gmra.mrb[0].mxu0 %v216
    %v537 = vpop.f32.mrb[0].mxu0
    %v538 = vadd.f32 %v116, %v537
    %v539 = vpop.f32.mrb[0].mxu0
    %540 = vmatprep.mubr.f32.mxu0 0.0
    %541 = vmatmul.mubr.f32.gmra.mrb[0].mxu0 %v219
    %v542 = vpop.f32.mrb[0].mxu0
    %v543 = vadd.f32 %v116, %v542
    %v544 = vpop.f32.mrb[0].mxu0
    %545 = vmatprep.mubr.f32.mxu0 0.0
    %546 = vmatmul.mubr.f32.gmra.mrb[0].mxu0 %v222
    %v547 = vpop.f32.mrb[0].mxu0
    %v548 = vadd.f32 %v116, %v547
    %v549 = vpop.f32.mrb[0].mxu0
    %550 = vmatprep.mubr.f32.mxu0 0.0
    %551 = vmatmul.mubr.f32.gmra.mrb[0].mxu0 %v225
    %v552 = vpop.f32.mrb[0].mxu0
    %v553 = vadd.f32 %v116, %v552
    %v554 = vpop.f32.mrb[0].mxu0
    %555 = vmatprep.mubr.f32.mxu0 0.0
    %556 = vmatmul.mubr.f32.gmra.mrb[0].mxu0 %v228
    %v557 = vpop.f32.mrb[0].mxu0
    %v558 = vadd.f32 %v116, %v557
    %v559 = vpop.f32.mrb[0].mxu0
    %560 = vmatprep.mubr.f32.mxu0 0.0
    %561 = vmatmul.mubr.f32.gmra.mrb[0].mxu0 %v231
    %v562 = vpop.f32.mrb[0].mxu0
    %v563 = vadd.f32 %v116, %v562
    %v564 = vpop.f32.mrb[0].mxu0
    %565 = vmatprep.mubr.f32.mxu0 0.0
    %566 = vmatmul.mubr.f32.gmra.mrb[0].mxu0 %v234
    %v567 = vpop.f32.mrb[0].mxu0
    %v568 = vadd.f32 %v116, %v567
    %v569 = vpop.f32.mrb[0].mxu0
    %570 = vmatprep.mubr.f32.mxu0 0.0
    %571 = vmatmul.mubr.f32.gmra.mrb[0].mxu0 %v237
    %v572 = vpop.f32.mrb[0].mxu0
    %v573 = vadd.f32 %v116, %v572
    %v574 = vpop.f32.mrb[0].mxu0
    %575 = vmatprep.mubr.f32.mxu0 0.0
    %576 = vmatmul.mubr.f32.gmra.mrb[0].mxu0 %v240
    %v577 = vpop.f32.mrb[0].mxu0
    %v578 = vadd.f32 %v116, %v577
    %v579 = vpop.f32.mrb[0].mxu0
    %580 = vmatprep.mubr.f32.mxu0 0.0
    %581 = vmatmul.mubr.f32.gmra.mrb[0].mxu0 %v243
    %v582 = vpop.f32.mrb[0].mxu0
    %v583 = vadd.f32 %v116, %v582
    %v584 = vpop.f32.mrb[0].mxu0
    %585 = vmatprep.mubr.f32.mxu0 0.0
    %586 = vmatmul.mubr.f32.gmra.mrb[0].mxu0 %v246
    %v587 = vpop.f32.mrb[0].mxu0
    %v588 = vadd.f32 %v116, %v587
    %v589 = vpop.f32.mrb[0].mxu0
    %590 = vmatprep.mubr.f32.mxu0 0.0
    %591 = vmatmul.mubr.f32.gmra.mrb[0].mxu0 %v249
    %v592 = vpop.f32.mrb[0].mxu0
    %v593 = vadd.f32 %v116, %v592
    %v594 = vpop.f32.mrb[0].mxu0
    %595 = vmatprep.mubr.f32.mxu0 0.0
    %596 = vmatmul.mubr.f32.gmra.mrb[0].mxu0 %v252
    %v597 = vpop.f32.mrb[0].mxu0
    %v598 = vadd.f32 %v116, %v597
    %v599 = vpop.f32.mrb[0].mxu0
    %600 = vmatprep.mubr.f32.mxu0 0.0
    %601 = vmatmul.mubr.f32.gmra.mrb[0].mxu0 %v255
    %v602 = vpop.f32.mrb[0].mxu0
    %v603 = vadd.f32 %v116, %v602
    %v604 = vpop.f32.mrb[0].mxu0
    %605 = vmatprep.mubr.f32.mxu0 0.0
    %606 = vmatmul.mubr.f32.gmra.mrb[0].mxu0 %v258
    %v607 = vpop.f32.mrb[0].mxu0
    %v608 = vadd.f32 %v116, %v607
    %v609 = vpop.f32.mrb[0].mxu0
    %610 = vmatprep.mubr.f32.mxu0 0.0
    %611 = vmatmul.mubr.f32.gmra.mrb[0].mxu0 %v261
    %v612 = vpop.f32.mrb[0].mxu0
    %v613 = vadd.f32 %v116, %v612
    %v614 = vpop.f32.mrb[0].mxu0
    %615 = vmatprep.mubr.f32.mxu0 0.0
    %616 = vmatmul.mubr.f32.gmra.mrb[0].mxu0 %v264
    %v617 = vpop.f32.mrb[0].mxu0
    %v618 = vadd.f32 %v116, %v617
    %v619 = vpop.f32.mrb[0].mxu0
    %620 = vmatprep.mubr.f32.mxu0 0.0
    %621 = vmatmul.mubr.f32.gmra.mrb[0].mxu0 %v267
    %v622 = vpop.f32.mrb[0].mxu0
    %v623 = vadd.f32 %v116, %v622
    %v624 = vpop.f32.mrb[0].mxu0
    %625 = vmatprep.mubr.f32.mxu0 0.0
    %626 = vmatmul.mubr.f32.gmra.mrb[0].mxu0 %v270
    %v627 = vpop.f32.mrb[0].mxu0
    %v628 = vadd.f32 %v116, %v627
    %v629 = vpop.f32.mrb[0].mxu0
    %630 = vmatprep.mubr.f32.mxu0 0.0
    %631 = vmatmul.mubr.f32.gmra.mrb[0].mxu0 %v273
    %v632 = vpop.f32.mrb[0].mxu0
    %v633 = vadd.f32 %v116, %v632
    %v634 = vpop.f32.mrb[0].mxu0
    %635 = vmatprep.mubr.f32.mxu0 0.0
    %636 = vmatmul.mubr.f32.gmra.mrb[0].mxu0 %v276
    %v637 = vpop.f32.mrb[0].mxu0
    %v638 = vadd.f32 %v116, %v637
    %v639 = vpop.f32.mrb[0].mxu0
    %640 = vmatprep.mubr.f32.mxu0 0.0
    %641 = vmatmul.mubr.f32.gmra.mrb[0].mxu0 %v279
    %v642 = vpop.f32.mrb[0].mxu0
    %v643 = vadd.f32 %v116, %v642
    %v644 = vpop.f32.mrb[0].mxu0
    %645 = vmatprep.mubr.f32.mxu0 0.0
    %646 = vmatmul.mubr.f32.gmra.mrb[0].mxu0 %v282
    %v647 = vpop.f32.mrb[0].mxu0
    %v648 = vadd.f32 %v116, %v647
    %v649 = vpop.f32.mrb[0].mxu0
    %650 = vmatprep.mubr.f32.mxu0 0.0
    %651 = vmatmul.mubr.f32.gmra.mrb[0].mxu0 %v285
    %v652 = vpop.f32.mrb[0].mxu0
    %v653 = vadd.f32 %v116, %v652
    %v654 = vpop.f32.mrb[0].mxu0
    %655 = vmatprep.mubr.f32.mxu0 0.0
    %656 = vmatmul.mubr.f32.gmra.mrb[0].mxu0 %v288
    %v657 = vpop.f32.mrb[0].mxu0
    %v658 = vadd.f32 %v116, %v657
    %v659 = vpop.f32.mrb[0].mxu0
    %660 = vmatprep.mubr.f32.mxu0 0.0
    %661 = vmatmul.mubr.f32.gmra.mrb[0].mxu0 %v291
    %v662 = vpop.f32.mrb[0].mxu0
    %v663 = vadd.f32 %v116, %v662
    %v664 = vpop.f32.mrb[0].mxu0
    %665 = vmatprep.mubr.f32.mxu0 0.0
    %666 = vmatmul.mubr.f32.gmra.mrb[0].mxu0 %v294
    %v667 = vpop.f32.mrb[0].mxu0
    %v668 = vadd.f32 %v116, %v667
    %v669 = vpop.f32.mrb[0].mxu0
    %670 = vmatprep.mubr.f32.mxu0 0.0
    %671 = vmatmul.mubr.f32.gmra.mrb[0].mxu0 %v297
    %v672 = vpop.f32.mrb[0].mxu0
    %v673 = vadd.f32 %v116, %v672
    %v674 = vpop.f32.mrb[0].mxu0
    %675 = vmatprep.mubr.f32.mxu0 0.0
    %676 = vmatmul.mubr.f32.gmra.mrb[0].mxu0 %v300
    %v677 = vpop.f32.mrb[0].mxu0
    %v678 = vadd.f32 %v116, %v677
    %v679 = vpop.f32.mrb[0].mxu0
    %680 = vmatprep.mubr.f32.mxu0 0.0
    %681 = vmatmul.mubr.f32.gmra.mrb[0].mxu0 %v303
    %v682 = vpop.f32.mrb[0].mxu0
    %v683 = vadd.f32 %v116, %v682
    %v684 = vpop.f32.mrb[0].mxu0
    %685 = vmatprep.mubr.f32.mxu0 0.0
    %686 = vmatmul.mubr.f32.gmra.mrb[0].mxu0 %v306
    %v687 = vpop.f32.mrb[0].mxu0
    %v688 = vadd.f32 %v116, %v687
    %v689 = vpop.f32.mrb[0].mxu0
    %690 = vmatprep.mubr.f32.mxu0 0.0
    %691 = vmatmul.mubr.f32.gmra.mrb[0].mxu0 %v309
    %v692 = vpop.f32.mrb[0].mxu0
    %v693 = vadd.f32 %v116, %v692
    %v694 = vpop.f32.mrb[0].mxu0
    %695 = vdwg.mxu0
    %v696 = vmax.f32 %v378, 0.0
    %v697 = vmax.f32 %v383, 0.0
    %v698 = vmax.f32 %v388, 0.0
    %v699 = vmax.f32 %v393, 0.0
    %v700 = vmax.f32 %v398, 0.0
    %v701 = vmax.f32 %v403, 0.0
    %v702 = vmax.f32 %v408, 0.0
    %v703 = vmax.f32 %v413, 0.0
    %v704 = vmax.f32 %v418, 0.0
    %v705 = vmax.f32 %v423, 0.0
    %v706 = vmax.f32 %v428, 0.0
    %v707 = vmax.f32 %v433, 0.0
    %v708 = vmax.f32 %v438, 0.0
    %v709 = vmax.f32 %v443, 0.0
    %v710 = vmax.f32 %v448, 0.0
    %v711 = vmax.f32 %v453, 0.0
    %v712 = vmax.f32 %v458, 0.0
    %v713 = vmax.f32 %v463, 0.0
    %v714 = vmax.f32 %v468, 0.0
    %v715 = vmax.f32 %v473, 0.0
    %v716 = vmax.f32 %v478, 0.0
    %v717 = vmax.f32 %v483, 0.0
    %v718 = vmax.f32 %v488, 0.0
    %v719 = vmax.f32 %v493, 0.0
    %v720 = vmax.f32 %v498, 0.0
    %v721 = vmax.f32 %v503, 0.0
    %v722 = vmax.f32 %v508, 0.0
    %v723 = vmax.f32 %v513, 0.0
    %v724 = vmax.f32 %v518, 0.0
    %v725 = vmax.f32 %v523, 0.0
    %v726 = vmax.f32 %v528, 0.0
    %v727 = vmax.f32 %v533, 0.0
    %v728 = vmax.f32 %v538, 0.0
    %v729 = vmax.f32 %v543, 0.0
    %v730 = vmax.f32 %v548, 0.0
    %v731 = vmax.f32 %v553, 0.0
    %v732 = vmax.f32 %v558, 0.0
    %v733 = vmax.f32 %v563, 0.0
    %v734 = vmax.f32 %v568, 0.0
    %v735 = vmax.f32 %v573, 0.0
    %v736 = vmax.f32 %v578, 0.0
    %v737 = vmax.f32 %v583, 0.0
    %v738 = vmax.f32 %v588, 0.0
    %v739 = vmax.f32 %v593, 0.0
    %v740 = vmax.f32 %v598, 0.0
    %v741 = vmax.f32 %v603, 0.0
    %v742 = vmax.f32 %v608, 0.0
    %v743 = vmax.f32 %v613, 0.0
    %v744 = vmax.f32 %v618, 0.0
    %v745 = vmax.f32 %v623, 0.0
    %v746 = vmax.f32 %v628, 0.0
    %v747 = vmax.f32 %v633, 0.0
    %v748 = vmax.f32 %v638, 0.0
    %v749 = vmax.f32 %v643, 0.0
    %v750 = vmax.f32 %v648, 0.0
    %v751 = vmax.f32 %v653, 0.0
    %v752 = vmax.f32 %v658, 0.0
    %v753 = vmax.f32 %v663, 0.0
    %v754 = vmax.f32 %v668, 0.0
    %v755 = vmax.f32 %v673, 0.0
    %v756 = vmax.f32 %v678, 0.0
    %v757 = vmax.f32 %v683, 0.0
    %v758 = vmax.f32 %v688, 0.0
    %v759 = vmax.f32 %v693, 0.0
    %760 = vst [vmem:[#allocation2] sm:$0xff] %v696
    %761 = vst [vmem:[#allocation2 + $0x8] sm:$0xff] %v697
    %762 = vst [vmem:[#allocation2 + $0x10] sm:$0xff] %v698
    %763 = vst [vmem:[#allocation2 + $0x18] sm:$0xff] %v699
    %764 = vst [vmem:[#allocation2 + $0x20] sm:$0xff] %v700
    %765 = vst [vmem:[#allocation2 + $0x28] sm:$0xff] %v701
    %766 = vst [vmem:[#allocation2 + $0x30] sm:$0xff] %v702
    %767 = vst [vmem:[#allocation2 + $0x38] sm:$0xff] %v703
    %768 = vst [vmem:[#allocation2 + $0x40] sm:$0xff] %v704
    %769 = vst [vmem:[#allocation2 + $0x48] sm:$0xff] %v705
    %770 = vst [vmem:[#allocation2 + $0x50] sm:$0xff] %v706
    %771 = vst [vmem:[#allocation2 + $0x58] sm:$0xff] %v707
    %772 = vst [vmem:[#allocation2 + $0x60] sm:$0xff] %v708
    %773 = vst [vmem:[#allocation2 + $0x68] sm:$0xff] %v709
    %774 = vst [vmem:[#allocation2 + $0x70] sm:$0xff] %v710
    %775 = vst [vmem:[#allocation2 + $0x78] sm:$0xff] %v711
    %776 = vst [vmem:[#allocation2 + $0x80] sm:$0xff] %v712
    %777 = vst [vmem:[#allocation2 + $0x88] sm:$0xff] %v713
    %778 = vst [vmem:[#allocation2 + $0x90] sm:$0xff] %v714
    %779 = vst [vmem:[#allocation2 + $0x98] sm:$0xff] %v715
    %780 = vst [vmem:[#allocation2 + $0xa0] sm:$0xff] %v716
    %781 = vst [vmem:[#allocation2 + $0xa8] sm:$0xff] %v717
    %782 = vst [vmem:[#allocation2 + $0xb0] sm:$0xff] %v718
    %783 = vst [vmem:[#allocation2 + $0xb8] sm:$0xff] %v719
    %784 = vst [vmem:[#allocation2 + $0xc0] sm:$0xff] %v720
    %785 = vst [vmem:[#allocation2 + $0xc8] sm:$0xff] %v721
    %786 = vst [vmem:[#allocation2 + $0xd0] sm:$0xff] %v722
    %787 = vst [vmem:[#allocation2 + $0xd8] sm:$0xff] %v723
    %788 = vst [vmem:[#allocation2 + $0xe0] sm:$0xff] %v724
    %789 = vst [vmem:[#allocation2 + $0xe8] sm:$0xff] %v725
    %790 = vst [vmem:[#allocation2 + $0xf0] sm:$0xff] %v726
    %791 = vst [vmem:[#allocation2 + $0xf8] sm:$0xff] %v727
    %792 = vst [vmem:[#allocation2 + $0x100] sm:$0xff] %v728
    %793 = vst [vmem:[#allocation2 + $0x108] sm:$0xff] %v729
    %794 = vst [vmem:[#allocation2 + $0x110] sm:$0xff] %v730
    %795 = vst [vmem:[#allocation2 + $0x118] sm:$0xff] %v731
    %796 = vst [vmem:[#allocation2 + $0x120] sm:$0xff] %v732
    %797 = vst [vmem:[#allocation2 + $0x128] sm:$0xff] %v733
    %798 = vst [vmem:[#allocation2 + $0x130] sm:$0xff] %v734
    %799 = vst [vmem:[#allocation2 + $0x138] sm:$0xff] %v735
    %800 = vst [vmem:[#allocation2 + $0x140] sm:$0xff] %v736
    %801 = vst [vmem:[#allocation2 + $0x148] sm:$0xff] %v737
    %802 = vst [vmem:[#allocation2 + $0x150] sm:$0xff] %v738
    %803 = vst [vmem:[#allocation2 + $0x158] sm:$0xff] %v739
    %804 = vst [vmem:[#allocation2 + $0x160] sm:$0xff] %v740
    %805 = vst [vmem:[#allocation2 + $0x168] sm:$0xff] %v741
    %806 = vst [vmem:[#allocation2 + $0x170] sm:$0xff] %v742
    %807 = vst [vmem:[#allocation2 + $0x178] sm:$0xff] %v743
    %808 = vst [vmem:[#allocation2 + $0x180] sm:$0xff] %v744
    %809 = vst [vmem:[#allocation2 + $0x188] sm:$0xff] %v745
    %810 = vst [vmem:[#allocation2 + $0x190] sm:$0xff] %v746
    %811 = vst [vmem:[#allocation2 + $0x198] sm:$0xff] %v747
    %812 = vst [vmem:[#allocation2 + $0x1a0] sm:$0xff] %v748
    %813 = vst [vmem:[#allocation2 + $0x1a8] sm:$0xff] %v749
    %814 = vst [vmem:[#allocation2 + $0x1b0] sm:$0xff] %v750
    %815 = vst [vmem:[#allocation2 + $0x1b8] sm:$0xff] %v751
    %816 = vst [vmem:[#allocation2 + $0x1c0] sm:$0xff] %v752
    %817 = vst [vmem:[#allocation2 + $0x1c8] sm:$0xff] %v753
    %818 = vst [vmem:[#allocation2 + $0x1d0] sm:$0xff] %v754
    %819 = vst [vmem:[#allocation2 + $0x1d8] sm:$0xff] %v755
    %820 = vst [vmem:[#allocation2 + $0x1e0] sm:$0xff] %v756
    %821 = vst [vmem:[#allocation2 + $0x1e8] sm:$0xff] %v757
    %822 = vst [vmem:[#allocation2 + $0x1f0] sm:$0xff] %v758
    %823 = vst [vmem:[#allocation2 + $0x1f8] sm:$0xff] %v759
    %v824 = vld [vmem:[#allocation2] ss:$2 sm:$0xff]
    %s825 = scalar_lea.vmem [#allocation2], 32
    %v826 = vld [vmem:[%s825] ss:$2 sm:$0xff]
    %s827 = scalar_lea.vmem [#allocation2], 64
    %v828 = vld [vmem:[%s827] ss:$2 sm:$0xff]
    %s829 = scalar_lea.vmem [#allocation2], 96
    %v830 = vld [vmem:[%s829] ss:$2 sm:$0xff]
    %s831 = scalar_lea.vmem [#allocation2], 128
    %v832 = vld [vmem:[%s831] ss:$2 sm:$0xff]
    %s833 = scalar_lea.vmem [#allocation2], 160
    %v834 = vld [vmem:[%s833] ss:$2 sm:$0xff]
    %s835 = scalar_lea.vmem [#allocation2], 192
    %v836 = vld [vmem:[%s835] ss:$2 sm:$0xff]
    %s837 = scalar_lea.vmem [#allocation2], 224
    %v838 = vld [vmem:[%s837] ss:$2 sm:$0xff]
    %s839 = scalar_lea.vmem [#allocation2], 256
    %v840 = vld [vmem:[%s839] ss:$2 sm:$0xff]
    %s841 = scalar_lea.vmem [#allocation2], 288
    %v842 = vld [vmem:[%s841] ss:$2 sm:$0xff]
    %s843 = scalar_lea.vmem [#allocation2], 320
    %v844 = vld [vmem:[%s843] ss:$2 sm:$0xff]
    %s845 = scalar_lea.vmem [#allocation2], 352
    %v846 = vld [vmem:[%s845] ss:$2 sm:$0xff]
    %s847 = scalar_lea.vmem [#allocation2], 384
    %v848 = vld [vmem:[%s847] ss:$2 sm:$0xff]
    %s849 = scalar_lea.vmem [#allocation2], 416
    %v850 = vld [vmem:[%s849] ss:$2 sm:$0xff]
    %s851 = scalar_lea.vmem [#allocation2], 448
    %v852 = vld [vmem:[%s851] ss:$2 sm:$0xff]
    %s853 = scalar_lea.vmem [#allocation2], 480
    %v854 = vld [vmem:[%s853] ss:$2 sm:$0xff]
    %s855 = scalar_lea.vmem [#allocation2], 1
    %v856 = vld [vmem:[%s855] ss:$2 sm:$0xff]
    %s857 = scalar_lea.vmem [#allocation2], 33
    %v858 = vld [vmem:[%s857] ss:$2 sm:$0xff]
    %s859 = scalar_lea.vmem [#allocation2], 65
    %v860 = vld [vmem:[%s859] ss:$2 sm:$0xff]
    %s861 = scalar_lea.vmem [#allocation2], 97
    %v862 = vld [vmem:[%s861] ss:$2 sm:$0xff]
    %s863 = scalar_lea.vmem [#allocation2], 129
    %v864 = vld [vmem:[%s863] ss:$2 sm:$0xff]
    %s865 = scalar_lea.vmem [#allocation2], 161
    %v866 = vld [vmem:[%s865] ss:$2 sm:$0xff]
    %s867 = scalar_lea.vmem [#allocation2], 193
    %v868 = vld [vmem:[%s867] ss:$2 sm:$0xff]
    %s869 = scalar_lea.vmem [#allocation2], 225
    %v870 = vld [vmem:[%s869] ss:$2 sm:$0xff]
    %s871 = scalar_lea.vmem [#allocation2], 257
    %v872 = vld [vmem:[%s871] ss:$2 sm:$0xff]
    %s873 = scalar_lea.vmem [#allocation2], 289
    %v874 = vld [vmem:[%s873] ss:$2 sm:$0xff]
    %s875 = scalar_lea.vmem [#allocation2], 321
    %v876 = vld [vmem:[%s875] ss:$2 sm:$0xff]
    %s877 = scalar_lea.vmem [#allocation2], 353
    %v878 = vld [vmem:[%s877] ss:$2 sm:$0xff]
    %s879 = scalar_lea.vmem [#allocation2], 385
    %v880 = vld [vmem:[%s879] ss:$2 sm:$0xff]
    %s881 = scalar_lea.vmem [#allocation2], 417
    %v882 = vld [vmem:[%s881] ss:$2 sm:$0xff]
    %s883 = scalar_lea.vmem [#allocation2], 449
    %v884 = vld [vmem:[%s883] ss:$2 sm:$0xff]
    %s885 = scalar_lea.vmem [#allocation2], 481
    %v886 = vld [vmem:[%s885] ss:$2 sm:$0xff]
    %s887 = scalar_lea.vmem [#allocation2], 16
    %v888 = vld [vmem:[%s887] ss:$2 sm:$0xff]
    %s889 = scalar_lea.vmem [#allocation2], 48
    %v890 = vld [vmem:[%s889] ss:$2 sm:$0xff]
    %s891 = scalar_lea.vmem [#allocation2], 80
    %v892 = vld [vmem:[%s891] ss:$2 sm:$0xff]
    %s893 = scalar_lea.vmem [#allocation2], 112
    %v894 = vld [vmem:[%s893] ss:$2 sm:$0xff]
    %s895 = scalar_lea.vmem [#allocation2], 144
    %v896 = vld [vmem:[%s895] ss:$2 sm:$0xff]
    %s897 = scalar_lea.vmem [#allocation2], 176
    %v898 = vld [vmem:[%s897] ss:$2 sm:$0xff]
    %s899 = scalar_lea.vmem [#allocation2], 208
    %v900 = vld [vmem:[%s899] ss:$2 sm:$0xff]
    %s901 = scalar_lea.vmem [#allocation2], 240
    %v902 = vld [vmem:[%s901] ss:$2 sm:$0xff]
    %s903 = scalar_lea.vmem [#allocation2], 272
    %v904 = vld [vmem:[%s903] ss:$2 sm:$0xff]
    %s905 = scalar_lea.vmem [#allocation2], 304
    %v906 = vld [vmem:[%s905] ss:$2 sm:$0xff]
    %s907 = scalar_lea.vmem [#allocation2], 336
    %v908 = vld [vmem:[%s907] ss:$2 sm:$0xff]
    %s909 = scalar_lea.vmem [#allocation2], 368
    %v910 = vld [vmem:[%s909] ss:$2 sm:$0xff]
    %s911 = scalar_lea.vmem [#allocation2], 400
    %v912 = vld [vmem:[%s911] ss:$2 sm:$0xff]
    %s913 = scalar_lea.vmem [#allocation2], 432
    %v914 = vld [vmem:[%s913] ss:$2 sm:$0xff]
    %s915 = scalar_lea.vmem [#allocation2], 464
    %v916 = vld [vmem:[%s915] ss:$2 sm:$0xff]
    %s917 = scalar_lea.vmem [#allocation2], 496
    %v918 = vld [vmem:[%s917] ss:$2 sm:$0xff]
    %s919 = scalar_lea.vmem [#allocation2], 17
    %v920 = vld [vmem:[%s919] ss:$2 sm:$0xff]
    %s921 = scalar_lea.vmem [#allocation2], 49
    %v922 = vld [vmem:[%s921] ss:$2 sm:$0xff]
    %s923 = scalar_lea.vmem [#allocation2], 81
    %v924 = vld [vmem:[%s923] ss:$2 sm:$0xff]
    %s925 = scalar_lea.vmem [#allocation2], 113
    %v926 = vld [vmem:[%s925] ss:$2 sm:$0xff]
    %s927 = scalar_lea.vmem [#allocation2], 145
    %v928 = vld [vmem:[%s927] ss:$2 sm:$0xff]
    %s929 = scalar_lea.vmem [#allocation2], 177
    %v930 = vld [vmem:[%s929] ss:$2 sm:$0xff]
    %s931 = scalar_lea.vmem [#allocation2], 209
    %v932 = vld [vmem:[%s931] ss:$2 sm:$0xff]
    %s933 = scalar_lea.vmem [#allocation2], 241
    %v934 = vld [vmem:[%s933] ss:$2 sm:$0xff]
    %s935 = scalar_lea.vmem [#allocation2], 273
    %v936 = vld [vmem:[%s935] ss:$2 sm:$0xff]
    %s937 = scalar_lea.vmem [#allocation2], 305
    %v938 = vld [vmem:[%s937] ss:$2 sm:$0xff]
    %s939 = scalar_lea.vmem [#allocation2], 337
    %v940 = vld [vmem:[%s939] ss:$2 sm:$0xff]
    %s941 = scalar_lea.vmem [#allocation2], 369
    %v942 = vld [vmem:[%s941] ss:$2 sm:$0xff]
    %s943 = scalar_lea.vmem [#allocation2], 401
    %v944 = vld [vmem:[%s943] ss:$2 sm:$0xff]
    %s945 = scalar_lea.vmem [#allocation2], 433
    %v946 = vld [vmem:[%s945] ss:$2 sm:$0xff]
    %s947 = scalar_lea.vmem [#allocation2], 465
    %v948 = vld [vmem:[%s947] ss:$2 sm:$0xff]
    %s949 = scalar_lea.vmem [#allocation2], 497
    %v950 = vld [vmem:[%s949] ss:$2 sm:$0xff]
    %v951 = vmax.f32 %v824, %v856
    %v952 = vmax.f32 %v826, %v858
    %v953 = vmax.f32 %v828, %v860
    %v954 = vmax.f32 %v830, %v862
    %v955 = vmax.f32 %v832, %v864
    %v956 = vmax.f32 %v834, %v866
    %v957 = vmax.f32 %v836, %v868
    %v958 = vmax.f32 %v838, %v870
    %v959 = vmax.f32 %v840, %v872
    %v960 = vmax.f32 %v842, %v874
    %v961 = vmax.f32 %v844, %v876
    %v962 = vmax.f32 %v846, %v878
    %v963 = vmax.f32 %v848, %v880
    %v964 = vmax.f32 %v850, %v882
    %v965 = vmax.f32 %v852, %v884
    %v966 = vmax.f32 %v854, %v886
    %v967 = vmax.f32 %v888, %v920
    %v968 = vmax.f32 %v890, %v922
    %v969 = vmax.f32 %v892, %v924
    %v970 = vmax.f32 %v894, %v926
    %v971 = vmax.f32 %v896, %v928
    %v972 = vmax.f32 %v898, %v930
    %v973 = vmax.f32 %v900, %v932
    %v974 = vmax.f32 %v902, %v934
    %v975 = vmax.f32 %v904, %v936
    %v976 = vmax.f32 %v906, %v938
    %v977 = vmax.f32 %v908, %v940
    %v978 = vmax.f32 %v910, %v942
    %v979 = vmax.f32 %v912, %v944
    %v980 = vmax.f32 %v914, %v946
    %v981 = vmax.f32 %v916, %v948
    %v982 = vmax.f32 %v918, %v950
    %v983 = vmax.f32 %v951, %v967
    %v984 = vmax.f32 %v952, %v968
    %v985 = vmax.f32 %v953, %v969
    %v986 = vmax.f32 %v954, %v970
    %v987 = vmax.f32 %v955, %v971
    %v988 = vmax.f32 %v956, %v972
    %v989 = vmax.f32 %v957, %v973
    %v990 = vmax.f32 %v958, %v974
    %v991 = vmax.f32 %v959, %v975
    %v992 = vmax.f32 %v960, %v976
    %v993 = vmax.f32 %v961, %v977
    %v994 = vmax.f32 %v962, %v978
    %v995 = vmax.f32 %v963, %v979
    %v996 = vmax.f32 %v964, %v980
    %v997 = vmax.f32 %v965, %v981
    %v998 = vmax.f32 %v966, %v982
    %vm999 = vcmask 261120
    %1000 = vst.msk [vmem:[#allocation3] sm:$0xff] %vm999, 0.0
    %1001 = vst.msk [vmem:[#allocation3 + $0x8] sm:$0xff] %vm999, 0.0
    %1002 = vst.msk [vmem:[#allocation3 + $0x90] sm:$0xff] %vm999, 0.0
    %1003 = vst.msk [vmem:[#allocation3 + $0x98] sm:$0xff] %vm999, 0.0
    %1004 = vst.msk [vmem:[#allocation3 + $0x10] sm:$0xff] %vm999, %v983
    %1005 = vst.msk [vmem:[#allocation3 + $0x18] sm:$0xff] %vm999, %v984
    %1006 = vst.msk [vmem:[#allocation3 + $0x20] sm:$0xff] %vm999, %v985
    %1007 = vst.msk [vmem:[#allocation3 + $0x28] sm:$0xff] %vm999, %v986
    %1008 = vst.msk [vmem:[#allocation3 + $0x30] sm:$0xff] %vm999, %v987
    %1009 = vst.msk [vmem:[#allocation3 + $0x38] sm:$0xff] %vm999, %v988
    %1010 = vst.msk [vmem:[#allocation3 + $0x40] sm:$0xff] %vm999, %v989
    %1011 = vst.msk [vmem:[#allocation3 + $0x48] sm:$0xff] %vm999, %v990
    %1012 = vst.msk [vmem:[#allocation3 + $0x50] sm:$0xff] %vm999, %v991
    %1013 = vst.msk [vmem:[#allocation3 + $0x58] sm:$0xff] %vm999, %v992
    %1014 = vst.msk [vmem:[#allocation3 + $0x60] sm:$0xff] %vm999, %v993
    %1015 = vst.msk [vmem:[#allocation3 + $0x68] sm:$0xff] %vm999, %v994
    %1016 = vst.msk [vmem:[#allocation3 + $0x70] sm:$0xff] %vm999, %v995
    %1017 = vst.msk [vmem:[#allocation3 + $0x78] sm:$0xff] %vm999, %v996
    %1018 = vst.msk [vmem:[#allocation3 + $0x80] sm:$0xff] %vm999, %v997
    %1019 = vst.msk [vmem:[#allocation3 + $0x88] sm:$0xff] %vm999, %v998
    %v1020 = vld [vmem:[#allocation3 + $0x7] sm:$0xff]
    %v1021 = vld [vmem:[#allocation3 + $0xf] sm:$0xff]
    %v1022 = vld [vmem:[#allocation3 + $0x17] sm:$0xff]
    %v1023 = vld [vmem:[#allocation3 + $0x1f] sm:$0xff]
    %v1024 = vld [vmem:[#allocation3 + $0x27] sm:$0xff]
    %v1025 = vld [vmem:[#allocation3 + $0x2f] sm:$0xff]
    %v1026 = vld [vmem:[#allocation3 + $0x37] sm:$0xff]
    %v1027 = vld [vmem:[#allocation3 + $0x3f] sm:$0xff]
    %v1028 = vld [vmem:[#allocation3 + $0x47] sm:$0xff]
    %v1029 = vld [vmem:[#allocation3 + $0x4f] sm:$0xff]
    %v1030 = vld [vmem:[#allocation3 + $0x57] sm:$0xff]
    %v1031 = vld [vmem:[#allocation3 + $0x5f] sm:$0xff]
    %v1032 = vld [vmem:[#allocation3 + $0x67] sm:$0xff]
    %v1033 = vld [vmem:[#allocation3 + $0x6f] sm:$0xff]
    %v1034 = vld [vmem:[#allocation3 + $0x77] sm:$0xff]
    %v1035 = vld [vmem:[#allocation3 + $0x7f] sm:$0xff]
    %v1036 = vld [vmem:[%s5] sm:$0xff]
    %v1037 = vld [vmem:[%s5 + $0x8] sm:$0xff]
    %v1038 = vld [vmem:[%s5 + $0x10] sm:$0xff]
    %v1039 = vld [vmem:[%s5 + $0x18] sm:$0xff]
    %v1040 = vld [vmem:[%s5 + $0x20] sm:$0xff]
    %v1041 = vld [vmem:[%s5 + $0x28] sm:$0xff]
    %v1042 = vld [vmem:[%s5 + $0x30] sm:$0xff]
    %v1043 = vld [vmem:[%s5 + $0x38] sm:$0xff]
    %v1044 = vld [vmem:[%s5 + $0x40] sm:$0xff]
    %v1045 = vld [vmem:[%s5 + $0x48] sm:$0xff]
    %v1046 = vld [vmem:[%s5 + $0x50] sm:$0xff]
    %v1047 = vld [vmem:[%s5 + $0x58] sm:$0xff]
    %v1048 = vld [vmem:[%s5 + $0x60] sm:$0xff]
    %v1049 = vld [vmem:[%s5 + $0x68] sm:$0xff]
    %v1050 = vld [vmem:[%s5 + $0x70] sm:$0xff]
    %v1051 = vld [vmem:[%s5 + $0x78] sm:$0xff]
    %1053 = vset.pattern.permute.xlu0 0
    %1054 = vperm.xlu0 %1053, %v1036
    %v1055 = vpop.permute.xlu0 %1054
    %1058 = vset.pattern.permute.xlu0 0
    %1059 = vperm.xlu0 %1058, %v1037
    %v1060 = vpop.permute.xlu0 %1059
    %1063 = vset.pattern.permute.xlu0 0
    %1064 = vperm.xlu0 %1063, %v1038
    %v1065 = vpop.permute.xlu0 %1064
    %1068 = vset.pattern.permute.xlu0 0
    %1069 = vperm.xlu0 %1068, %v1039
    %v1070 = vpop.permute.xlu0 %1069
    %1073 = vset.pattern.permute.xlu0 0
    %1074 = vperm.xlu0 %1073, %v1040
    %v1075 = vpop.permute.xlu0 %1074
    %1078 = vset.pattern.permute.xlu0 0
    %1079 = vperm.xlu0 %1078, %v1041
    %v1080 = vpop.permute.xlu0 %1079
    %1083 = vset.pattern.permute.xlu0 0
    %1084 = vperm.xlu0 %1083, %v1042
    %v1085 = vpop.permute.xlu0 %1084
    %1088 = vset.pattern.permute.xlu0 0
    %1089 = vperm.xlu0 %1088, %v1043
    %v1090 = vpop.permute.xlu0 %1089
    %1093 = vset.pattern.permute.xlu0 0
    %1094 = vperm.xlu0 %1093, %v1044
    %v1095 = vpop.permute.xlu0 %1094
    %1098 = vset.pattern.permute.xlu0 0
    %1099 = vperm.xlu0 %1098, %v1045
    %v1100 = vpop.permute.xlu0 %1099
    %1103 = vset.pattern.permute.xlu0 0
    %1104 = vperm.xlu0 %1103, %v1046
    %v1105 = vpop.permute.xlu0 %1104
    %1108 = vset.pattern.permute.xlu0 0
    %1109 = vperm.xlu0 %1108, %v1047
    %v1110 = vpop.permute.xlu0 %1109
    %1113 = vset.pattern.permute.xlu0 0
    %1114 = vperm.xlu0 %1113, %v1048
    %v1115 = vpop.permute.xlu0 %1114
    %1118 = vset.pattern.permute.xlu0 0
    %1119 = vperm.xlu0 %1118, %v1049
    %v1120 = vpop.permute.xlu0 %1119
    %1123 = vset.pattern.permute.xlu0 0
    %1124 = vperm.xlu0 %1123, %v1050
    %v1125 = vpop.permute.xlu0 %1124
    %1128 = vset.pattern.permute.xlu0 0
    %1129 = vperm.xlu0 %1128, %v1051
    %v1130 = vpop.permute.xlu0 %1129
    %v1132 = vmul.f32 %v1020, %v1055
    %v1133 = vmul.f32 %v1021, %v1060
    %v1134 = vmul.f32 %v1022, %v1065
    %v1135 = vmul.f32 %v1023, %v1070
    %v1136 = vmul.f32 %v1024, %v1075
    %v1137 = vmul.f32 %v1025, %v1080
    %v1138 = vmul.f32 %v1026, %v1085
    %v1139 = vmul.f32 %v1027, %v1090
    %v1140 = vmul.f32 %v1028, %v1095
    %v1141 = vmul.f32 %v1029, %v1100
    %v1142 = vmul.f32 %v1030, %v1105
    %v1143 = vmul.f32 %v1031, %v1110
    %v1144 = vmul.f32 %v1032, %v1115
    %v1145 = vmul.f32 %v1033, %v1120
    %v1146 = vmul.f32 %v1034, %v1125
    %v1147 = vmul.f32 %v1035, %v1130
    %v1148 = vld [vmem:[%s3] sm:$0xff]
    %v1149 = vld [vmem:[%s3 + $0x8] sm:$0xff]
    %v1150 = vld [vmem:[%s3 + $0x10] sm:$0xff]
    %v1151 = vld [vmem:[%s3 + $0x18] sm:$0xff]
    %v1152 = vld [vmem:[#allocation3 + $0x8] sm:$0xff]
    %v1153 = vld [vmem:[#allocation3 + $0x10] sm:$0xff]
    %v1154 = vld [vmem:[#allocation3 + $0x18] sm:$0xff]
    %v1155 = vld [vmem:[#allocation3 + $0x20] sm:$0xff]
    %v1156 = vld [vmem:[#allocation3 + $0x28] sm:$0xff]
    %v1157 = vld [vmem:[#allocation3 + $0x30] sm:$0xff]
    %v1158 = vld [vmem:[#allocation3 + $0x38] sm:$0xff]
    %v1159 = vld [vmem:[#allocation3 + $0x40] sm:$0xff]
    %v1160 = vld [vmem:[#allocation3 + $0x48] sm:$0xff]
    %v1161 = vld [vmem:[#allocation3 + $0x50] sm:$0xff]
    %v1162 = vld [vmem:[#allocation3 + $0x58] sm:$0xff]
    %v1163 = vld [vmem:[#allocation3 + $0x60] sm:$0xff]
    %v1164 = vld [vmem:[#allocation3 + $0x68] sm:$0xff]
    %v1165 = vld [vmem:[#allocation3 + $0x70] sm:$0xff]
    %v1166 = vld [vmem:[#allocation3 + $0x78] sm:$0xff]
    %v1167 = vld [vmem:[#allocation3 + $0x80] sm:$0xff]
    %s1168 = scalar_lea.vmem %s5, 128
    %v1169 = vld [vmem:[%s1168] sm:$0xff]
    %v1170 = vld [vmem:[%s1168 + $0x8] sm:$0xff]
    %v1171 = vld [vmem:[%s1168 + $0x10] sm:$0xff]
    %v1172 = vld [vmem:[%s1168 + $0x18] sm:$0xff]
    %v1173 = vld [vmem:[%s1168 + $0x20] sm:$0xff]
    %v1174 = vld [vmem:[%s1168 + $0x28] sm:$0xff]
    %v1175 = vld [vmem:[%s1168 + $0x30] sm:$0xff]
    %v1176 = vld [vmem:[%s1168 + $0x38] sm:$0xff]
    %v1177 = vld [vmem:[%s1168 + $0x40] sm:$0xff]
    %v1178 = vld [vmem:[%s1168 + $0x48] sm:$0xff]
    %v1179 = vld [vmem:[%s1168 + $0x50] sm:$0xff]
    %v1180 = vld [vmem:[%s1168 + $0x58] sm:$0xff]
    %v1181 = vld [vmem:[%s1168 + $0x60] sm:$0xff]
    %v1182 = vld [vmem:[%s1168 + $0x68] sm:$0xff]
    %v1183 = vld [vmem:[%s1168 + $0x70] sm:$0xff]
    %v1184 = vld [vmem:[%s1168 + $0x78] sm:$0xff]
    %1186 = vset.pattern.permute.xlu0 0
    %1187 = vperm.xlu0 %1186, %v1169
    %v1188 = vpop.permute.xlu0 %1187
    %1191 = vset.pattern.permute.xlu0 0
    %1192 = vperm.xlu0 %1191, %v1170
    %v1193 = vpop.permute.xlu0 %1192
    %1196 = vset.pattern.permute.xlu0 0
    %1197 = vperm.xlu0 %1196, %v1171
    %v1198 = vpop.permute.xlu0 %1197
    %1201 = vset.pattern.permute.xlu0 0
    %1202 = vperm.xlu0 %1201, %v1172
    %v1203 = vpop.permute.xlu0 %1202
    %1206 = vset.pattern.permute.xlu0 0
    %1207 = vperm.xlu0 %1206, %v1173
    %v1208 = vpop.permute.xlu0 %1207
    %1211 = vset.pattern.permute.xlu0 0
    %1212 = vperm.xlu0 %1211, %v1174
    %v1213 = vpop.permute.xlu0 %1212
    %1216 = vset.pattern.permute.xlu0 0
    %1217 = vperm.xlu0 %1216, %v1175
    %v1218 = vpop.permute.xlu0 %1217
    %1221 = vset.pattern.permute.xlu0 0
    %1222 = vperm.xlu0 %1221, %v1176
    %v1223 = vpop.permute.xlu0 %1222
    %1226 = vset.pattern.permute.xlu0 0
    %1227 = vperm.xlu0 %1226, %v1177
    %v1228 = vpop.permute.xlu0 %1227
    %1231 = vset.pattern.permute.xlu0 0
    %1232 = vperm.xlu0 %1231, %v1178
    %v1233 = vpop.permute.xlu0 %1232
    %1236 = vset.pattern.permute.xlu0 0
    %1237 = vperm.xlu0 %1236, %v1179
    %v1238 = vpop.permute.xlu0 %1237
    %1241 = vset.pattern.permute.xlu0 0
    %1242 = vperm.xlu0 %1241, %v1180
    %v1243 = vpop.permute.xlu0 %1242
    %1246 = vset.pattern.permute.xlu0 0
    %1247 = vperm.xlu0 %1246, %v1181
    %v1248 = vpop.permute.xlu0 %1247
    %1251 = vset.pattern.permute.xlu0 0
    %1252 = vperm.xlu0 %1251, %v1182
    %v1253 = vpop.permute.xlu0 %1252
    %1256 = vset.pattern.permute.xlu0 0
    %1257 = vperm.xlu0 %1256, %v1183
    %v1258 = vpop.permute.xlu0 %1257
    %1261 = vset.pattern.permute.xlu0 0
    %1262 = vperm.xlu0 %1261, %v1184
    %v1263 = vpop.permute.xlu0 %1262
    %v1265 = vmul.f32 %v1152, %v1188
    %v1266 = vmul.f32 %v1153, %v1193
    %v1267 = vmul.f32 %v1154, %v1198
    %v1268 = vmul.f32 %v1155, %v1203
    %v1269 = vmul.f32 %v1156, %v1208
    %v1270 = vmul.f32 %v1157, %v1213
    %v1271 = vmul.f32 %v1158, %v1218
    %v1272 = vmul.f32 %v1159, %v1223
    %v1273 = vmul.f32 %v1160, %v1228
    %v1274 = vmul.f32 %v1161, %v1233
    %v1275 = vmul.f32 %v1162, %v1238
    %v1276 = vmul.f32 %v1163, %v1243
    %v1277 = vmul.f32 %v1164, %v1248
    %v1278 = vmul.f32 %v1165, %v1253
    %v1279 = vmul.f32 %v1166, %v1258
    %v1280 = vmul.f32 %v1167, %v1263
    %s1281 = scalar_lea.vmem %s3, 32
    %v1282 = vld [vmem:[%s1281] sm:$0xff]
    %v1283 = vld [vmem:[%s1281 + $0x8] sm:$0xff]
    %v1284 = vld [vmem:[%s1281 + $0x10] sm:$0xff]
    %v1285 = vld [vmem:[%s1281 + $0x18] sm:$0xff]
    %v1287 = vsel %vm999, %v1265, 0
    %v1290 = vsel %vm999, %v1266, 0
    %v1293 = vsel %vm999, %v1267, 0
    %v1296 = vsel %vm999, %v1268, 0
    %v1299 = vsel %vm999, %v1269, 0
    %v1302 = vsel %vm999, %v1270, 0
    %v1305 = vsel %vm999, %v1271, 0
    %v1308 = vsel %vm999, %v1272, 0
    %v1311 = vsel %vm999, %v1273, 0
    %v1314 = vsel %vm999, %v1274, 0
    %v1317 = vsel %vm999, %v1275, 0
    %v1320 = vsel %vm999, %v1276, 0
    %v1323 = vsel %vm999, %v1277, 0
    %v1326 = vsel %vm999, %v1278, 0
    %v1329 = vsel %vm999, %v1279, 0
    %v1332 = vsel %vm999, %v1280, 0
    %1334 = vmatprep.subr.mxu0 0.0
    %1335 = vmatpush1.msra.mxu0 %v1282
    %1336 = vmatprep.subr.mxu0 0.0
    %1337 = vmatpush1.msra.mxu0 %v1283
    %1338 = vmatprep.subr.mxu0 0.0
    %1339 = vmatpush1.msra.mxu0 %v1284
    %1340 = vmatprep.subr.mxu0 0.0
    %1341 = vmatpush1.msra.mxu0 %v1285
    %1342 = vmatprep.subr.mxu0 0.0
    %1343 = vmatpush1.msra.mxu0 0.0
    %1344 = vmatprep.subr.mxu0 0.0
    %1345 = vmatpush1.msra.mxu0 0.0
    %1346 = vmatprep.subr.mxu0 0.0
    %1347 = vmatpush1.msra.mxu0 0.0
    %1348 = vmatprep.subr.mxu0 0.0
    %1349 = vmatpush1.msra.mxu0 0.0
    %1350 = vmatprep.subr.mxu0 0.0
    %1351 = vmatpush1.msra.mxu0 0.0
    %1352 = vmatprep.subr.mxu0 0.0
    %1353 = vmatpush1.msra.mxu0 0.0
    %1354 = vmatprep.subr.mxu0 0.0
    %1355 = vmatpush1.msra.mxu0 0.0
    %1356 = vmatprep.subr.mxu0 0.0
    %1357 = vmatpush1.msra.mxu0 0.0
    %1358 = vmatprep.subr.mxu0 0.0
    %1359 = vmatpush1.msra.mxu0 0.0
    %1360 = vmatprep.subr.mxu0 0.0
    %1361 = vmatpush1.msra.mxu0 0.0
    %1362 = vmatprep.subr.mxu0 0.0
    %1363 = vmatpush1.msra.mxu0 0.0
    %1364 = vmatprep.subr.mxu0 0.0
    %1365 = vmatpush1.msra.mxu0 0.0
    %1366 = vmatprep.subr.mxu0 0.0
    %1367 = vmatpush1.msra.mxu0 0.0
    %1368 = vmatprep.subr.mxu0 0.0
    %1369 = vmatpush1.msra.mxu0 0.0
    %1370 = vmatprep.subr.mxu0 0.0
    %1371 = vmatpush1.msra.mxu0 0.0
    %1372 = vmatprep.subr.mxu0 0.0
    %1373 = vmatpush1.msra.mxu0 0.0
    %1374 = vmatprep.subr.mxu0 0.0
    %1375 = vmatpush1.msra.mxu0 0.0
    %1376 = vmatprep.subr.mxu0 0.0
    %1377 = vmatpush1.msra.mxu0 0.0
    %1378 = vmatprep.subr.mxu0 0.0
    %1379 = vmatpush1.msra.mxu0 0.0
    %1380 = vmatprep.subr.mxu0 0.0
    %1381 = vmatpush1.msra.mxu0 0.0
    %1382 = vmatprep.subr.mxu0 0.0
    %1383 = vmatpush1.msra.mxu0 0.0
    %1384 = vmatprep.subr.mxu0 0.0
    %1385 = vmatpush1.msra.mxu0 0.0
    %1386 = vmatprep.subr.mxu0 0.0
    %1387 = vmatpush1.msra.mxu0 0.0
    %1388 = vmatprep.subr.mxu0 0.0
    %1389 = vmatpush1.msra.mxu0 0.0
    %1390 = vmatprep.subr.mxu0 0.0
    %1391 = vmatpush1.msra.mxu0 0.0
    %1392 = vmatprep.subr.mxu0 0.0
    %1393 = vmatpush1.msra.mxu0 0.0
    %1394 = vmatprep.subr.mxu0 0.0
    %1395 = vmatpush1.msra.mxu0 0.0
    %1396 = vmatprep.subr.mxu0 0.0
    %1397 = vmatpush1.msra.mxu0 0.0
    %1398 = vmatprep.mubr.f32.mxu0 0.0
    %1399 = vmatmul.mubr.f32.gmra.mrb[0].mxu0 %v1287
    %v1400 = vpop.f32.mrb[0].mxu0
    %v1401 = vadd.f32 0.0, %v1400
    %v1402 = vpop.f32.mrb[0].mxu0
    %1403 = vmatprep.mubr.f32.mxu0 0.0
    %1404 = vmatmul.mubr.f32.gmra.mrb[0].mxu0 %v1290
    %v1405 = vpop.f32.mrb[0].mxu0
    %v1406 = vadd.f32 0.0, %v1405
    %v1407 = vpop.f32.mrb[0].mxu0
    %1408 = vmatprep.mubr.f32.mxu0 0.0
    %1409 = vmatmul.mubr.f32.gmra.mrb[0].mxu0 %v1293
    %v1410 = vpop.f32.mrb[0].mxu0
    %v1411 = vadd.f32 0.0, %v1410
    %v1412 = vpop.f32.mrb[0].mxu0
    %1413 = vmatprep.mubr.f32.mxu0 0.0
    %1414 = vmatmul.mubr.f32.gmra.mrb[0].mxu0 %v1296
    %v1415 = vpop.f32.mrb[0].mxu0
    %v1416 = vadd.f32 0.0, %v1415
    %v1417 = vpop.f32.mrb[0].mxu0
    %1418 = vmatprep.mubr.f32.mxu0 0.0
    %1419 = vmatmul.mubr.f32.gmra.mrb[0].mxu0 %v1299
    %v1420 = vpop.f32.mrb[0].mxu0
    %v1421 = vadd.f32 0.0, %v1420
    %v1422 = vpop.f32.mrb[0].mxu0
    %1423 = vmatprep.mubr.f32.mxu0 0.0
    %1424 = vmatmul.mubr.f32.gmra.mrb[0].mxu0 %v1302
    %v1425 = vpop.f32.mrb[0].mxu0
    %v1426 = vadd.f32 0.0, %v1425
    %v1427 = vpop.f32.mrb[0].mxu0
    %1428 = vmatprep.mubr.f32.mxu0 0.0
    %1429 = vmatmul.mubr.f32.gmra.mrb[0].mxu0 %v1305
    %v1430 = vpop.f32.mrb[0].mxu0
    %v1431 = vadd.f32 0.0, %v1430
    %v1432 = vpop.f32.mrb[0].mxu0
    %1433 = vmatprep.mubr.f32.mxu0 0.0
    %1434 = vmatmul.mubr.f32.gmra.mrb[0].mxu0 %v1308
    %v1435 = vpop.f32.mrb[0].mxu0
    %v1436 = vadd.f32 0.0, %v1435
    %v1437 = vpop.f32.mrb[0].mxu0
    %1438 = vmatprep.mubr.f32.mxu0 0.0
    %1439 = vmatmul.mubr.f32.gmra.mrb[0].mxu0 %v1311
    %v1440 = vpop.f32.mrb[0].mxu0
    %v1441 = vadd.f32 0.0, %v1440
    %v1442 = vpop.f32.mrb[0].mxu0
    %1443 = vmatprep.mubr.f32.mxu0 0.0
    %1444 = vmatmul.mubr.f32.gmra.mrb[0].mxu0 %v1314
    %v1445 = vpop.f32.mrb[0].mxu0
    %v1446 = vadd.f32 0.0, %v1445
    %v1447 = vpop.f32.mrb[0].mxu0
    %1448 = vmatprep.mubr.f32.mxu0 0.0
    %1449 = vmatmul.mubr.f32.gmra.mrb[0].mxu0 %v1317
    %v1450 = vpop.f32.mrb[0].mxu0
    %v1451 = vadd.f32 0.0, %v1450
    %v1452 = vpop.f32.mrb[0].mxu0
    %1453 = vmatprep.mubr.f32.mxu0 0.0
    %1454 = vmatmul.mubr.f32.gmra.mrb[0].mxu0 %v1320
    %v1455 = vpop.f32.mrb[0].mxu0
    %v1456 = vadd.f32 0.0, %v1455
    %v1457 = vpop.f32.mrb[0].mxu0
    %1458 = vmatprep.mubr.f32.mxu0 0.0
    %1459 = vmatmul.mubr.f32.gmra.mrb[0].mxu0 %v1323
    %v1460 = vpop.f32.mrb[0].mxu0
    %v1461 = vadd.f32 0.0, %v1460
    %v1462 = vpop.f32.mrb[0].mxu0
    %1463 = vmatprep.mubr.f32.mxu0 0.0
    %1464 = vmatmul.mubr.f32.gmra.mrb[0].mxu0 %v1326
    %v1465 = vpop.f32.mrb[0].mxu0
    %v1466 = vadd.f32 0.0, %v1465
    %v1467 = vpop.f32.mrb[0].mxu0
    %1468 = vmatprep.mubr.f32.mxu0 0.0
    %1469 = vmatmul.mubr.f32.gmra.mrb[0].mxu0 %v1329
    %v1470 = vpop.f32.mrb[0].mxu0
    %v1471 = vadd.f32 0.0, %v1470
    %v1472 = vpop.f32.mrb[0].mxu0
    %1473 = vmatprep.mubr.f32.mxu0 0.0
    %1474 = vmatmul.mubr.f32.gmra.mrb[0].mxu0 %v1332
    %v1475 = vpop.f32.mrb[0].mxu0
    %v1476 = vadd.f32 0.0, %v1475
    %v1477 = vpop.f32.mrb[0].mxu0
    %1478 = vdwg.mxu0
    %v1479 = vld [vmem:[#allocation3 + $0x9] sm:$0xff]
    %v1480 = vld [vmem:[#allocation3 + $0x11] sm:$0xff]
    %v1481 = vld [vmem:[#allocation3 + $0x19] sm:$0xff]
    %v1482 = vld [vmem:[#allocation3 + $0x21] sm:$0xff]
    %v1483 = vld [vmem:[#allocation3 + $0x29] sm:$0xff]
    %v1484 = vld [vmem:[#allocation3 + $0x31] sm:$0xff]
    %v1485 = vld [vmem:[#allocation3 + $0x39] sm:$0xff]
    %v1486 = vld [vmem:[#allocation3 + $0x41] sm:$0xff]
    %v1487 = vld [vmem:[#allocation3 + $0x49] sm:$0xff]
    %v1488 = vld [vmem:[#allocation3 + $0x51] sm:$0xff]
    %v1489 = vld [vmem:[#allocation3 + $0x59] sm:$0xff]
    %v1490 = vld [vmem:[#allocation3 + $0x61] sm:$0xff]
    %v1491 = vld [vmem:[#allocation3 + $0x69] sm:$0xff]
    %v1492 = vld [vmem:[#allocation3 + $0x71] sm:$0xff]
    %v1493 = vld [vmem:[#allocation3 + $0x79] sm:$0xff]
    %v1494 = vld [vmem:[#allocation3 + $0x81] sm:$0xff]
    %s1495 = scalar_lea.vmem %s5, 256
    %v1496 = vld [vmem:[%s1495] sm:$0xff]
    %v1497 = vld [vmem:[%s1495 + $0x8] sm:$0xff]
    %v1498 = vld [vmem:[%s1495 + $0x10] sm:$0xff]
    %v1499 = vld [vmem:[%s1495 + $0x18] sm:$0xff]
    %v1500 = vld [vmem:[%s1495 + $0x20] sm:$0xff]
    %v1501 = vld [vmem:[%s1495 + $0x28] sm:$0xff]
    %v1502 = vld [vmem:[%s1495 + $0x30] sm:$0xff]
    %v1503 = vld [vmem:[%s1495 + $0x38] sm:$0xff]
    %v1504 = vld [vmem:[%s1495 + $0x40] sm:$0xff]
    %v1505 = vld [vmem:[%s1495 + $0x48] sm:$0xff]
    %v1506 = vld [vmem:[%s1495 + $0x50] sm:$0xff]
    %v1507 = vld [vmem:[%s1495 + $0x58] sm:$0xff]
    %v1508 = vld [vmem:[%s1495 + $0x60] sm:$0xff]
    %v1509 = vld [vmem:[%s1495 + $0x68] sm:$0xff]
    %v1510 = vld [vmem:[%s1495 + $0x70] sm:$0xff]
    %v1511 = vld [vmem:[%s1495 + $0x78] sm:$0xff]
    %1513 = vset.pattern.permute.xlu0 0
    %1514 = vperm.xlu0 %1513, %v1496
    %v1515 = vpop.permute.xlu0 %1514
    %1518 = vset.pattern.permute.xlu0 0
    %1519 = vperm.xlu0 %1518, %v1497
    %v1520 = vpop.permute.xlu0 %1519
    %1523 = vset.pattern.permute.xlu0 0
    %1524 = vperm.xlu0 %1523, %v1498
    %v1525 = vpop.permute.xlu0 %1524
    %1528 = vset.pattern.permute.xlu0 0
    %1529 = vperm.xlu0 %1528, %v1499
    %v1530 = vpop.permute.xlu0 %1529
    %1533 = vset.pattern.permute.xlu0 0
    %1534 = vperm.xlu0 %1533, %v1500
    %v1535 = vpop.permute.xlu0 %1534
    %1538 = vset.pattern.permute.xlu0 0
    %1539 = vperm.xlu0 %1538, %v1501
    %v1540 = vpop.permute.xlu0 %1539
    %1543 = vset.pattern.permute.xlu0 0
    %1544 = vperm.xlu0 %1543, %v1502
    %v1545 = vpop.permute.xlu0 %1544
    %1548 = vset.pattern.permute.xlu0 0
    %1549 = vperm.xlu0 %1548, %v1503
    %v1550 = vpop.permute.xlu0 %1549
    %1553 = vset.pattern.permute.xlu0 0
    %1554 = vperm.xlu0 %1553, %v1504
    %v1555 = vpop.permute.xlu0 %1554
    %1558 = vset.pattern.permute.xlu0 0
    %1559 = vperm.xlu0 %1558, %v1505
    %v1560 = vpop.permute.xlu0 %1559
    %1563 = vset.pattern.permute.xlu0 0
    %1564 = vperm.xlu0 %1563, %v1506
    %v1565 = vpop.permute.xlu0 %1564
    %1568 = vset.pattern.permute.xlu0 0
    %1569 = vperm.xlu0 %1568, %v1507
    %v1570 = vpop.permute.xlu0 %1569
    %1573 = vset.pattern.permute.xlu0 0
    %1574 = vperm.xlu0 %1573, %v1508
    %v1575 = vpop.permute.xlu0 %1574
    %1578 = vset.pattern.permute.xlu0 0
    %1579 = vperm.xlu0 %1578, %v1509
    %v1580 = vpop.permute.xlu0 %1579
    %1583 = vset.pattern.permute.xlu0 0
    %1584 = vperm.xlu0 %1583, %v1510
    %v1585 = vpop.permute.xlu0 %1584
    %1588 = vset.pattern.permute.xlu0 0
    %1589 = vperm.xlu0 %1588, %v1511
    %v1590 = vpop.permute.xlu0 %1589
    %v1592 = vmul.f32 %v1479, %v1515
    %v1593 = vmul.f32 %v1480, %v1520
    %v1594 = vmul.f32 %v1481, %v1525
    %v1595 = vmul.f32 %v1482, %v1530
    %v1596 = vmul.f32 %v1483, %v1535
    %v1597 = vmul.f32 %v1484, %v1540
    %v1598 = vmul.f32 %v1485, %v1545
    %v1599 = vmul.f32 %v1486, %v1550
    %v1600 = vmul.f32 %v1487, %v1555
    %v1601 = vmul.f32 %v1488, %v1560
    %v1602 = vmul.f32 %v1489, %v1565
    %v1603 = vmul.f32 %v1490, %v1570
    %v1604 = vmul.f32 %v1491, %v1575
    %v1605 = vmul.f32 %v1492, %v1580
    %v1606 = vmul.f32 %v1493, %v1585
    %v1607 = vmul.f32 %v1494, %v1590
    %s1608 = scalar_lea.vmem %s3, 64
    %v1609 = vld [vmem:[%s1608] sm:$0xff]
    %v1610 = vld [vmem:[%s1608 + $0x8] sm:$0xff]
    %v1611 = vld [vmem:[%s1608 + $0x10] sm:$0xff]
    %v1612 = vld [vmem:[%s1608 + $0x18] sm:$0xff]
    %v1613 = vld [vmem:[#allocation3 + $0xf] sm:$0xff]
    %v1614 = vld [vmem:[#allocation3 + $0x17] sm:$0xff]
    %v1615 = vld [vmem:[#allocation3 + $0x1f] sm:$0xff]
    %v1616 = vld [vmem:[#allocation3 + $0x27] sm:$0xff]
    %v1617 = vld [vmem:[#allocation3 + $0x2f] sm:$0xff]
    %v1618 = vld [vmem:[#allocation3 + $0x37] sm:$0xff]
    %v1619 = vld [vmem:[#allocation3 + $0x3f] sm:$0xff]
    %v1620 = vld [vmem:[#allocation3 + $0x47] sm:$0xff]
    %v1621 = vld [vmem:[#allocation3 + $0x4f] sm:$0xff]
    %v1622 = vld [vmem:[#allocation3 + $0x57] sm:$0xff]
    %v1623 = vld [vmem:[#allocation3 + $0x5f] sm:$0xff]
    %v1624 = vld [vmem:[#allocation3 + $0x67] sm:$0xff]
    %v1625 = vld [vmem:[#allocation3 + $0x6f] sm:$0xff]
    %v1626 = vld [vmem:[#allocation3 + $0x77] sm:$0xff]
    %v1627 = vld [vmem:[#allocation3 + $0x7f] sm:$0xff]
    %v1628 = vld [vmem:[#allocation3 + $0x87] sm:$0xff]
    %s1629 = scalar_lea.vmem %s5, 384
    %v1630 = vld [vmem:[%s1629] sm:$0xff]
    %v1631 = vld [vmem:[%s1629 + $0x8] sm:$0xff]
    %v1632 = vld [vmem:[%s1629 + $0x10] sm:$0xff]
    %v1633 = vld [vmem:[%s1629 + $0x18] sm:$0xff]
    %v1634 = vld [vmem:[%s1629 + $0x20] sm:$0xff]
    %v1635 = vld [vmem:[%s1629 + $0x28] sm:$0xff]
    %v1636 = vld [vmem:[%s1629 + $0x30] sm:$0xff]
    %v1637 = vld [vmem:[%s1629 + $0x38] sm:$0xff]
    %v1638 = vld [vmem:[%s1629 + $0x40] sm:$0xff]
    %v1639 = vld [vmem:[%s1629 + $0x48] sm:$0xff]
    %v1640 = vld [vmem:[%s1629 + $0x50] sm:$0xff]
    %v1641 = vld [vmem:[%s1629 + $0x58] sm:$0xff]
    %v1642 = vld [vmem:[%s1629 + $0x60] sm:$0xff]
    %v1643 = vld [vmem:[%s1629 + $0x68] sm:$0xff]
    %v1644 = vld [vmem:[%s1629 + $0x70] sm:$0xff]
    %v1645 = vld [vmem:[%s1629 + $0x78] sm:$0xff]
    %1647 = vset.pattern.permute.xlu0 0
    %1648 = vperm.xlu0 %1647, %v1630
    %v1649 = vpop.permute.xlu0 %1648
    %1652 = vset.pattern.permute.xlu0 0
    %1653 = vperm.xlu0 %1652, %v1631
    %v1654 = vpop.permute.xlu0 %1653
    %1657 = vset.pattern.permute.xlu0 0
    %1658 = vperm.xlu0 %1657, %v1632
    %v1659 = vpop.permute.xlu0 %1658
    %1662 = vset.pattern.permute.xlu0 0
    %1663 = vperm.xlu0 %1662, %v1633
    %v1664 = vpop.permute.xlu0 %1663
    %1667 = vset.pattern.permute.xlu0 0
    %1668 = vperm.xlu0 %1667, %v1634
    %v1669 = vpop.permute.xlu0 %1668
    %1672 = vset.pattern.permute.xlu0 0
    %1673 = vperm.xlu0 %1672, %v1635
    %v1674 = vpop.permute.xlu0 %1673
    %1677 = vset.pattern.permute.xlu0 0
    %1678 = vperm.xlu0 %1677, %v1636
    %v1679 = vpop.permute.xlu0 %1678
    %1682 = vset.pattern.permute.xlu0 0
    %1683 = vperm.xlu0 %1682, %v1637
    %v1684 = vpop.permute.xlu0 %1683
    %1687 = vset.pattern.permute.xlu0 0
    %1688 = vperm.xlu0 %1687, %v1638
    %v1689 = vpop.permute.xlu0 %1688
    %1692 = vset.pattern.permute.xlu0 0
    %1693 = vperm.xlu0 %1692, %v1639
    %v1694 = vpop.permute.xlu0 %1693
    %1697 = vset.pattern.permute.xlu0 0
    %1698 = vperm.xlu0 %1697, %v1640
    %v1699 = vpop.permute.xlu0 %1698
    %1702 = vset.pattern.permute.xlu0 0
    %1703 = vperm.xlu0 %1702, %v1641
    %v1704 = vpop.permute.xlu0 %1703
    %1707 = vset.pattern.permute.xlu0 0
    %1708 = vperm.xlu0 %1707, %v1642
    %v1709 = vpop.permute.xlu0 %1708
    %1712 = vset.pattern.permute.xlu0 0
    %1713 = vperm.xlu0 %1712, %v1643
    %v1714 = vpop.permute.xlu0 %1713
    %1717 = vset.pattern.permute.xlu0 0
    %1718 = vperm.xlu0 %1717, %v1644
    %v1719 = vpop.permute.xlu0 %1718
    %1722 = vset.pattern.permute.xlu0 0
    %1723 = vperm.xlu0 %1722, %v1645
    %v1724 = vpop.permute.xlu0 %1723
    %v1726 = vmul.f32 %v1613, %v1649
    %v1727 = vmul.f32 %v1614, %v1654
    %v1728 = vmul.f32 %v1615, %v1659
    %v1729 = vmul.f32 %v1616, %v1664
    %v1730 = vmul.f32 %v1617, %v1669
    %v1731 = vmul.f32 %v1618, %v1674
    %v1732 = vmul.f32 %v1619, %v1679
    %v1733 = vmul.f32 %v1620, %v1684
    %v1734 = vmul.f32 %v1621, %v1689
    %v1735 = vmul.f32 %v1622, %v1694
    %v1736 = vmul.f32 %v1623, %v1699
    %v1737 = vmul.f32 %v1624, %v1704
    %v1738 = vmul.f32 %v1625, %v1709
    %v1739 = vmul.f32 %v1626, %v1714
    %v1740 = vmul.f32 %v1627, %v1719
    %v1741 = vmul.f32 %v1628, %v1724
    %s1742 = scalar_lea.vmem %s3, 96
    %v1743 = vld [vmem:[%s1742] sm:$0xff]
    %v1744 = vld [vmem:[%s1742 + $0x8] sm:$0xff]
    %v1745 = vld [vmem:[%s1742 + $0x10] sm:$0xff]
    %v1746 = vld [vmem:[%s1742 + $0x18] sm:$0xff]
    %v1748 = vsel %vm999, %v1726, 0
    %v1751 = vsel %vm999, %v1727, 0
    %v1754 = vsel %vm999, %v1728, 0
    %v1757 = vsel %vm999, %v1729, 0
    %v1760 = vsel %vm999, %v1730, 0
    %v1763 = vsel %vm999, %v1731, 0
    %v1766 = vsel %vm999, %v1732, 0
    %v1769 = vsel %vm999, %v1733, 0
    %v1772 = vsel %vm999, %v1734, 0
    %v1775 = vsel %vm999, %v1735, 0
    %v1778 = vsel %vm999, %v1736, 0
    %v1781 = vsel %vm999, %v1737, 0
    %v1784 = vsel %vm999, %v1738, 0
    %v1787 = vsel %vm999, %v1739, 0
    %v1790 = vsel %vm999, %v1740, 0
    %v1793 = vsel %vm999, %v1741, 0
    %1795 = vmatprep.subr.mxu0 0.0
    %1796 = vmatpush1.msra.mxu0 %v1743
    %1797 = vmatprep.subr.mxu0 0.0
    %1798 = vmatpush1.msra.mxu0 %v1744
    %1799 = vmatprep.subr.mxu0 0.0
    %1800 = vmatpush1.msra.mxu0 %v1745
    %1801 = vmatprep.subr.mxu0 0.0
    %1802 = vmatpush1.msra.mxu0 %v1746
    %1803 = vmatprep.subr.mxu0 0.0
    %1804 = vmatpush1.msra.mxu0 0.0
    %1805 = vmatprep.subr.mxu0 0.0
    %1806 = vmatpush1.msra.mxu0 0.0
    %1807 = vmatprep.subr.mxu0 0.0
    %1808 = vmatpush1.msra.mxu0 0.0
    %1809 = vmatprep.subr.mxu0 0.0
    %1810 = vmatpush1.msra.mxu0 0.0
    %1811 = vmatprep.subr.mxu0 0.0
    %1812 = vmatpush1.msra.mxu0 0.0
    %1813 = vmatprep.subr.mxu0 0.0
    %1814 = vmatpush1.msra.mxu0 0.0
    %1815 = vmatprep.subr.mxu0 0.0
    %1816 = vmatpush1.msra.mxu0 0.0
    %1817 = vmatprep.subr.mxu0 0.0
    %1818 = vmatpush1.msra.mxu0 0.0
    %1819 = vmatprep.subr.mxu0 0.0
    %1820 = vmatpush1.msra.mxu0 0.0
    %1821 = vmatprep.subr.mxu0 0.0
    %1822 = vmatpush1.msra.mxu0 0.0
    %1823 = vmatprep.subr.mxu0 0.0
    %1824 = vmatpush1.msra.mxu0 0.0
    %1825 = vmatprep.subr.mxu0 0.0
    %1826 = vmatpush1.msra.mxu0 0.0
    %1827 = vmatprep.subr.mxu0 0.0
    %1828 = vmatpush1.msra.mxu0 0.0
    %1829 = vmatprep.subr.mxu0 0.0
    %1830 = vmatpush1.msra.mxu0 0.0
    %1831 = vmatprep.subr.mxu0 0.0
    %1832 = vmatpush1.msra.mxu0 0.0
    %1833 = vmatprep.subr.mxu0 0.0
    %1834 = vmatpush1.msra.mxu0 0.0
    %1835 = vmatprep.subr.mxu0 0.0
    %1836 = vmatpush1.msra.mxu0 0.0
    %1837 = vmatprep.subr.mxu0 0.0
    %1838 = vmatpush1.msra.mxu0 0.0
    %1839 = vmatprep.subr.mxu0 0.0
    %1840 = vmatpush1.msra.mxu0 0.0
    %1841 = vmatprep.subr.mxu0 0.0
    %1842 = vmatpush1.msra.mxu0 0.0
    %1843 = vmatprep.subr.mxu0 0.0
    %1844 = vmatpush1.msra.mxu0 0.0
    %1845 = vmatprep.subr.mxu0 0.0
    %1846 = vmatpush1.msra.mxu0 0.0
    %1847 = vmatprep.subr.mxu0 0.0
    %1848 = vmatpush1.msra.mxu0 0.0
    %1849 = vmatprep.subr.mxu0 0.0
    %1850 = vmatpush1.msra.mxu0 0.0
    %1851 = vmatprep.subr.mxu0 0.0
    %1852 = vmatpush1.msra.mxu0 0.0
    %1853 = vmatprep.subr.mxu0 0.0
    %1854 = vmatpush1.msra.mxu0 0.0
    %1855 = vmatprep.subr.mxu0 0.0
    %1856 = vmatpush1.msra.mxu0 0.0
    %1857 = vmatprep.subr.mxu0 0.0
    %1858 = vmatpush1.msra.mxu0 0.0
    %1859 = vmatprep.mubr.f32.mxu0 0.0
    %1860 = vmatmul.mubr.f32.gmra.mrb[0].mxu0 %v1748
    %v1861 = vpop.f32.mrb[0].mxu0
    %v1862 = vadd.f32 0.0, %v1861
    %v1863 = vpop.f32.mrb[0].mxu0
    %1864 = vmatprep.mubr.f32.mxu0 0.0
    %1865 = vmatmul.mubr.f32.gmra.mrb[0].mxu0 %v1751
    %v1866 = vpop.f32.mrb[0].mxu0
    %v1867 = vadd.f32 0.0, %v1866
    %v1868 = vpop.f32.mrb[0].mxu0
    %1869 = vmatprep.mubr.f32.mxu0 0.0
    %1870 = vmatmul.mubr.f32.gmra.mrb[0].mxu0 %v1754
    %v1871 = vpop.f32.mrb[0].mxu0
    %v1872 = vadd.f32 0.0, %v1871
    %v1873 = vpop.f32.mrb[0].mxu0
    %1874 = vmatprep.mubr.f32.mxu0 0.0
    %1875 = vmatmul.mubr.f32.gmra.mrb[0].mxu0 %v1757
    %v1876 = vpop.f32.mrb[0].mxu0
    %v1877 = vadd.f32 0.0, %v1876
    %v1878 = vpop.f32.mrb[0].mxu0
    %1879 = vmatprep.mubr.f32.mxu0 0.0
    %1880 = vmatmul.mubr.f32.gmra.mrb[0].mxu0 %v1760
    %v1881 = vpop.f32.mrb[0].mxu0
    %v1882 = vadd.f32 0.0, %v1881
    %v1883 = vpop.f32.mrb[0].mxu0
    %1884 = vmatprep.mubr.f32.mxu0 0.0
    %1885 = vmatmul.mubr.f32.gmra.mrb[0].mxu0 %v1763
    %v1886 = vpop.f32.mrb[0].mxu0
    %v1887 = vadd.f32 0.0, %v1886
    %v1888 = vpop.f32.mrb[0].mxu0
    %1889 = vmatprep.mubr.f32.mxu0 0.0
    %1890 = vmatmul.mubr.f32.gmra.mrb[0].mxu0 %v1766
    %v1891 = vpop.f32.mrb[0].mxu0
    %v1892 = vadd.f32 0.0, %v1891
    %v1893 = vpop.f32.mrb[0].mxu0
    %1894 = vmatprep.mubr.f32.mxu0 0.0
    %1895 = vmatmul.mubr.f32.gmra.mrb[0].mxu0 %v1769
    %v1896 = vpop.f32.mrb[0].mxu0
    %v1897 = vadd.f32 0.0, %v1896
    %v1898 = vpop.f32.mrb[0].mxu0
    %1899 = vmatprep.mubr.f32.mxu0 0.0
    %1900 = vmatmul.mubr.f32.gmra.mrb[0].mxu0 %v1772
    %v1901 = vpop.f32.mrb[0].mxu0
    %v1902 = vadd.f32 0.0, %v1901
    %v1903 = vpop.f32.mrb[0].mxu0
    %1904 = vmatprep.mubr.f32.mxu0 0.0
    %1905 = vmatmul.mubr.f32.gmra.mrb[0].mxu0 %v1775
    %v1906 = vpop.f32.mrb[0].mxu0
    %v1907 = vadd.f32 0.0, %v1906
    %v1908 = vpop.f32.mrb[0].mxu0
    %1909 = vmatprep.mubr.f32.mxu0 0.0
    %1910 = vmatmul.mubr.f32.gmra.mrb[0].mxu0 %v1778
    %v1911 = vpop.f32.mrb[0].mxu0
    %v1912 = vadd.f32 0.0, %v1911
    %v1913 = vpop.f32.mrb[0].mxu0
    %1914 = vmatprep.mubr.f32.mxu0 0.0
    %1915 = vmatmul.mubr.f32.gmra.mrb[0].mxu0 %v1781
    %v1916 = vpop.f32.mrb[0].mxu0
    %v1917 = vadd.f32 0.0, %v1916
    %v1918 = vpop.f32.mrb[0].mxu0
    %1919 = vmatprep.mubr.f32.mxu0 0.0
    %1920 = vmatmul.mubr.f32.gmra.mrb[0].mxu0 %v1784
    %v1921 = vpop.f32.mrb[0].mxu0
    %v1922 = vadd.f32 0.0, %v1921
    %v1923 = vpop.f32.mrb[0].mxu0
    %1924 = vmatprep.mubr.f32.mxu0 0.0
    %1925 = vmatmul.mubr.f32.gmra.mrb[0].mxu0 %v1787
    %v1926 = vpop.f32.mrb[0].mxu0
    %v1927 = vadd.f32 0.0, %v1926
    %v1928 = vpop.f32.mrb[0].mxu0
    %1929 = vmatprep.mubr.f32.mxu0 0.0
    %1930 = vmatmul.mubr.f32.gmra.mrb[0].mxu0 %v1790
    %v1931 = vpop.f32.mrb[0].mxu0
    %v1932 = vadd.f32 0.0, %v1931
    %v1933 = vpop.f32.mrb[0].mxu0
    %1934 = vmatprep.mubr.f32.mxu0 0.0
    %1935 = vmatmul.mubr.f32.gmra.mrb[0].mxu0 %v1793
    %v1936 = vpop.f32.mrb[0].mxu0
    %v1937 = vadd.f32 0.0, %v1936
    %v1938 = vpop.f32.mrb[0].mxu0
    %1939 = vdwg.mxu0
    %v1940 = vld [vmem:[#allocation3 + $0x10] sm:$0xff]
    %v1941 = vld [vmem:[#allocation3 + $0x18] sm:$0xff]
    %v1942 = vld [vmem:[#allocation3 + $0x20] sm:$0xff]
    %v1943 = vld [vmem:[#allocation3 + $0x28] sm:$0xff]
    %v1944 = vld [vmem:[#allocation3 + $0x30] sm:$0xff]
    %v1945 = vld [vmem:[#allocation3 + $0x38] sm:$0xff]
    %v1946 = vld [vmem:[#allocation3 + $0x40] sm:$0xff]
    %v1947 = vld [vmem:[#allocation3 + $0x48] sm:$0xff]
    %v1948 = vld [vmem:[#allocation3 + $0x50] sm:$0xff]
    %v1949 = vld [vmem:[#allocation3 + $0x58] sm:$0xff]
    %v1950 = vld [vmem:[#allocation3 + $0x60] sm:$0xff]
    %v1951 = vld [vmem:[#allocation3 + $0x68] sm:$0xff]
    %v1952 = vld [vmem:[#allocation3 + $0x70] sm:$0xff]
    %v1953 = vld [vmem:[#allocation3 + $0x78] sm:$0xff]
    %v1954 = vld [vmem:[#allocation3 + $0x80] sm:$0xff]
    %v1955 = vld [vmem:[#allocation3 + $0x88] sm:$0xff]
    %s1956 = scalar_lea.vmem %s5, 512
    %v1957 = vld [vmem:[%s1956] sm:$0xff]
    %v1958 = vld [vmem:[%s1956 + $0x8] sm:$0xff]
    %v1959 = vld [vmem:[%s1956 + $0x10] sm:$0xff]
    %v1960 = vld [vmem:[%s1956 + $0x18] sm:$0xff]
    %v1961 = vld [vmem:[%s1956 + $0x20] sm:$0xff]
    %v1962 = vld [vmem:[%s1956 + $0x28] sm:$0xff]
    %v1963 = vld [vmem:[%s1956 + $0x30] sm:$0xff]
    %v1964 = vld [vmem:[%s1956 + $0x38] sm:$0xff]
    %v1965 = vld [vmem:[%s1956 + $0x40] sm:$0xff]
    %v1966 = vld [vmem:[%s1956 + $0x48] sm:$0xff]
    %v1967 = vld [vmem:[%s1956 + $0x50] sm:$0xff]
    %v1968 = vld [vmem:[%s1956 + $0x58] sm:$0xff]
    %v1969 = vld [vmem:[%s1956 + $0x60] sm:$0xff]
    %v1970 = vld [vmem:[%s1956 + $0x68] sm:$0xff]
    %v1971 = vld [vmem:[%s1956 + $0x70] sm:$0xff]
    %v1972 = vld [vmem:[%s1956 + $0x78] sm:$0xff]
    %1974 = vset.pattern.permute.xlu0 0
    %1975 = vperm.xlu0 %1974, %v1957
    %v1976 = vpop.permute.xlu0 %1975
    %1979 = vset.pattern.permute.xlu0 0
    %1980 = vperm.xlu0 %1979, %v1958
    %v1981 = vpop.permute.xlu0 %1980
    %1984 = vset.pattern.permute.xlu0 0
    %1985 = vperm.xlu0 %1984, %v1959
    %v1986 = vpop.permute.xlu0 %1985
    %1989 = vset.pattern.permute.xlu0 0
    %1990 = vperm.xlu0 %1989, %v1960
    %v1991 = vpop.permute.xlu0 %1990
    %1994 = vset.pattern.permute.xlu0 0
    %1995 = vperm.xlu0 %1994, %v1961
    %v1996 = vpop.permute.xlu0 %1995
    %1999 = vset.pattern.permute.xlu0 0
    %2000 = vperm.xlu0 %1999, %v1962
    %v2001 = vpop.permute.xlu0 %2000
    %2004 = vset.pattern.permute.xlu0 0
    %2005 = vperm.xlu0 %2004, %v1963
    %v2006 = vpop.permute.xlu0 %2005
    %2009 = vset.pattern.permute.xlu0 0
    %2010 = vperm.xlu0 %2009, %v1964
    %v2011 = vpop.permute.xlu0 %2010
    %2014 = vset.pattern.permute.xlu0 0
    %2015 = vperm.xlu0 %2014, %v1965
    %v2016 = vpop.permute.xlu0 %2015
    %2019 = vset.pattern.permute.xlu0 0
    %2020 = vperm.xlu0 %2019, %v1966
    %v2021 = vpop.permute.xlu0 %2020
    %2024 = vset.pattern.permute.xlu0 0
    %2025 = vperm.xlu0 %2024, %v1967
    %v2026 = vpop.permute.xlu0 %2025
    %2029 = vset.pattern.permute.xlu0 0
    %2030 = vperm.xlu0 %2029, %v1968
    %v2031 = vpop.permute.xlu0 %2030
    %2034 = vset.pattern.permute.xlu0 0
    %2035 = vperm.xlu0 %2034, %v1969
    %v2036 = vpop.permute.xlu0 %2035
    %2039 = vset.pattern.permute.xlu0 0
    %2040 = vperm.xlu0 %2039, %v1970
    %v2041 = vpop.permute.xlu0 %2040
    %2044 = vset.pattern.permute.xlu0 0
    %2045 = vperm.xlu0 %2044, %v1971
    %v2046 = vpop.permute.xlu0 %2045
    %2049 = vset.pattern.permute.xlu0 0
    %2050 = vperm.xlu0 %2049, %v1972
    %v2051 = vpop.permute.xlu0 %2050
    %v2053 = vmul.f32 %v1940, %v1976
    %v2054 = vmul.f32 %v1941, %v1981
    %v2055 = vmul.f32 %v1942, %v1986
    %v2056 = vmul.f32 %v1943, %v1991
    %v2057 = vmul.f32 %v1944, %v1996
    %v2058 = vmul.f32 %v1945, %v2001
    %v2059 = vmul.f32 %v1946, %v2006
    %v2060 = vmul.f32 %v1947, %v2011
    %v2061 = vmul.f32 %v1948, %v2016
    %v2062 = vmul.f32 %v1949, %v2021
    %v2063 = vmul.f32 %v1950, %v2026
    %v2064 = vmul.f32 %v1951, %v2031
    %v2065 = vmul.f32 %v1952, %v2036
    %v2066 = vmul.f32 %v1953, %v2041
    %v2067 = vmul.f32 %v1954, %v2046
    %v2068 = vmul.f32 %v1955, %v2051
    %s2069 = scalar_lea.vmem %s3, 128
    %v2070 = vld [vmem:[%s2069] sm:$0xff]
    %v2071 = vld [vmem:[%s2069 + $0x8] sm:$0xff]
    %v2072 = vld [vmem:[%s2069 + $0x10] sm:$0xff]
    %v2073 = vld [vmem:[%s2069 + $0x18] sm:$0xff]
    %v2074 = vld [vmem:[#allocation3 + $0x11] sm:$0xff]
    %v2075 = vld [vmem:[#allocation3 + $0x19] sm:$0xff]
    %v2076 = vld [vmem:[#allocation3 + $0x21] sm:$0xff]
    %v2077 = vld [vmem:[#allocation3 + $0x29] sm:$0xff]
    %v2078 = vld [vmem:[#allocation3 + $0x31] sm:$0xff]
    %v2079 = vld [vmem:[#allocation3 + $0x39] sm:$0xff]
    %v2080 = vld [vmem:[#allocation3 + $0x41] sm:$0xff]
    %v2081 = vld [vmem:[#allocation3 + $0x49] sm:$0xff]
    %v2082 = vld [vmem:[#allocation3 + $0x51] sm:$0xff]
    %v2083 = vld [vmem:[#allocation3 + $0x59] sm:$0xff]
    %v2084 = vld [vmem:[#allocation3 + $0x61] sm:$0xff]
    %v2085 = vld [vmem:[#allocation3 + $0x69] sm:$0xff]
    %v2086 = vld [vmem:[#allocation3 + $0x71] sm:$0xff]
    %v2087 = vld [vmem:[#allocation3 + $0x79] sm:$0xff]
    %v2088 = vld [vmem:[#allocation3 + $0x81] sm:$0xff]
    %v2089 = vld [vmem:[#allocation3 + $0x89] sm:$0xff]
    %s2090 = scalar_lea.vmem %s5, 640
    %v2091 = vld [vmem:[%s2090] sm:$0xff]
    %v2092 = vld [vmem:[%s2090 + $0x8] sm:$0xff]
    %v2093 = vld [vmem:[%s2090 + $0x10] sm:$0xff]
    %v2094 = vld [vmem:[%s2090 + $0x18] sm:$0xff]
    %v2095 = vld [vmem:[%s2090 + $0x20] sm:$0xff]
    %v2096 = vld [vmem:[%s2090 + $0x28] sm:$0xff]
    %v2097 = vld [vmem:[%s2090 + $0x30] sm:$0xff]
    %v2098 = vld [vmem:[%s2090 + $0x38] sm:$0xff]
    %v2099 = vld [vmem:[%s2090 + $0x40] sm:$0xff]
    %v2100 = vld [vmem:[%s2090 + $0x48] sm:$0xff]
    %v2101 = vld [vmem:[%s2090 + $0x50] sm:$0xff]
    %v2102 = vld [vmem:[%s2090 + $0x58] sm:$0xff]
    %v2103 = vld [vmem:[%s2090 + $0x60] sm:$0xff]
    %v2104 = vld [vmem:[%s2090 + $0x68] sm:$0xff]
    %v2105 = vld [vmem:[%s2090 + $0x70] sm:$0xff]
    %v2106 = vld [vmem:[%s2090 + $0x78] sm:$0xff]
    %2108 = vset.pattern.permute.xlu0 0
    %2109 = vperm.xlu0 %2108, %v2091
    %v2110 = vpop.permute.xlu0 %2109
    %2113 = vset.pattern.permute.xlu0 0
    %2114 = vperm.xlu0 %2113, %v2092
    %v2115 = vpop.permute.xlu0 %2114
    %2118 = vset.pattern.permute.xlu0 0
    %2119 = vperm.xlu0 %2118, %v2093
    %v2120 = vpop.permute.xlu0 %2119
    %2123 = vset.pattern.permute.xlu0 0
    %2124 = vperm.xlu0 %2123, %v2094
    %v2125 = vpop.permute.xlu0 %2124
    %2128 = vset.pattern.permute.xlu0 0
    %2129 = vperm.xlu0 %2128, %v2095
    %v2130 = vpop.permute.xlu0 %2129
    %2133 = vset.pattern.permute.xlu0 0
    %2134 = vperm.xlu0 %2133, %v2096
    %v2135 = vpop.permute.xlu0 %2134
    %2138 = vset.pattern.permute.xlu0 0
    %2139 = vperm.xlu0 %2138, %v2097
    %v2140 = vpop.permute.xlu0 %2139
    %2143 = vset.pattern.permute.xlu0 0
    %2144 = vperm.xlu0 %2143, %v2098
    %v2145 = vpop.permute.xlu0 %2144
    %2148 = vset.pattern.permute.xlu0 0
    %2149 = vperm.xlu0 %2148, %v2099
    %v2150 = vpop.permute.xlu0 %2149
    %2153 = vset.pattern.permute.xlu0 0
    %2154 = vperm.xlu0 %2153, %v2100
    %v2155 = vpop.permute.xlu0 %2154
    %2158 = vset.pattern.permute.xlu0 0
    %2159 = vperm.xlu0 %2158, %v2101
    %v2160 = vpop.permute.xlu0 %2159
    %2163 = vset.pattern.permute.xlu0 0
    %2164 = vperm.xlu0 %2163, %v2102
    %v2165 = vpop.permute.xlu0 %2164
    %2168 = vset.pattern.permute.xlu0 0
    %2169 = vperm.xlu0 %2168, %v2103
    %v2170 = vpop.permute.xlu0 %2169
    %2173 = vset.pattern.permute.xlu0 0
    %2174 = vperm.xlu0 %2173, %v2104
    %v2175 = vpop.permute.xlu0 %2174
    %2178 = vset.pattern.permute.xlu0 0
    %2179 = vperm.xlu0 %2178, %v2105
    %v2180 = vpop.permute.xlu0 %2179
    %2183 = vset.pattern.permute.xlu0 0
    %2184 = vperm.xlu0 %2183, %v2106
    %v2185 = vpop.permute.xlu0 %2184
    %v2187 = vmul.f32 %v2074, %v2110
    %v2188 = vmul.f32 %v2075, %v2115
    %v2189 = vmul.f32 %v2076, %v2120
    %v2190 = vmul.f32 %v2077, %v2125
    %v2191 = vmul.f32 %v2078, %v2130
    %v2192 = vmul.f32 %v2079, %v2135
    %v2193 = vmul.f32 %v2080, %v2140
    %v2194 = vmul.f32 %v2081, %v2145
    %v2195 = vmul.f32 %v2082, %v2150
    %v2196 = vmul.f32 %v2083, %v2155
    %v2197 = vmul.f32 %v2084, %v2160
    %v2198 = vmul.f32 %v2085, %v2165
    %v2199 = vmul.f32 %v2086, %v2170
    %v2200 = vmul.f32 %v2087, %v2175
    %v2201 = vmul.f32 %v2088, %v2180
    %v2202 = vmul.f32 %v2089, %v2185
    %s2203 = scalar_lea.vmem %s3, 160
    %v2204 = vld [vmem:[%s2203] sm:$0xff]
    %v2205 = vld [vmem:[%s2203 + $0x8] sm:$0xff]
    %v2206 = vld [vmem:[%s2203 + $0x10] sm:$0xff]
    %v2207 = vld [vmem:[%s2203 + $0x18] sm:$0xff]
    %v2209 = vsel %vm999, %v2187, 0
    %v2212 = vsel %vm999, %v2188, 0
    %v2215 = vsel %vm999, %v2189, 0
    %v2218 = vsel %vm999, %v2190, 0
    %v2221 = vsel %vm999, %v2191, 0
    %v2224 = vsel %vm999, %v2192, 0
    %v2227 = vsel %vm999, %v2193, 0
    %v2230 = vsel %vm999, %v2194, 0
    %v2233 = vsel %vm999, %v2195, 0
    %v2236 = vsel %vm999, %v2196, 0
    %v2239 = vsel %vm999, %v2197, 0
    %v2242 = vsel %vm999, %v2198, 0
    %v2245 = vsel %vm999, %v2199, 0
    %v2248 = vsel %vm999, %v2200, 0
    %v2251 = vsel %vm999, %v2201, 0
    %v2254 = vsel %vm999, %v2202, 0
    %2256 = vmatprep.subr.mxu0 0.0
    %2257 = vmatpush1.msra.mxu0 %v2204
    %2258 = vmatprep.subr.mxu0 0.0
    %2259 = vmatpush1.msra.mxu0 %v2205
    %2260 = vmatprep.subr.mxu0 0.0
    %2261 = vmatpush1.msra.mxu0 %v2206
    %2262 = vmatprep.subr.mxu0 0.0
    %2263 = vmatpush1.msra.mxu0 %v2207
    %2264 = vmatprep.subr.mxu0 0.0
    %2265 = vmatpush1.msra.mxu0 0.0
    %2266 = vmatprep.subr.mxu0 0.0
    %2267 = vmatpush1.msra.mxu0 0.0
    %2268 = vmatprep.subr.mxu0 0.0
    %2269 = vmatpush1.msra.mxu0 0.0
    %2270 = vmatprep.subr.mxu0 0.0
    %2271 = vmatpush1.msra.mxu0 0.0
    %2272 = vmatprep.subr.mxu0 0.0
    %2273 = vmatpush1.msra.mxu0 0.0
    %2274 = vmatprep.subr.mxu0 0.0
    %2275 = vmatpush1.msra.mxu0 0.0
    %2276 = vmatprep.subr.mxu0 0.0
    %2277 = vmatpush1.msra.mxu0 0.0
    %2278 = vmatprep.subr.mxu0 0.0
    %2279 = vmatpush1.msra.mxu0 0.0
    %2280 = vmatprep.subr.mxu0 0.0
    %2281 = vmatpush1.msra.mxu0 0.0
    %2282 = vmatprep.subr.mxu0 0.0
    %2283 = vmatpush1.msra.mxu0 0.0
    %2284 = vmatprep.subr.mxu0 0.0
    %2285 = vmatpush1.msra.mxu0 0.0
    %2286 = vmatprep.subr.mxu0 0.0
    %2287 = vmatpush1.msra.mxu0 0.0
    %2288 = vmatprep.subr.mxu0 0.0
    %2289 = vmatpush1.msra.mxu0 0.0
    %2290 = vmatprep.subr.mxu0 0.0
    %2291 = vmatpush1.msra.mxu0 0.0
    %2292 = vmatprep.subr.mxu0 0.0
    %2293 = vmatpush1.msra.mxu0 0.0
    %2294 = vmatprep.subr.mxu0 0.0
    %2295 = vmatpush1.msra.mxu0 0.0
    %2296 = vmatprep.subr.mxu0 0.0
    %2297 = vmatpush1.msra.mxu0 0.0
    %2298 = vmatprep.subr.mxu0 0.0
    %2299 = vmatpush1.msra.mxu0 0.0
    %2300 = vmatprep.subr.mxu0 0.0
    %2301 = vmatpush1.msra.mxu0 0.0
    %2302 = vmatprep.subr.mxu0 0.0
    %2303 = vmatpush1.msra.mxu0 0.0
    %2304 = vmatprep.subr.mxu0 0.0
    %2305 = vmatpush1.msra.mxu0 0.0
    %2306 = vmatprep.subr.mxu0 0.0
    %2307 = vmatpush1.msra.mxu0 0.0
    %2308 = vmatprep.subr.mxu0 0.0
    %2309 = vmatpush1.msra.mxu0 0.0
    %2310 = vmatprep.subr.mxu0 0.0
    %2311 = vmatpush1.msra.mxu0 0.0
    %2312 = vmatprep.subr.mxu0 0.0
    %2313 = vmatpush1.msra.mxu0 0.0
    %2314 = vmatprep.subr.mxu0 0.0
    %2315 = vmatpush1.msra.mxu0 0.0
    %2316 = vmatprep.subr.mxu0 0.0
    %2317 = vmatpush1.msra.mxu0 0.0
    %2318 = vmatprep.subr.mxu0 0.0
    %2319 = vmatpush1.msra.mxu0 0.0
    %2320 = vmatprep.mubr.f32.mxu0 0.0
    %2321 = vmatmul.mubr.f32.gmra.mrb[0].mxu0 %v2209
    %v2322 = vpop.f32.mrb[0].mxu0
    %v2323 = vadd.f32 0.0, %v2322
    %v2324 = vpop.f32.mrb[0].mxu0
    %2325 = vmatprep.mubr.f32.mxu0 0.0
    %2326 = vmatmul.mubr.f32.gmra.mrb[0].mxu0 %v2212
    %v2327 = vpop.f32.mrb[0].mxu0
    %v2328 = vadd.f32 0.0, %v2327
    %v2329 = vpop.f32.mrb[0].mxu0
    %2330 = vmatprep.mubr.f32.mxu0 0.0
    %2331 = vmatmul.mubr.f32.gmra.mrb[0].mxu0 %v2215
    %v2332 = vpop.f32.mrb[0].mxu0
    %v2333 = vadd.f32 0.0, %v2332
    %v2334 = vpop.f32.mrb[0].mxu0
    %2335 = vmatprep.mubr.f32.mxu0 0.0
    %2336 = vmatmul.mubr.f32.gmra.mrb[0].mxu0 %v2218
    %v2337 = vpop.f32.mrb[0].mxu0
    %v2338 = vadd.f32 0.0, %v2337
    %v2339 = vpop.f32.mrb[0].mxu0
    %2340 = vmatprep.mubr.f32.mxu0 0.0
    %2341 = vmatmul.mubr.f32.gmra.mrb[0].mxu0 %v2221
    %v2342 = vpop.f32.mrb[0].mxu0
    %v2343 = vadd.f32 0.0, %v2342
    %v2344 = vpop.f32.mrb[0].mxu0
    %2345 = vmatprep.mubr.f32.mxu0 0.0
    %2346 = vmatmul.mubr.f32.gmra.mrb[0].mxu0 %v2224
    %v2347 = vpop.f32.mrb[0].mxu0
    %v2348 = vadd.f32 0.0, %v2347
    %v2349 = vpop.f32.mrb[0].mxu0
    %2350 = vmatprep.mubr.f32.mxu0 0.0
    %2351 = vmatmul.mubr.f32.gmra.mrb[0].mxu0 %v2227
    %v2352 = vpop.f32.mrb[0].mxu0
    %v2353 = vadd.f32 0.0, %v2352
    %v2354 = vpop.f32.mrb[0].mxu0
    %2355 = vmatprep.mubr.f32.mxu0 0.0
    %2356 = vmatmul.mubr.f32.gmra.mrb[0].mxu0 %v2230
    %v2357 = vpop.f32.mrb[0].mxu0
    %v2358 = vadd.f32 0.0, %v2357
    %v2359 = vpop.f32.mrb[0].mxu0
    %2360 = vmatprep.mubr.f32.mxu0 0.0
    %2361 = vmatmul.mubr.f32.gmra.mrb[0].mxu0 %v2233
    %v2362 = vpop.f32.mrb[0].mxu0
    %v2363 = vadd.f32 0.0, %v2362
    %v2364 = vpop.f32.mrb[0].mxu0
    %2365 = vmatprep.mubr.f32.mxu0 0.0
    %2366 = vmatmul.mubr.f32.gmra.mrb[0].mxu0 %v2236
    %v2367 = vpop.f32.mrb[0].mxu0
    %v2368 = vadd.f32 0.0, %v2367
    %v2369 = vpop.f32.mrb[0].mxu0
    %2370 = vmatprep.mubr.f32.mxu0 0.0
    %2371 = vmatmul.mubr.f32.gmra.mrb[0].mxu0 %v2239
    %v2372 = vpop.f32.mrb[0].mxu0
    %v2373 = vadd.f32 0.0, %v2372
    %v2374 = vpop.f32.mrb[0].mxu0
    %2375 = vmatprep.mubr.f32.mxu0 0.0
    %2376 = vmatmul.mubr.f32.gmra.mrb[0].mxu0 %v2242
    %v2377 = vpop.f32.mrb[0].mxu0
    %v2378 = vadd.f32 0.0, %v2377
    %v2379 = vpop.f32.mrb[0].mxu0
    %2380 = vmatprep.mubr.f32.mxu0 0.0
    %2381 = vmatmul.mubr.f32.gmra.mrb[0].mxu0 %v2245
    %v2382 = vpop.f32.mrb[0].mxu0
    %v2383 = vadd.f32 0.0, %v2382
    %v2384 = vpop.f32.mrb[0].mxu0
    %2385 = vmatprep.mubr.f32.mxu0 0.0
    %2386 = vmatmul.mubr.f32.gmra.mrb[0].mxu0 %v2248
    %v2387 = vpop.f32.mrb[0].mxu0
    %v2388 = vadd.f32 0.0, %v2387
    %v2389 = vpop.f32.mrb[0].mxu0
    %2390 = vmatprep.mubr.f32.mxu0 0.0
    %2391 = vmatmul.mubr.f32.gmra.mrb[0].mxu0 %v2251
    %v2392 = vpop.f32.mrb[0].mxu0
    %v2393 = vadd.f32 0.0, %v2392
    %v2394 = vpop.f32.mrb[0].mxu0
    %2395 = vmatprep.mubr.f32.mxu0 0.0
    %2396 = vmatmul.mubr.f32.gmra.mrb[0].mxu0 %v2254
    %v2397 = vpop.f32.mrb[0].mxu0
    %v2398 = vadd.f32 0.0, %v2397
    %v2399 = vpop.f32.mrb[0].mxu0
    %2400 = vdwg.mxu0
    %v2401 = vld [vmem:[#allocation3 + $0x17] sm:$0xff]
    %v2402 = vld [vmem:[#allocation3 + $0x1f] sm:$0xff]
    %v2403 = vld [vmem:[#allocation3 + $0x27] sm:$0xff]
    %v2404 = vld [vmem:[#allocation3 + $0x2f] sm:$0xff]
    %v2405 = vld [vmem:[#allocation3 + $0x37] sm:$0xff]
    %v2406 = vld [vmem:[#allocation3 + $0x3f] sm:$0xff]
    %v2407 = vld [vmem:[#allocation3 + $0x47] sm:$0xff]
    %v2408 = vld [vmem:[#allocation3 + $0x4f] sm:$0xff]
    %v2409 = vld [vmem:[#allocation3 + $0x57] sm:$0xff]
    %v2410 = vld [vmem:[#allocation3 + $0x5f] sm:$0xff]
    %v2411 = vld [vmem:[#allocation3 + $0x67] sm:$0xff]
    %v2412 = vld [vmem:[#allocation3 + $0x6f] sm:$0xff]
    %v2413 = vld [vmem:[#allocation3 + $0x77] sm:$0xff]
    %v2414 = vld [vmem:[#allocation3 + $0x7f] sm:$0xff]
    %v2415 = vld [vmem:[#allocation3 + $0x87] sm:$0xff]
    %v2416 = vld [vmem:[#allocation3 + $0x8f] sm:$0xff]
    %s2417 = scalar_lea.vmem %s5, 768
    %v2418 = vld [vmem:[%s2417] sm:$0xff]
    %v2419 = vld [vmem:[%s2417 + $0x8] sm:$0xff]
    %v2420 = vld [vmem:[%s2417 + $0x10] sm:$0xff]
    %v2421 = vld [vmem:[%s2417 + $0x18] sm:$0xff]
    %v2422 = vld [vmem:[%s2417 + $0x20] sm:$0xff]
    %v2423 = vld [vmem:[%s2417 + $0x28] sm:$0xff]
    %v2424 = vld [vmem:[%s2417 + $0x30] sm:$0xff]
    %v2425 = vld [vmem:[%s2417 + $0x38] sm:$0xff]
    %v2426 = vld [vmem:[%s2417 + $0x40] sm:$0xff]
    %v2427 = vld [vmem:[%s2417 + $0x48] sm:$0xff]
    %v2428 = vld [vmem:[%s2417 + $0x50] sm:$0xff]
    %v2429 = vld [vmem:[%s2417 + $0x58] sm:$0xff]
    %v2430 = vld [vmem:[%s2417 + $0x60] sm:$0xff]
    %v2431 = vld [vmem:[%s2417 + $0x68] sm:$0xff]
    %v2432 = vld [vmem:[%s2417 + $0x70] sm:$0xff]
    %v2433 = vld [vmem:[%s2417 + $0x78] sm:$0xff]
    %2435 = vset.pattern.permute.xlu0 0
    %2436 = vperm.xlu0 %2435, %v2418
    %v2437 = vpop.permute.xlu0 %2436
    %2440 = vset.pattern.permute.xlu0 0
    %2441 = vperm.xlu0 %2440, %v2419
    %v2442 = vpop.permute.xlu0 %2441
    %2445 = vset.pattern.permute.xlu0 0
    %2446 = vperm.xlu0 %2445, %v2420
    %v2447 = vpop.permute.xlu0 %2446
    %2450 = vset.pattern.permute.xlu0 0
    %2451 = vperm.xlu0 %2450, %v2421
    %v2452 = vpop.permute.xlu0 %2451
    %2455 = vset.pattern.permute.xlu0 0
    %2456 = vperm.xlu0 %2455, %v2422
    %v2457 = vpop.permute.xlu0 %2456
    %2460 = vset.pattern.permute.xlu0 0
    %2461 = vperm.xlu0 %2460, %v2423
    %v2462 = vpop.permute.xlu0 %2461
    %2465 = vset.pattern.permute.xlu0 0
    %2466 = vperm.xlu0 %2465, %v2424
    %v2467 = vpop.permute.xlu0 %2466
    %2470 = vset.pattern.permute.xlu0 0
    %2471 = vperm.xlu0 %2470, %v2425
    %v2472 = vpop.permute.xlu0 %2471
    %2475 = vset.pattern.permute.xlu0 0
    %2476 = vperm.xlu0 %2475, %v2426
    %v2477 = vpop.permute.xlu0 %2476
    %2480 = vset.pattern.permute.xlu0 0
    %2481 = vperm.xlu0 %2480, %v2427
    %v2482 = vpop.permute.xlu0 %2481
    %2485 = vset.pattern.permute.xlu0 0
    %2486 = vperm.xlu0 %2485, %v2428
    %v2487 = vpop.permute.xlu0 %2486
    %2490 = vset.pattern.permute.xlu0 0
    %2491 = vperm.xlu0 %2490, %v2429
    %v2492 = vpop.permute.xlu0 %2491
    %2495 = vset.pattern.permute.xlu0 0
    %2496 = vperm.xlu0 %2495, %v2430
    %v2497 = vpop.permute.xlu0 %2496
    %2500 = vset.pattern.permute.xlu0 0
    %2501 = vperm.xlu0 %2500, %v2431
    %v2502 = vpop.permute.xlu0 %2501
    %2505 = vset.pattern.permute.xlu0 0
    %2506 = vperm.xlu0 %2505, %v2432
    %v2507 = vpop.permute.xlu0 %2506
    %2510 = vset.pattern.permute.xlu0 0
    %2511 = vperm.xlu0 %2510, %v2433
    %v2512 = vpop.permute.xlu0 %2511
    %v2514 = vmul.f32 %v2401, %v2437
    %v2515 = vmul.f32 %v2402, %v2442
    %v2516 = vmul.f32 %v2403, %v2447
    %v2517 = vmul.f32 %v2404, %v2452
    %v2518 = vmul.f32 %v2405, %v2457
    %v2519 = vmul.f32 %v2406, %v2462
    %v2520 = vmul.f32 %v2407, %v2467
    %v2521 = vmul.f32 %v2408, %v2472
    %v2522 = vmul.f32 %v2409, %v2477
    %v2523 = vmul.f32 %v2410, %v2482
    %v2524 = vmul.f32 %v2411, %v2487
    %v2525 = vmul.f32 %v2412, %v2492
    %v2526 = vmul.f32 %v2413, %v2497
    %v2527 = vmul.f32 %v2414, %v2502
    %v2528 = vmul.f32 %v2415, %v2507
    %v2529 = vmul.f32 %v2416, %v2512
    %s2530 = scalar_lea.vmem %s3, 192
    %v2531 = vld [vmem:[%s2530] sm:$0xff]
    %v2532 = vld [vmem:[%s2530 + $0x8] sm:$0xff]
    %v2533 = vld [vmem:[%s2530 + $0x10] sm:$0xff]
    %v2534 = vld [vmem:[%s2530 + $0x18] sm:$0xff]
    %v2535 = vld [vmem:[#allocation3 + $0x18] sm:$0xff]
    %v2536 = vld [vmem:[#allocation3 + $0x20] sm:$0xff]
    %v2537 = vld [vmem:[#allocation3 + $0x28] sm:$0xff]
    %v2538 = vld [vmem:[#allocation3 + $0x30] sm:$0xff]
    %v2539 = vld [vmem:[#allocation3 + $0x38] sm:$0xff]
    %v2540 = vld [vmem:[#allocation3 + $0x40] sm:$0xff]
    %v2541 = vld [vmem:[#allocation3 + $0x48] sm:$0xff]
    %v2542 = vld [vmem:[#allocation3 + $0x50] sm:$0xff]
    %v2543 = vld [vmem:[#allocation3 + $0x58] sm:$0xff]
    %v2544 = vld [vmem:[#allocation3 + $0x60] sm:$0xff]
    %v2545 = vld [vmem:[#allocation3 + $0x68] sm:$0xff]
    %v2546 = vld [vmem:[#allocation3 + $0x70] sm:$0xff]
    %v2547 = vld [vmem:[#allocation3 + $0x78] sm:$0xff]
    %v2548 = vld [vmem:[#allocation3 + $0x80] sm:$0xff]
    %v2549 = vld [vmem:[#allocation3 + $0x88] sm:$0xff]
    %v2550 = vld [vmem:[#allocation3 + $0x90] sm:$0xff]
    %s2551 = scalar_lea.vmem %s5, 896
    %v2552 = vld [vmem:[%s2551] sm:$0xff]
    %v2553 = vld [vmem:[%s2551 + $0x8] sm:$0xff]
    %v2554 = vld [vmem:[%s2551 + $0x10] sm:$0xff]
    %v2555 = vld [vmem:[%s2551 + $0x18] sm:$0xff]
    %v2556 = vld [vmem:[%s2551 + $0x20] sm:$0xff]
    %v2557 = vld [vmem:[%s2551 + $0x28] sm:$0xff]
    %v2558 = vld [vmem:[%s2551 + $0x30] sm:$0xff]
    %v2559 = vld [vmem:[%s2551 + $0x38] sm:$0xff]
    %v2560 = vld [vmem:[%s2551 + $0x40] sm:$0xff]
    %v2561 = vld [vmem:[%s2551 + $0x48] sm:$0xff]
    %v2562 = vld [vmem:[%s2551 + $0x50] sm:$0xff]
    %v2563 = vld [vmem:[%s2551 + $0x58] sm:$0xff]
    %v2564 = vld [vmem:[%s2551 + $0x60] sm:$0xff]
    %v2565 = vld [vmem:[%s2551 + $0x68] sm:$0xff]
    %v2566 = vld [vmem:[%s2551 + $0x70] sm:$0xff]
    %v2567 = vld [vmem:[%s2551 + $0x78] sm:$0xff]
    %2569 = vset.pattern.permute.xlu0 0
    %2570 = vperm.xlu0 %2569, %v2552
    %v2571 = vpop.permute.xlu0 %2570
    %2574 = vset.pattern.permute.xlu0 0
    %2575 = vperm.xlu0 %2574, %v2553
    %v2576 = vpop.permute.xlu0 %2575
    %2579 = vset.pattern.permute.xlu0 0
    %2580 = vperm.xlu0 %2579, %v2554
    %v2581 = vpop.permute.xlu0 %2580
    %2584 = vset.pattern.permute.xlu0 0
    %2585 = vperm.xlu0 %2584, %v2555
    %v2586 = vpop.permute.xlu0 %2585
    %2589 = vset.pattern.permute.xlu0 0
    %2590 = vperm.xlu0 %2589, %v2556
    %v2591 = vpop.permute.xlu0 %2590
    %2594 = vset.pattern.permute.xlu0 0
    %2595 = vperm.xlu0 %2594, %v2557
    %v2596 = vpop.permute.xlu0 %2595
    %2599 = vset.pattern.permute.xlu0 0
    %2600 = vperm.xlu0 %2599, %v2558
    %v2601 = vpop.permute.xlu0 %2600
    %2604 = vset.pattern.permute.xlu0 0
    %2605 = vperm.xlu0 %2604, %v2559
    %v2606 = vpop.permute.xlu0 %2605
    %2609 = vset.pattern.permute.xlu0 0
    %2610 = vperm.xlu0 %2609, %v2560
    %v2611 = vpop.permute.xlu0 %2610
    %2614 = vset.pattern.permute.xlu0 0
    %2615 = vperm.xlu0 %2614, %v2561
    %v2616 = vpop.permute.xlu0 %2615
    %2619 = vset.pattern.permute.xlu0 0
    %2620 = vperm.xlu0 %2619, %v2562
    %v2621 = vpop.permute.xlu0 %2620
    %2624 = vset.pattern.permute.xlu0 0
    %2625 = vperm.xlu0 %2624, %v2563
    %v2626 = vpop.permute.xlu0 %2625
    %2629 = vset.pattern.permute.xlu0 0
    %2630 = vperm.xlu0 %2629, %v2564
    %v2631 = vpop.permute.xlu0 %2630
    %2634 = vset.pattern.permute.xlu0 0
    %2635 = vperm.xlu0 %2634, %v2565
    %v2636 = vpop.permute.xlu0 %2635
    %2639 = vset.pattern.permute.xlu0 0
    %2640 = vperm.xlu0 %2639, %v2566
    %v2641 = vpop.permute.xlu0 %2640
    %2644 = vset.pattern.permute.xlu0 0
    %2645 = vperm.xlu0 %2644, %v2567
    %v2646 = vpop.permute.xlu0 %2645
    %v2648 = vmul.f32 %v2535, %v2571
    %v2649 = vmul.f32 %v2536, %v2576
    %v2650 = vmul.f32 %v2537, %v2581
    %v2651 = vmul.f32 %v2538, %v2586
    %v2652 = vmul.f32 %v2539, %v2591
    %v2653 = vmul.f32 %v2540, %v2596
    %v2654 = vmul.f32 %v2541, %v2601
    %v2655 = vmul.f32 %v2542, %v2606
    %v2656 = vmul.f32 %v2543, %v2611
    %v2657 = vmul.f32 %v2544, %v2616
    %v2658 = vmul.f32 %v2545, %v2621
    %v2659 = vmul.f32 %v2546, %v2626
    %v2660 = vmul.f32 %v2547, %v2631
    %v2661 = vmul.f32 %v2548, %v2636
    %v2662 = vmul.f32 %v2549, %v2641
    %v2663 = vmul.f32 %v2550, %v2646
    %s2664 = scalar_lea.vmem %s3, 224
    %v2665 = vld [vmem:[%s2664] sm:$0xff]
    %v2666 = vld [vmem:[%s2664 + $0x8] sm:$0xff]
    %v2667 = vld [vmem:[%s2664 + $0x10] sm:$0xff]
    %v2668 = vld [vmem:[%s2664 + $0x18] sm:$0xff]
    %v2670 = vsel %vm999, %v2648, 0
    %v2673 = vsel %vm999, %v2649, 0
    %v2676 = vsel %vm999, %v2650, 0
    %v2679 = vsel %vm999, %v2651, 0
    %v2682 = vsel %vm999, %v2652, 0
    %v2685 = vsel %vm999, %v2653, 0
    %v2688 = vsel %vm999, %v2654, 0
    %v2691 = vsel %vm999, %v2655, 0
    %v2694 = vsel %vm999, %v2656, 0
    %v2697 = vsel %vm999, %v2657, 0
    %v2700 = vsel %vm999, %v2658, 0
    %v2703 = vsel %vm999, %v2659, 0
    %v2706 = vsel %vm999, %v2660, 0
    %v2709 = vsel %vm999, %v2661, 0
    %v2712 = vsel %vm999, %v2662, 0
    %v2715 = vsel %vm999, %v2663, 0
    %2717 = vmatprep.subr.mxu0 0.0
    %2718 = vmatpush1.msra.mxu0 %v2665
    %2719 = vmatprep.subr.mxu0 0.0
    %2720 = vmatpush1.msra.mxu0 %v2666
    %2721 = vmatprep.subr.mxu0 0.0
    %2722 = vmatpush1.msra.mxu0 %v2667
    %2723 = vmatprep.subr.mxu0 0.0
    %2724 = vmatpush1.msra.mxu0 %v2668
    %2725 = vmatprep.subr.mxu0 0.0
    %2726 = vmatpush1.msra.mxu0 0.0
    %2727 = vmatprep.subr.mxu0 0.0
    %2728 = vmatpush1.msra.mxu0 0.0
    %2729 = vmatprep.subr.mxu0 0.0
    %2730 = vmatpush1.msra.mxu0 0.0
    %2731 = vmatprep.subr.mxu0 0.0
    %2732 = vmatpush1.msra.mxu0 0.0
    %2733 = vmatprep.subr.mxu0 0.0
    %2734 = vmatpush1.msra.mxu0 0.0
    %2735 = vmatprep.subr.mxu0 0.0
    %2736 = vmatpush1.msra.mxu0 0.0
    %2737 = vmatprep.subr.mxu0 0.0
    %2738 = vmatpush1.msra.mxu0 0.0
    %2739 = vmatprep.subr.mxu0 0.0
    %2740 = vmatpush1.msra.mxu0 0.0
    %2741 = vmatprep.subr.mxu0 0.0
    %2742 = vmatpush1.msra.mxu0 0.0
    %2743 = vmatprep.subr.mxu0 0.0
    %2744 = vmatpush1.msra.mxu0 0.0
    %2745 = vmatprep.subr.mxu0 0.0
    %2746 = vmatpush1.msra.mxu0 0.0
    %2747 = vmatprep.subr.mxu0 0.0
    %2748 = vmatpush1.msra.mxu0 0.0
    %2749 = vmatprep.subr.mxu0 0.0
    %2750 = vmatpush1.msra.mxu0 0.0
    %2751 = vmatprep.subr.mxu0 0.0
    %2752 = vmatpush1.msra.mxu0 0.0
    %2753 = vmatprep.subr.mxu0 0.0
    %2754 = vmatpush1.msra.mxu0 0.0
    %2755 = vmatprep.subr.mxu0 0.0
    %2756 = vmatpush1.msra.mxu0 0.0
    %2757 = vmatprep.subr.mxu0 0.0
    %2758 = vmatpush1.msra.mxu0 0.0
    %2759 = vmatprep.subr.mxu0 0.0
    %2760 = vmatpush1.msra.mxu0 0.0
    %2761 = vmatprep.subr.mxu0 0.0
    %2762 = vmatpush1.msra.mxu0 0.0
    %2763 = vmatprep.subr.mxu0 0.0
    %2764 = vmatpush1.msra.mxu0 0.0
    %2765 = vmatprep.subr.mxu0 0.0
    %2766 = vmatpush1.msra.mxu0 0.0
    %2767 = vmatprep.subr.mxu0 0.0
    %2768 = vmatpush1.msra.mxu0 0.0
    %2769 = vmatprep.subr.mxu0 0.0
    %2770 = vmatpush1.msra.mxu0 0.0
    %2771 = vmatprep.subr.mxu0 0.0
    %2772 = vmatpush1.msra.mxu0 0.0
    %2773 = vmatprep.subr.mxu0 0.0
    %2774 = vmatpush1.msra.mxu0 0.0
    %2775 = vmatprep.subr.mxu0 0.0
    %2776 = vmatpush1.msra.mxu0 0.0
    %2777 = vmatprep.subr.mxu0 0.0
    %2778 = vmatpush1.msra.mxu0 0.0
    %2779 = vmatprep.subr.mxu0 0.0
    %2780 = vmatpush1.msra.mxu0 0.0
    %2781 = vmatprep.mubr.f32.mxu0 0.0
    %2782 = vmatmul.mubr.f32.gmra.mrb[0].mxu0 %v2670
    %v2783 = vpop.f32.mrb[0].mxu0
    %v2784 = vadd.f32 0.0, %v2783
    %v2785 = vpop.f32.mrb[0].mxu0
    %2786 = vmatprep.mubr.f32.mxu0 0.0
    %2787 = vmatmul.mubr.f32.gmra.mrb[0].mxu0 %v2673
    %v2788 = vpop.f32.mrb[0].mxu0
    %v2789 = vadd.f32 0.0, %v2788
    %v2790 = vpop.f32.mrb[0].mxu0
    %2791 = vmatprep.mubr.f32.mxu0 0.0
    %2792 = vmatmul.mubr.f32.gmra.mrb[0].mxu0 %v2676
    %v2793 = vpop.f32.mrb[0].mxu0
    %v2794 = vadd.f32 0.0, %v2793
    %v2795 = vpop.f32.mrb[0].mxu0
    %2796 = vmatprep.mubr.f32.mxu0 0.0
    %2797 = vmatmul.mubr.f32.gmra.mrb[0].mxu0 %v2679
    %v2798 = vpop.f32.mrb[0].mxu0
    %v2799 = vadd.f32 0.0, %v2798
    %v2800 = vpop.f32.mrb[0].mxu0
    %2801 = vmatprep.mubr.f32.mxu0 0.0
    %2802 = vmatmul.mubr.f32.gmra.mrb[0].mxu0 %v2682
    %v2803 = vpop.f32.mrb[0].mxu0
    %v2804 = vadd.f32 0.0, %v2803
    %v2805 = vpop.f32.mrb[0].mxu0
    %2806 = vmatprep.mubr.f32.mxu0 0.0
    %2807 = vmatmul.mubr.f32.gmra.mrb[0].mxu0 %v2685
    %v2808 = vpop.f32.mrb[0].mxu0
    %v2809 = vadd.f32 0.0, %v2808
    %v2810 = vpop.f32.mrb[0].mxu0
    %2811 = vmatprep.mubr.f32.mxu0 0.0
    %2812 = vmatmul.mubr.f32.gmra.mrb[0].mxu0 %v2688
    %v2813 = vpop.f32.mrb[0].mxu0
    %v2814 = vadd.f32 0.0, %v2813
    %v2815 = vpop.f32.mrb[0].mxu0
    %2816 = vmatprep.mubr.f32.mxu0 0.0
    %2817 = vmatmul.mubr.f32.gmra.mrb[0].mxu0 %v2691
    %v2818 = vpop.f32.mrb[0].mxu0
    %v2819 = vadd.f32 0.0, %v2818
    %v2820 = vpop.f32.mrb[0].mxu0
    %2821 = vmatprep.mubr.f32.mxu0 0.0
    %2822 = vmatmul.mubr.f32.gmra.mrb[0].mxu0 %v2694
    %v2823 = vpop.f32.mrb[0].mxu0
    %v2824 = vadd.f32 0.0, %v2823
    %v2825 = vpop.f32.mrb[0].mxu0
    %2826 = vmatprep.mubr.f32.mxu0 0.0
    %2827 = vmatmul.mubr.f32.gmra.mrb[0].mxu0 %v2697
    %v2828 = vpop.f32.mrb[0].mxu0
    %v2829 = vadd.f32 0.0, %v2828
    %v2830 = vpop.f32.mrb[0].mxu0
    %2831 = vmatprep.mubr.f32.mxu0 0.0
    %2832 = vmatmul.mubr.f32.gmra.mrb[0].mxu0 %v2700
    %v2833 = vpop.f32.mrb[0].mxu0
    %v2834 = vadd.f32 0.0, %v2833
    %v2835 = vpop.f32.mrb[0].mxu0
    %2836 = vmatprep.mubr.f32.mxu0 0.0
    %2837 = vmatmul.mubr.f32.gmra.mrb[0].mxu0 %v2703
    %v2838 = vpop.f32.mrb[0].mxu0
    %v2839 = vadd.f32 0.0, %v2838
    %v2840 = vpop.f32.mrb[0].mxu0
    %2841 = vmatprep.mubr.f32.mxu0 0.0
    %2842 = vmatmul.mubr.f32.gmra.mrb[0].mxu0 %v2706
    %v2843 = vpop.f32.mrb[0].mxu0
    %v2844 = vadd.f32 0.0, %v2843
    %v2845 = vpop.f32.mrb[0].mxu0
    %2846 = vmatprep.mubr.f32.mxu0 0.0
    %2847 = vmatmul.mubr.f32.gmra.mrb[0].mxu0 %v2709
    %v2848 = vpop.f32.mrb[0].mxu0
    %v2849 = vadd.f32 0.0, %v2848
    %v2850 = vpop.f32.mrb[0].mxu0
    %2851 = vmatprep.mubr.f32.mxu0 0.0
    %2852 = vmatmul.mubr.f32.gmra.mrb[0].mxu0 %v2712
    %v2853 = vpop.f32.mrb[0].mxu0
    %v2854 = vadd.f32 0.0, %v2853
    %v2855 = vpop.f32.mrb[0].mxu0
    %2856 = vmatprep.mubr.f32.mxu0 0.0
    %2857 = vmatmul.mubr.f32.gmra.mrb[0].mxu0 %v2715
    %v2858 = vpop.f32.mrb[0].mxu0
    %v2859 = vadd.f32 0.0, %v2858
    %v2860 = vpop.f32.mrb[0].mxu0
    %2861 = vdwg.mxu0
    %v2862 = vld [vmem:[#allocation3 + $0x19] sm:$0xff]
    %v2863 = vld [vmem:[#allocation3 + $0x21] sm:$0xff]
    %v2864 = vld [vmem:[#allocation3 + $0x29] sm:$0xff]
    %v2865 = vld [vmem:[#allocation3 + $0x31] sm:$0xff]
    %v2866 = vld [vmem:[#allocation3 + $0x39] sm:$0xff]
    %v2867 = vld [vmem:[#allocation3 + $0x41] sm:$0xff]
    %v2868 = vld [vmem:[#allocation3 + $0x49] sm:$0xff]
    %v2869 = vld [vmem:[#allocation3 + $0x51] sm:$0xff]
    %v2870 = vld [vmem:[#allocation3 + $0x59] sm:$0xff]
    %v2871 = vld [vmem:[#allocation3 + $0x61] sm:$0xff]
    %v2872 = vld [vmem:[#allocation3 + $0x69] sm:$0xff]
    %v2873 = vld [vmem:[#allocation3 + $0x71] sm:$0xff]
    %v2874 = vld [vmem:[#allocation3 + $0x79] sm:$0xff]
    %v2875 = vld [vmem:[#allocation3 + $0x81] sm:$0xff]
    %v2876 = vld [vmem:[#allocation3 + $0x89] sm:$0xff]
    %v2877 = vld [vmem:[#allocation3 + $0x91] sm:$0xff]
    %s2878 = scalar_lea.vmem %s5, 1024
    %v2879 = vld [vmem:[%s2878] sm:$0xff]
    %v2880 = vld [vmem:[%s2878 + $0x8] sm:$0xff]
    %v2881 = vld [vmem:[%s2878 + $0x10] sm:$0xff]
    %v2882 = vld [vmem:[%s2878 + $0x18] sm:$0xff]
    %v2883 = vld [vmem:[%s2878 + $0x20] sm:$0xff]
    %v2884 = vld [vmem:[%s2878 + $0x28] sm:$0xff]
    %v2885 = vld [vmem:[%s2878 + $0x30] sm:$0xff]
    %v2886 = vld [vmem:[%s2878 + $0x38] sm:$0xff]
    %v2887 = vld [vmem:[%s2878 + $0x40] sm:$0xff]
    %v2888 = vld [vmem:[%s2878 + $0x48] sm:$0xff]
    %v2889 = vld [vmem:[%s2878 + $0x50] sm:$0xff]
    %v2890 = vld [vmem:[%s2878 + $0x58] sm:$0xff]
    %v2891 = vld [vmem:[%s2878 + $0x60] sm:$0xff]
    %v2892 = vld [vmem:[%s2878 + $0x68] sm:$0xff]
    %v2893 = vld [vmem:[%s2878 + $0x70] sm:$0xff]
    %v2894 = vld [vmem:[%s2878 + $0x78] sm:$0xff]
    %2896 = vset.pattern.permute.xlu0 0
    %2897 = vperm.xlu0 %2896, %v2879
    %v2898 = vpop.permute.xlu0 %2897
    %2901 = vset.pattern.permute.xlu0 0
    %2902 = vperm.xlu0 %2901, %v2880
    %v2903 = vpop.permute.xlu0 %2902
    %2906 = vset.pattern.permute.xlu0 0
    %2907 = vperm.xlu0 %2906, %v2881
    %v2908 = vpop.permute.xlu0 %2907
    %2911 = vset.pattern.permute.xlu0 0
    %2912 = vperm.xlu0 %2911, %v2882
    %v2913 = vpop.permute.xlu0 %2912
    %2916 = vset.pattern.permute.xlu0 0
    %2917 = vperm.xlu0 %2916, %v2883
    %v2918 = vpop.permute.xlu0 %2917
    %2921 = vset.pattern.permute.xlu0 0
    %2922 = vperm.xlu0 %2921, %v2884
    %v2923 = vpop.permute.xlu0 %2922
    %2926 = vset.pattern.permute.xlu0 0
    %2927 = vperm.xlu0 %2926, %v2885
    %v2928 = vpop.permute.xlu0 %2927
    %2931 = vset.pattern.permute.xlu0 0
    %2932 = vperm.xlu0 %2931, %v2886
    %v2933 = vpop.permute.xlu0 %2932
    %2936 = vset.pattern.permute.xlu0 0
    %2937 = vperm.xlu0 %2936, %v2887
    %v2938 = vpop.permute.xlu0 %2937
    %2941 = vset.pattern.permute.xlu0 0
    %2942 = vperm.xlu0 %2941, %v2888
    %v2943 = vpop.permute.xlu0 %2942
    %2946 = vset.pattern.permute.xlu0 0
    %2947 = vperm.xlu0 %2946, %v2889
    %v2948 = vpop.permute.xlu0 %2947
    %2951 = vset.pattern.permute.xlu0 0
    %2952 = vperm.xlu0 %2951, %v2890
    %v2953 = vpop.permute.xlu0 %2952
    %2956 = vset.pattern.permute.xlu0 0
    %2957 = vperm.xlu0 %2956, %v2891
    %v2958 = vpop.permute.xlu0 %2957
    %2961 = vset.pattern.permute.xlu0 0
    %2962 = vperm.xlu0 %2961, %v2892
    %v2963 = vpop.permute.xlu0 %2962
    %2966 = vset.pattern.permute.xlu0 0
    %2967 = vperm.xlu0 %2966, %v2893
    %v2968 = vpop.permute.xlu0 %2967
    %2971 = vset.pattern.permute.xlu0 0
    %2972 = vperm.xlu0 %2971, %v2894
    %v2973 = vpop.permute.xlu0 %2972
    %v2975 = vmul.f32 %v2862, %v2898
    %v2976 = vmul.f32 %v2863, %v2903
    %v2977 = vmul.f32 %v2864, %v2908
    %v2978 = vmul.f32 %v2865, %v2913
    %v2979 = vmul.f32 %v2866, %v2918
    %v2980 = vmul.f32 %v2867, %v2923
    %v2981 = vmul.f32 %v2868, %v2928
    %v2982 = vmul.f32 %v2869, %v2933
    %v2983 = vmul.f32 %v2870, %v2938
    %v2984 = vmul.f32 %v2871, %v2943
    %v2985 = vmul.f32 %v2872, %v2948
    %v2986 = vmul.f32 %v2873, %v2953
    %v2987 = vmul.f32 %v2874, %v2958
    %v2988 = vmul.f32 %v2875, %v2963
    %v2989 = vmul.f32 %v2876, %v2968
    %v2990 = vmul.f32 %v2877, %v2973
    %s2991 = scalar_lea.vmem %s3, 256
    %v2992 = vld [vmem:[%s2991] sm:$0xff]
    %v2993 = vld [vmem:[%s2991 + $0x8] sm:$0xff]
    %v2994 = vld [vmem:[%s2991 + $0x10] sm:$0xff]
    %v2995 = vld [vmem:[%s2991 + $0x18] sm:$0xff]
    %v2997 = vsel %vm999, %v2975, 0
    %v3000 = vsel %vm999, %v2976, 0
    %v3003 = vsel %vm999, %v2977, 0
    %v3006 = vsel %vm999, %v2978, 0
    %v3009 = vsel %vm999, %v2979, 0
    %v3012 = vsel %vm999, %v2980, 0
    %v3015 = vsel %vm999, %v2981, 0
    %v3018 = vsel %vm999, %v2982, 0
    %v3021 = vsel %vm999, %v2983, 0
    %v3024 = vsel %vm999, %v2984, 0
    %v3027 = vsel %vm999, %v2985, 0
    %v3030 = vsel %vm999, %v2986, 0
    %v3033 = vsel %vm999, %v2987, 0
    %v3036 = vsel %vm999, %v2988, 0
    %v3039 = vsel %vm999, %v2989, 0
    %v3042 = vsel %vm999, %v2990, 0
    %3044 = vmatprep.subr.mxu0 0.0
    %3045 = vmatpush1.msra.mxu0 %v2992
    %3046 = vmatprep.subr.mxu0 0.0
    %3047 = vmatpush1.msra.mxu0 %v2993
    %3048 = vmatprep.subr.mxu0 0.0
    %3049 = vmatpush1.msra.mxu0 %v2994
    %3050 = vmatprep.subr.mxu0 0.0
    %3051 = vmatpush1.msra.mxu0 %v2995
    %3052 = vmatprep.subr.mxu0 0.0
    %3053 = vmatpush1.msra.mxu0 0.0
    %3054 = vmatprep.subr.mxu0 0.0
    %3055 = vmatpush1.msra.mxu0 0.0
    %3056 = vmatprep.subr.mxu0 0.0
    %3057 = vmatpush1.msra.mxu0 0.0
    %3058 = vmatprep.subr.mxu0 0.0
    %3059 = vmatpush1.msra.mxu0 0.0
    %3060 = vmatprep.subr.mxu0 0.0
    %3061 = vmatpush1.msra.mxu0 0.0
    %3062 = vmatprep.subr.mxu0 0.0
    %3063 = vmatpush1.msra.mxu0 0.0
    %3064 = vmatprep.subr.mxu0 0.0
    %3065 = vmatpush1.msra.mxu0 0.0
    %3066 = vmatprep.subr.mxu0 0.0
    %3067 = vmatpush1.msra.mxu0 0.0
    %3068 = vmatprep.subr.mxu0 0.0
    %3069 = vmatpush1.msra.mxu0 0.0
    %3070 = vmatprep.subr.mxu0 0.0
    %3071 = vmatpush1.msra.mxu0 0.0
    %3072 = vmatprep.subr.mxu0 0.0
    %3073 = vmatpush1.msra.mxu0 0.0
    %3074 = vmatprep.subr.mxu0 0.0
    %3075 = vmatpush1.msra.mxu0 0.0
    %3076 = vmatprep.subr.mxu0 0.0
    %3077 = vmatpush1.msra.mxu0 0.0
    %3078 = vmatprep.subr.mxu0 0.0
    %3079 = vmatpush1.msra.mxu0 0.0
    %3080 = vmatprep.subr.mxu0 0.0
    %3081 = vmatpush1.msra.mxu0 0.0
    %3082 = vmatprep.subr.mxu0 0.0
    %3083 = vmatpush1.msra.mxu0 0.0
    %3084 = vmatprep.subr.mxu0 0.0
    %3085 = vmatpush1.msra.mxu0 0.0
    %3086 = vmatprep.subr.mxu0 0.0
    %3087 = vmatpush1.msra.mxu0 0.0
    %3088 = vmatprep.subr.mxu0 0.0
    %3089 = vmatpush1.msra.mxu0 0.0
    %3090 = vmatprep.subr.mxu0 0.0
    %3091 = vmatpush1.msra.mxu0 0.0
    %3092 = vmatprep.subr.mxu0 0.0
    %3093 = vmatpush1.msra.mxu0 0.0
    %3094 = vmatprep.subr.mxu0 0.0
    %3095 = vmatpush1.msra.mxu0 0.0
    %3096 = vmatprep.subr.mxu0 0.0
    %3097 = vmatpush1.msra.mxu0 0.0
    %3098 = vmatprep.subr.mxu0 0.0
    %3099 = vmatpush1.msra.mxu0 0.0
    %3100 = vmatprep.subr.mxu0 0.0
    %3101 = vmatpush1.msra.mxu0 0.0
    %3102 = vmatprep.subr.mxu0 0.0
    %3103 = vmatpush1.msra.mxu0 0.0
    %3104 = vmatprep.subr.mxu0 0.0
    %3105 = vmatpush1.msra.mxu0 0.0
    %3106 = vmatprep.subr.mxu0 0.0
    %3107 = vmatpush1.msra.mxu0 0.0
    %3108 = vmatprep.mubr.f32.mxu0 0.0
    %3109 = vmatmul.mubr.f32.gmra.mrb[0].mxu0 %v2997
    %v3110 = vpop.f32.mrb[0].mxu0
    %v3111 = vadd.f32 0.0, %v3110
    %v3112 = vpop.f32.mrb[0].mxu0
    %3113 = vmatprep.mubr.f32.mxu0 0.0
    %3114 = vmatmul.mubr.f32.gmra.mrb[0].mxu0 %v3000
    %v3115 = vpop.f32.mrb[0].mxu0
    %v3116 = vadd.f32 0.0, %v3115
    %v3117 = vpop.f32.mrb[0].mxu0
    %3118 = vmatprep.mubr.f32.mxu0 0.0
    %3119 = vmatmul.mubr.f32.gmra.mrb[0].mxu0 %v3003
    %v3120 = vpop.f32.mrb[0].mxu0
    %v3121 = vadd.f32 0.0, %v3120
    %v3122 = vpop.f32.mrb[0].mxu0
    %3123 = vmatprep.mubr.f32.mxu0 0.0
    %3124 = vmatmul.mubr.f32.gmra.mrb[0].mxu0 %v3006
    %v3125 = vpop.f32.mrb[0].mxu0
    %v3126 = vadd.f32 0.0, %v3125
    %v3127 = vpop.f32.mrb[0].mxu0
    %3128 = vmatprep.mubr.f32.mxu0 0.0
    %3129 = vmatmul.mubr.f32.gmra.mrb[0].mxu0 %v3009
    %v3130 = vpop.f32.mrb[0].mxu0
    %v3131 = vadd.f32 0.0, %v3130
    %v3132 = vpop.f32.mrb[0].mxu0
    %3133 = vmatprep.mubr.f32.mxu0 0.0
    %3134 = vmatmul.mubr.f32.gmra.mrb[0].mxu0 %v3012
    %v3135 = vpop.f32.mrb[0].mxu0
    %v3136 = vadd.f32 0.0, %v3135
    %v3137 = vpop.f32.mrb[0].mxu0
    %3138 = vmatprep.mubr.f32.mxu0 0.0
    %3139 = vmatmul.mubr.f32.gmra.mrb[0].mxu0 %v3015
    %v3140 = vpop.f32.mrb[0].mxu0
    %v3141 = vadd.f32 0.0, %v3140
    %v3142 = vpop.f32.mrb[0].mxu0
    %3143 = vmatprep.mubr.f32.mxu0 0.0
    %3144 = vmatmul.mubr.f32.gmra.mrb[0].mxu0 %v3018
    %v3145 = vpop.f32.mrb[0].mxu0
    %v3146 = vadd.f32 0.0, %v3145
    %v3147 = vpop.f32.mrb[0].mxu0
    %3148 = vmatprep.mubr.f32.mxu0 0.0
    %3149 = vmatmul.mubr.f32.gmra.mrb[0].mxu0 %v3021
    %v3150 = vpop.f32.mrb[0].mxu0
    %v3151 = vadd.f32 0.0, %v3150
    %v3152 = vpop.f32.mrb[0].mxu0
    %3153 = vmatprep.mubr.f32.mxu0 0.0
    %3154 = vmatmul.mubr.f32.gmra.mrb[0].mxu0 %v3024
    %v3155 = vpop.f32.mrb[0].mxu0
    %v3156 = vadd.f32 0.0, %v3155
    %v3157 = vpop.f32.mrb[0].mxu0
    %3158 = vmatprep.mubr.f32.mxu0 0.0
    %3159 = vmatmul.mubr.f32.gmra.mrb[0].mxu0 %v3027
    %v3160 = vpop.f32.mrb[0].mxu0
    %v3161 = vadd.f32 0.0, %v3160
    %v3162 = vpop.f32.mrb[0].mxu0
    %3163 = vmatprep.mubr.f32.mxu0 0.0
    %3164 = vmatmul.mubr.f32.gmra.mrb[0].mxu0 %v3030
    %v3165 = vpop.f32.mrb[0].mxu0
    %v3166 = vadd.f32 0.0, %v3165
    %v3167 = vpop.f32.mrb[0].mxu0
    %3168 = vmatprep.mubr.f32.mxu0 0.0
    %3169 = vmatmul.mubr.f32.gmra.mrb[0].mxu0 %v3033
    %v3170 = vpop.f32.mrb[0].mxu0
    %v3171 = vadd.f32 0.0, %v3170
    %v3172 = vpop.f32.mrb[0].mxu0
    %3173 = vmatprep.mubr.f32.mxu0 0.0
    %3174 = vmatmul.mubr.f32.gmra.mrb[0].mxu0 %v3036
    %v3175 = vpop.f32.mrb[0].mxu0
    %v3176 = vadd.f32 0.0, %v3175
    %v3177 = vpop.f32.mrb[0].mxu0
    %3178 = vmatprep.mubr.f32.mxu0 0.0
    %3179 = vmatmul.mubr.f32.gmra.mrb[0].mxu0 %v3039
    %v3180 = vpop.f32.mrb[0].mxu0
    %v3181 = vadd.f32 0.0, %v3180
    %v3182 = vpop.f32.mrb[0].mxu0
    %3183 = vmatprep.mubr.f32.mxu0 0.0
    %3184 = vmatmul.mubr.f32.gmra.mrb[0].mxu0 %v3042
    %v3185 = vpop.f32.mrb[0].mxu0
    %v3186 = vadd.f32 0.0, %v3185
    %v3187 = vpop.f32.mrb[0].mxu0
    %3188 = vdwg.mxu0
    %v3190 = vsel %vm999, %v1132, 0
    %v3193 = vsel %vm999, %v1133, 0
    %v3196 = vsel %vm999, %v1134, 0
    %v3199 = vsel %vm999, %v1135, 0
    %v3202 = vsel %vm999, %v1136, 0
    %v3205 = vsel %vm999, %v1137, 0
    %v3208 = vsel %vm999, %v1138, 0
    %v3211 = vsel %vm999, %v1139, 0
    %v3214 = vsel %vm999, %v1140, 0
    %v3217 = vsel %vm999, %v1141, 0
    %v3220 = vsel %vm999, %v1142, 0
    %v3223 = vsel %vm999, %v1143, 0
    %v3226 = vsel %vm999, %v1144, 0
    %v3229 = vsel %vm999, %v1145, 0
    %v3232 = vsel %vm999, %v1146, 0
    %v3235 = vsel %vm999, %v1147, 0
    %3237 = vmatprep.subr.mxu0 0.0
    %3238 = vmatpush1.msra.mxu0 %v1148
    %3239 = vmatprep.subr.mxu0 0.0
    %3240 = vmatpush1.msra.mxu0 %v1149
    %3241 = vmatprep.subr.mxu0 0.0
    %3242 = vmatpush1.msra.mxu0 %v1150
    %3243 = vmatprep.subr.mxu0 0.0
    %3244 = vmatpush1.msra.mxu0 %v1151
    %3245 = vmatprep.subr.mxu0 0.0
    %3246 = vmatpush1.msra.mxu0 0.0
    %3247 = vmatprep.subr.mxu0 0.0
    %3248 = vmatpush1.msra.mxu0 0.0
    %3249 = vmatprep.subr.mxu0 0.0
    %3250 = vmatpush1.msra.mxu0 0.0
    %3251 = vmatprep.subr.mxu0 0.0
    %3252 = vmatpush1.msra.mxu0 0.0
    %3253 = vmatprep.subr.mxu0 0.0
    %3254 = vmatpush1.msra.mxu0 0.0
    %3255 = vmatprep.subr.mxu0 0.0
    %3256 = vmatpush1.msra.mxu0 0.0
    %3257 = vmatprep.subr.mxu0 0.0
    %3258 = vmatpush1.msra.mxu0 0.0
    %3259 = vmatprep.subr.mxu0 0.0
    %3260 = vmatpush1.msra.mxu0 0.0
    %3261 = vmatprep.subr.mxu0 0.0
    %3262 = vmatpush1.msra.mxu0 0.0
    %3263 = vmatprep.subr.mxu0 0.0
    %3264 = vmatpush1.msra.mxu0 0.0
    %3265 = vmatprep.subr.mxu0 0.0
    %3266 = vmatpush1.msra.mxu0 0.0
    %3267 = vmatprep.subr.mxu0 0.0
    %3268 = vmatpush1.msra.mxu0 0.0
    %3269 = vmatprep.subr.mxu0 0.0
    %3270 = vmatpush1.msra.mxu0 0.0
    %3271 = vmatprep.subr.mxu0 0.0
    %3272 = vmatpush1.msra.mxu0 0.0
    %3273 = vmatprep.subr.mxu0 0.0
    %3274 = vmatpush1.msra.mxu0 0.0
    %3275 = vmatprep.subr.mxu0 0.0
    %3276 = vmatpush1.msra.mxu0 0.0
    %3277 = vmatprep.subr.mxu0 0.0
    %3278 = vmatpush1.msra.mxu0 0.0
    %3279 = vmatprep.subr.mxu0 0.0
    %3280 = vmatpush1.msra.mxu0 0.0
    %3281 = vmatprep.subr.mxu0 0.0
    %3282 = vmatpush1.msra.mxu0 0.0
    %3283 = vmatprep.subr.mxu0 0.0
    %3284 = vmatpush1.msra.mxu0 0.0
    %3285 = vmatprep.subr.mxu0 0.0
    %3286 = vmatpush1.msra.mxu0 0.0
    %3287 = vmatprep.subr.mxu0 0.0
    %3288 = vmatpush1.msra.mxu0 0.0
    %3289 = vmatprep.subr.mxu0 0.0
    %3290 = vmatpush1.msra.mxu0 0.0
    %3291 = vmatprep.subr.mxu0 0.0
    %3292 = vmatpush1.msra.mxu0 0.0
    %3293 = vmatprep.subr.mxu0 0.0
    %3294 = vmatpush1.msra.mxu0 0.0
    %3295 = vmatprep.subr.mxu0 0.0
    %3296 = vmatpush1.msra.mxu0 0.0
    %3297 = vmatprep.subr.mxu0 0.0
    %3298 = vmatpush1.msra.mxu0 0.0
    %3299 = vmatprep.subr.mxu0 0.0
    %3300 = vmatpush1.msra.mxu0 0.0
    %3301 = vmatprep.mubr.f32.mxu0 0.0
    %3302 = vmatmul.mubr.f32.gmra.mrb[0].mxu0 %v3190
    %v3303 = vpop.f32.mrb[0].mxu0
    %v3304 = vadd.f32 %v1401, %v3303
    %v3305 = vpop.f32.mrb[0].mxu0
    %3306 = vmatprep.mubr.f32.mxu0 0.0
    %3307 = vmatmul.mubr.f32.gmra.mrb[0].mxu0 %v3193
    %v3308 = vpop.f32.mrb[0].mxu0
    %v3309 = vadd.f32 %v1406, %v3308
    %v3310 = vpop.f32.mrb[0].mxu0
    %3311 = vmatprep.mubr.f32.mxu0 0.0
    %3312 = vmatmul.mubr.f32.gmra.mrb[0].mxu0 %v3196
    %v3313 = vpop.f32.mrb[0].mxu0
    %v3314 = vadd.f32 %v1411, %v3313
    %v3315 = vpop.f32.mrb[0].mxu0
    %3316 = vmatprep.mubr.f32.mxu0 0.0
    %3317 = vmatmul.mubr.f32.gmra.mrb[0].mxu0 %v3199
    %v3318 = vpop.f32.mrb[0].mxu0
    %v3319 = vadd.f32 %v1416, %v3318
    %v3320 = vpop.f32.mrb[0].mxu0
    %3321 = vmatprep.mubr.f32.mxu0 0.0
    %3322 = vmatmul.mubr.f32.gmra.mrb[0].mxu0 %v3202
    %v3323 = vpop.f32.mrb[0].mxu0
    %v3324 = vadd.f32 %v1421, %v3323
    %v3325 = vpop.f32.mrb[0].mxu0
    %3326 = vmatprep.mubr.f32.mxu0 0.0
    %3327 = vmatmul.mubr.f32.gmra.mrb[0].mxu0 %v3205
    %v3328 = vpop.f32.mrb[0].mxu0
    %v3329 = vadd.f32 %v1426, %v3328
    %v3330 = vpop.f32.mrb[0].mxu0
    %3331 = vmatprep.mubr.f32.mxu0 0.0
    %3332 = vmatmul.mubr.f32.gmra.mrb[0].mxu0 %v3208
    %v3333 = vpop.f32.mrb[0].mxu0
    %v3334 = vadd.f32 %v1431, %v3333
    %v3335 = vpop.f32.mrb[0].mxu0
    %3336 = vmatprep.mubr.f32.mxu0 0.0
    %3337 = vmatmul.mubr.f32.gmra.mrb[0].mxu0 %v3211
    %v3338 = vpop.f32.mrb[0].mxu0
    %v3339 = vadd.f32 %v1436, %v3338
    %v3340 = vpop.f32.mrb[0].mxu0
    %3341 = vmatprep.mubr.f32.mxu0 0.0
    %3342 = vmatmul.mubr.f32.gmra.mrb[0].mxu0 %v3214
    %v3343 = vpop.f32.mrb[0].mxu0
    %v3344 = vadd.f32 %v1441, %v3343
    %v3345 = vpop.f32.mrb[0].mxu0
    %3346 = vmatprep.mubr.f32.mxu0 0.0
    %3347 = vmatmul.mubr.f32.gmra.mrb[0].mxu0 %v3217
    %v3348 = vpop.f32.mrb[0].mxu0
    %v3349 = vadd.f32 %v1446, %v3348
    %v3350 = vpop.f32.mrb[0].mxu0
    %3351 = vmatprep.mubr.f32.mxu0 0.0
    %3352 = vmatmul.mubr.f32.gmra.mrb[0].mxu0 %v3220
    %v3353 = vpop.f32.mrb[0].mxu0
    %v3354 = vadd.f32 %v1451, %v3353
    %v3355 = vpop.f32.mrb[0].mxu0
    %3356 = vmatprep.mubr.f32.mxu0 0.0
    %3357 = vmatmul.mubr.f32.gmra.mrb[0].mxu0 %v3223
    %v3358 = vpop.f32.mrb[0].mxu0
    %v3359 = vadd.f32 %v1456, %v3358
    %v3360 = vpop.f32.mrb[0].mxu0
    %3361 = vmatprep.mubr.f32.mxu0 0.0
    %3362 = vmatmul.mubr.f32.gmra.mrb[0].mxu0 %v3226
    %v3363 = vpop.f32.mrb[0].mxu0
    %v3364 = vadd.f32 %v1461, %v3363
    %v3365 = vpop.f32.mrb[0].mxu0
    %3366 = vmatprep.mubr.f32.mxu0 0.0
    %3367 = vmatmul.mubr.f32.gmra.mrb[0].mxu0 %v3229
    %v3368 = vpop.f32.mrb[0].mxu0
    %v3369 = vadd.f32 %v1466, %v3368
    %v3370 = vpop.f32.mrb[0].mxu0
    %3371 = vmatprep.mubr.f32.mxu0 0.0
    %3372 = vmatmul.mubr.f32.gmra.mrb[0].mxu0 %v3232
    %v3373 = vpop.f32.mrb[0].mxu0
    %v3374 = vadd.f32 %v1471, %v3373
    %v3375 = vpop.f32.mrb[0].mxu0
    %3376 = vmatprep.mubr.f32.mxu0 0.0
    %3377 = vmatmul.mubr.f32.gmra.mrb[0].mxu0 %v3235
    %v3378 = vpop.f32.mrb[0].mxu0
    %v3379 = vadd.f32 %v1476, %v3378
    %v3380 = vpop.f32.mrb[0].mxu0
    %3381 = vdwg.mxu0
    %v3383 = vsel %vm999, %v1592, 0
    %v3386 = vsel %vm999, %v1593, 0
    %v3389 = vsel %vm999, %v1594, 0
    %v3392 = vsel %vm999, %v1595, 0
    %v3395 = vsel %vm999, %v1596, 0
    %v3398 = vsel %vm999, %v1597, 0
    %v3401 = vsel %vm999, %v1598, 0
    %v3404 = vsel %vm999, %v1599, 0
    %v3407 = vsel %vm999, %v1600, 0
    %v3410 = vsel %vm999, %v1601, 0
    %v3413 = vsel %vm999, %v1602, 0
    %v3416 = vsel %vm999, %v1603, 0
    %v3419 = vsel %vm999, %v1604, 0
    %v3422 = vsel %vm999, %v1605, 0
    %v3425 = vsel %vm999, %v1606, 0
    %v3428 = vsel %vm999, %v1607, 0
    %3430 = vmatprep.subr.mxu0 0.0
    %3431 = vmatpush1.msra.mxu0 %v1609
    %3432 = vmatprep.subr.mxu0 0.0
    %3433 = vmatpush1.msra.mxu0 %v1610
    %3434 = vmatprep.subr.mxu0 0.0
    %3435 = vmatpush1.msra.mxu0 %v1611
    %3436 = vmatprep.subr.mxu0 0.0
    %3437 = vmatpush1.msra.mxu0 %v1612
    %3438 = vmatprep.subr.mxu0 0.0
    %3439 = vmatpush1.msra.mxu0 0.0
    %3440 = vmatprep.subr.mxu0 0.0
    %3441 = vmatpush1.msra.mxu0 0.0
    %3442 = vmatprep.subr.mxu0 0.0
    %3443 = vmatpush1.msra.mxu0 0.0
    %3444 = vmatprep.subr.mxu0 0.0
    %3445 = vmatpush1.msra.mxu0 0.0
    %3446 = vmatprep.subr.mxu0 0.0
    %3447 = vmatpush1.msra.mxu0 0.0
    %3448 = vmatprep.subr.mxu0 0.0
    %3449 = vmatpush1.msra.mxu0 0.0
    %3450 = vmatprep.subr.mxu0 0.0
    %3451 = vmatpush1.msra.mxu0 0.0
    %3452 = vmatprep.subr.mxu0 0.0
    %3453 = vmatpush1.msra.mxu0 0.0
    %3454 = vmatprep.subr.mxu0 0.0
    %3455 = vmatpush1.msra.mxu0 0.0
    %3456 = vmatprep.subr.mxu0 0.0
    %3457 = vmatpush1.msra.mxu0 0.0
    %3458 = vmatprep.subr.mxu0 0.0
    %3459 = vmatpush1.msra.mxu0 0.0
    %3460 = vmatprep.subr.mxu0 0.0
    %3461 = vmatpush1.msra.mxu0 0.0
    %3462 = vmatprep.subr.mxu0 0.0
    %3463 = vmatpush1.msra.mxu0 0.0
    %3464 = vmatprep.subr.mxu0 0.0
    %3465 = vmatpush1.msra.mxu0 0.0
    %3466 = vmatprep.subr.mxu0 0.0
    %3467 = vmatpush1.msra.mxu0 0.0
    %3468 = vmatprep.subr.mxu0 0.0
    %3469 = vmatpush1.msra.mxu0 0.0
    %3470 = vmatprep.subr.mxu0 0.0
    %3471 = vmatpush1.msra.mxu0 0.0
    %3472 = vmatprep.subr.mxu0 0.0
    %3473 = vmatpush1.msra.mxu0 0.0
    %3474 = vmatprep.subr.mxu0 0.0
    %3475 = vmatpush1.msra.mxu0 0.0
    %3476 = vmatprep.subr.mxu0 0.0
    %3477 = vmatpush1.msra.mxu0 0.0
    %3478 = vmatprep.subr.mxu0 0.0
    %3479 = vmatpush1.msra.mxu0 0.0
    %3480 = vmatprep.subr.mxu0 0.0
    %3481 = vmatpush1.msra.mxu0 0.0
    %3482 = vmatprep.subr.mxu0 0.0
    %3483 = vmatpush1.msra.mxu0 0.0
    %3484 = vmatprep.subr.mxu0 0.0
    %3485 = vmatpush1.msra.mxu0 0.0
    %3486 = vmatprep.subr.mxu0 0.0
    %3487 = vmatpush1.msra.mxu0 0.0
    %3488 = vmatprep.subr.mxu0 0.0
    %3489 = vmatpush1.msra.mxu0 0.0
    %3490 = vmatprep.subr.mxu0 0.0
    %3491 = vmatpush1.msra.mxu0 0.0
    %3492 = vmatprep.subr.mxu0 0.0
    %3493 = vmatpush1.msra.mxu0 0.0
    %3494 = vmatprep.mubr.f32.mxu0 0.0
    %3495 = vmatmul.mubr.f32.gmra.mrb[0].mxu0 %v3383
    %v3496 = vpop.f32.mrb[0].mxu0
    %v3497 = vadd.f32 %v1862, %v3496
    %v3498 = vpop.f32.mrb[0].mxu0
    %3499 = vmatprep.mubr.f32.mxu0 0.0
    %3500 = vmatmul.mubr.f32.gmra.mrb[0].mxu0 %v3386
    %v3501 = vpop.f32.mrb[0].mxu0
    %v3502 = vadd.f32 %v1867, %v3501
    %v3503 = vpop.f32.mrb[0].mxu0
    %3504 = vmatprep.mubr.f32.mxu0 0.0
    %3505 = vmatmul.mubr.f32.gmra.mrb[0].mxu0 %v3389
    %v3506 = vpop.f32.mrb[0].mxu0
    %v3507 = vadd.f32 %v1872, %v3506
    %v3508 = vpop.f32.mrb[0].mxu0
    %3509 = vmatprep.mubr.f32.mxu0 0.0
    %3510 = vmatmul.mubr.f32.gmra.mrb[0].mxu0 %v3392
    %v3511 = vpop.f32.mrb[0].mxu0
    %v3512 = vadd.f32 %v1877, %v3511
    %v3513 = vpop.f32.mrb[0].mxu0
    %3514 = vmatprep.mubr.f32.mxu0 0.0
    %3515 = vmatmul.mubr.f32.gmra.mrb[0].mxu0 %v3395
    %v3516 = vpop.f32.mrb[0].mxu0
    %v3517 = vadd.f32 %v1882, %v3516
    %v3518 = vpop.f32.mrb[0].mxu0
    %3519 = vmatprep.mubr.f32.mxu0 0.0
    %3520 = vmatmul.mubr.f32.gmra.mrb[0].mxu0 %v3398
    %v3521 = vpop.f32.mrb[0].mxu0
    %v3522 = vadd.f32 %v1887, %v3521
    %v3523 = vpop.f32.mrb[0].mxu0
    %3524 = vmatprep.mubr.f32.mxu0 0.0
    %3525 = vmatmul.mubr.f32.gmra.mrb[0].mxu0 %v3401
    %v3526 = vpop.f32.mrb[0].mxu0
    %v3527 = vadd.f32 %v1892, %v3526
    %v3528 = vpop.f32.mrb[0].mxu0
    %3529 = vmatprep.mubr.f32.mxu0 0.0
    %3530 = vmatmul.mubr.f32.gmra.mrb[0].mxu0 %v3404
    %v3531 = vpop.f32.mrb[0].mxu0
    %v3532 = vadd.f32 %v1897, %v3531
    %v3533 = vpop.f32.mrb[0].mxu0
    %3534 = vmatprep.mubr.f32.mxu0 0.0
    %3535 = vmatmul.mubr.f32.gmra.mrb[0].mxu0 %v3407
    %v3536 = vpop.f32.mrb[0].mxu0
    %v3537 = vadd.f32 %v1902, %v3536
    %v3538 = vpop.f32.mrb[0].mxu0
    %3539 = vmatprep.mubr.f32.mxu0 0.0
    %3540 = vmatmul.mubr.f32.gmra.mrb[0].mxu0 %v3410
    %v3541 = vpop.f32.mrb[0].mxu0
    %v3542 = vadd.f32 %v1907, %v3541
    %v3543 = vpop.f32.mrb[0].mxu0
    %3544 = vmatprep.mubr.f32.mxu0 0.0
    %3545 = vmatmul.mubr.f32.gmra.mrb[0].mxu0 %v3413
    %v3546 = vpop.f32.mrb[0].mxu0
    %v3547 = vadd.f32 %v1912, %v3546
    %v3548 = vpop.f32.mrb[0].mxu0
    %3549 = vmatprep.mubr.f32.mxu0 0.0
    %3550 = vmatmul.mubr.f32.gmra.mrb[0].mxu0 %v3416
    %v3551 = vpop.f32.mrb[0].mxu0
    %v3552 = vadd.f32 %v1917, %v3551
    %v3553 = vpop.f32.mrb[0].mxu0
    %3554 = vmatprep.mubr.f32.mxu0 0.0
    %3555 = vmatmul.mubr.f32.gmra.mrb[0].mxu0 %v3419
    %v3556 = vpop.f32.mrb[0].mxu0
    %v3557 = vadd.f32 %v1922, %v3556
    %v3558 = vpop.f32.mrb[0].mxu0
    %3559 = vmatprep.mubr.f32.mxu0 0.0
    %3560 = vmatmul.mubr.f32.gmra.mrb[0].mxu0 %v3422
    %v3561 = vpop.f32.mrb[0].mxu0
    %v3562 = vadd.f32 %v1927, %v3561
    %v3563 = vpop.f32.mrb[0].mxu0
    %3564 = vmatprep.mubr.f32.mxu0 0.0
    %3565 = vmatmul.mubr.f32.gmra.mrb[0].mxu0 %v3425
    %v3566 = vpop.f32.mrb[0].mxu0
    %v3567 = vadd.f32 %v1932, %v3566
    %v3568 = vpop.f32.mrb[0].mxu0
    %3569 = vmatprep.mubr.f32.mxu0 0.0
    %3570 = vmatmul.mubr.f32.gmra.mrb[0].mxu0 %v3428
    %v3571 = vpop.f32.mrb[0].mxu0
    %v3572 = vadd.f32 %v1937, %v3571
    %v3573 = vpop.f32.mrb[0].mxu0
    %3574 = vdwg.mxu0
    %v3576 = vsel %vm999, %v2053, 0
    %v3579 = vsel %vm999, %v2054, 0
    %v3582 = vsel %vm999, %v2055, 0
    %v3585 = vsel %vm999, %v2056, 0
    %v3588 = vsel %vm999, %v2057, 0
    %v3591 = vsel %vm999, %v2058, 0
    %v3594 = vsel %vm999, %v2059, 0
    %v3597 = vsel %vm999, %v2060, 0
    %v3600 = vsel %vm999, %v2061, 0
    %v3603 = vsel %vm999, %v2062, 0
    %v3606 = vsel %vm999, %v2063, 0
    %v3609 = vsel %vm999, %v2064, 0
    %v3612 = vsel %vm999, %v2065, 0
    %v3615 = vsel %vm999, %v2066, 0
    %v3618 = vsel %vm999, %v2067, 0
    %v3621 = vsel %vm999, %v2068, 0
    %3623 = vmatprep.subr.mxu0 0.0
    %3624 = vmatpush1.msra.mxu0 %v2070
    %3625 = vmatprep.subr.mxu0 0.0
    %3626 = vmatpush1.msra.mxu0 %v2071
    %3627 = vmatprep.subr.mxu0 0.0
    %3628 = vmatpush1.msra.mxu0 %v2072
    %3629 = vmatprep.subr.mxu0 0.0
    %3630 = vmatpush1.msra.mxu0 %v2073
    %3631 = vmatprep.subr.mxu0 0.0
    %3632 = vmatpush1.msra.mxu0 0.0
    %3633 = vmatprep.subr.mxu0 0.0
    %3634 = vmatpush1.msra.mxu0 0.0
    %3635 = vmatprep.subr.mxu0 0.0
    %3636 = vmatpush1.msra.mxu0 0.0
    %3637 = vmatprep.subr.mxu0 0.0
    %3638 = vmatpush1.msra.mxu0 0.0
    %3639 = vmatprep.subr.mxu0 0.0
    %3640 = vmatpush1.msra.mxu0 0.0
    %3641 = vmatprep.subr.mxu0 0.0
    %3642 = vmatpush1.msra.mxu0 0.0
    %3643 = vmatprep.subr.mxu0 0.0
    %3644 = vmatpush1.msra.mxu0 0.0
    %3645 = vmatprep.subr.mxu0 0.0
    %3646 = vmatpush1.msra.mxu0 0.0
    %3647 = vmatprep.subr.mxu0 0.0
    %3648 = vmatpush1.msra.mxu0 0.0
    %3649 = vmatprep.subr.mxu0 0.0
    %3650 = vmatpush1.msra.mxu0 0.0
    %3651 = vmatprep.subr.mxu0 0.0
    %3652 = vmatpush1.msra.mxu0 0.0
    %3653 = vmatprep.subr.mxu0 0.0
    %3654 = vmatpush1.msra.mxu0 0.0
    %3655 = vmatprep.subr.mxu0 0.0
    %3656 = vmatpush1.msra.mxu0 0.0
    %3657 = vmatprep.subr.mxu0 0.0
    %3658 = vmatpush1.msra.mxu0 0.0
    %3659 = vmatprep.subr.mxu0 0.0
    %3660 = vmatpush1.msra.mxu0 0.0
    %3661 = vmatprep.subr.mxu0 0.0
    %3662 = vmatpush1.msra.mxu0 0.0
    %3663 = vmatprep.subr.mxu0 0.0
    %3664 = vmatpush1.msra.mxu0 0.0
    %3665 = vmatprep.subr.mxu0 0.0
    %3666 = vmatpush1.msra.mxu0 0.0
    %3667 = vmatprep.subr.mxu0 0.0
    %3668 = vmatpush1.msra.mxu0 0.0
    %3669 = vmatprep.subr.mxu0 0.0
    %3670 = vmatpush1.msra.mxu0 0.0
    %3671 = vmatprep.subr.mxu0 0.0
    %3672 = vmatpush1.msra.mxu0 0.0
    %3673 = vmatprep.subr.mxu0 0.0
    %3674 = vmatpush1.msra.mxu0 0.0
    %3675 = vmatprep.subr.mxu0 0.0
    %3676 = vmatpush1.msra.mxu0 0.0
    %3677 = vmatprep.subr.mxu0 0.0
    %3678 = vmatpush1.msra.mxu0 0.0
    %3679 = vmatprep.subr.mxu0 0.0
    %3680 = vmatpush1.msra.mxu0 0.0
    %3681 = vmatprep.subr.mxu0 0.0
    %3682 = vmatpush1.msra.mxu0 0.0
    %3683 = vmatprep.subr.mxu0 0.0
    %3684 = vmatpush1.msra.mxu0 0.0
    %3685 = vmatprep.subr.mxu0 0.0
    %3686 = vmatpush1.msra.mxu0 0.0
    %3687 = vmatprep.mubr.f32.mxu0 0.0
    %3688 = vmatmul.mubr.f32.gmra.mrb[0].mxu0 %v3576
    %v3689 = vpop.f32.mrb[0].mxu0
    %v3690 = vadd.f32 %v2323, %v3689
    %v3691 = vpop.f32.mrb[0].mxu0
    %3692 = vmatprep.mubr.f32.mxu0 0.0
    %3693 = vmatmul.mubr.f32.gmra.mrb[0].mxu0 %v3579
    %v3694 = vpop.f32.mrb[0].mxu0
    %v3695 = vadd.f32 %v2328, %v3694
    %v3696 = vpop.f32.mrb[0].mxu0
    %3697 = vmatprep.mubr.f32.mxu0 0.0
    %3698 = vmatmul.mubr.f32.gmra.mrb[0].mxu0 %v3582
    %v3699 = vpop.f32.mrb[0].mxu0
    %v3700 = vadd.f32 %v2333, %v3699
    %v3701 = vpop.f32.mrb[0].mxu0
    %3702 = vmatprep.mubr.f32.mxu0 0.0
    %3703 = vmatmul.mubr.f32.gmra.mrb[0].mxu0 %v3585
    %v3704 = vpop.f32.mrb[0].mxu0
    %v3705 = vadd.f32 %v2338, %v3704
    %v3706 = vpop.f32.mrb[0].mxu0
    %3707 = vmatprep.mubr.f32.mxu0 0.0
    %3708 = vmatmul.mubr.f32.gmra.mrb[0].mxu0 %v3588
    %v3709 = vpop.f32.mrb[0].mxu0
    %v3710 = vadd.f32 %v2343, %v3709
    %v3711 = vpop.f32.mrb[0].mxu0
    %3712 = vmatprep.mubr.f32.mxu0 0.0
    %3713 = vmatmul.mubr.f32.gmra.mrb[0].mxu0 %v3591
    %v3714 = vpop.f32.mrb[0].mxu0
    %v3715 = vadd.f32 %v2348, %v3714
    %v3716 = vpop.f32.mrb[0].mxu0
    %3717 = vmatprep.mubr.f32.mxu0 0.0
    %3718 = vmatmul.mubr.f32.gmra.mrb[0].mxu0 %v3594
    %v3719 = vpop.f32.mrb[0].mxu0
    %v3720 = vadd.f32 %v2353, %v3719
    %v3721 = vpop.f32.mrb[0].mxu0
    %3722 = vmatprep.mubr.f32.mxu0 0.0
    %3723 = vmatmul.mubr.f32.gmra.mrb[0].mxu0 %v3597
    %v3724 = vpop.f32.mrb[0].mxu0
    %v3725 = vadd.f32 %v2358, %v3724
    %v3726 = vpop.f32.mrb[0].mxu0
    %3727 = vmatprep.mubr.f32.mxu0 0.0
    %3728 = vmatmul.mubr.f32.gmra.mrb[0].mxu0 %v3600
    %v3729 = vpop.f32.mrb[0].mxu0
    %v3730 = vadd.f32 %v2363, %v3729
    %v3731 = vpop.f32.mrb[0].mxu0
    %3732 = vmatprep.mubr.f32.mxu0 0.0
    %3733 = vmatmul.mubr.f32.gmra.mrb[0].mxu0 %v3603
    %v3734 = vpop.f32.mrb[0].mxu0
    %v3735 = vadd.f32 %v2368, %v3734
    %v3736 = vpop.f32.mrb[0].mxu0
    %3737 = vmatprep.mubr.f32.mxu0 0.0
    %3738 = vmatmul.mubr.f32.gmra.mrb[0].mxu0 %v3606
    %v3739 = vpop.f32.mrb[0].mxu0
    %v3740 = vadd.f32 %v2373, %v3739
    %v3741 = vpop.f32.mrb[0].mxu0
    %3742 = vmatprep.mubr.f32.mxu0 0.0
    %3743 = vmatmul.mubr.f32.gmra.mrb[0].mxu0 %v3609
    %v3744 = vpop.f32.mrb[0].mxu0
    %v3745 = vadd.f32 %v2378, %v3744
    %v3746 = vpop.f32.mrb[0].mxu0
    %3747 = vmatprep.mubr.f32.mxu0 0.0
    %3748 = vmatmul.mubr.f32.gmra.mrb[0].mxu0 %v3612
    %v3749 = vpop.f32.mrb[0].mxu0
    %v3750 = vadd.f32 %v2383, %v3749
    %v3751 = vpop.f32.mrb[0].mxu0
    %3752 = vmatprep.mubr.f32.mxu0 0.0
    %3753 = vmatmul.mubr.f32.gmra.mrb[0].mxu0 %v3615
    %v3754 = vpop.f32.mrb[0].mxu0
    %v3755 = vadd.f32 %v2388, %v3754
    %v3756 = vpop.f32.mrb[0].mxu0
    %3757 = vmatprep.mubr.f32.mxu0 0.0
    %3758 = vmatmul.mubr.f32.gmra.mrb[0].mxu0 %v3618
    %v3759 = vpop.f32.mrb[0].mxu0
    %v3760 = vadd.f32 %v2393, %v3759
    %v3761 = vpop.f32.mrb[0].mxu0
    %3762 = vmatprep.mubr.f32.mxu0 0.0
    %3763 = vmatmul.mubr.f32.gmra.mrb[0].mxu0 %v3621
    %v3764 = vpop.f32.mrb[0].mxu0
    %v3765 = vadd.f32 %v2398, %v3764
    %v3766 = vpop.f32.mrb[0].mxu0
    %3767 = vdwg.mxu0
    %v3769 = vsel %vm999, %v2514, 0
    %v3772 = vsel %vm999, %v2515, 0
    %v3775 = vsel %vm999, %v2516, 0
    %v3778 = vsel %vm999, %v2517, 0
    %v3781 = vsel %vm999, %v2518, 0
    %v3784 = vsel %vm999, %v2519, 0
    %v3787 = vsel %vm999, %v2520, 0
    %v3790 = vsel %vm999, %v2521, 0
    %v3793 = vsel %vm999, %v2522, 0
    %v3796 = vsel %vm999, %v2523, 0
    %v3799 = vsel %vm999, %v2524, 0
    %v3802 = vsel %vm999, %v2525, 0
    %v3805 = vsel %vm999, %v2526, 0
    %v3808 = vsel %vm999, %v2527, 0
    %v3811 = vsel %vm999, %v2528, 0
    %v3814 = vsel %vm999, %v2529, 0
    %3816 = vmatprep.subr.mxu0 0.0
    %3817 = vmatpush1.msra.mxu0 %v2531
    %3818 = vmatprep.subr.mxu0 0.0
    %3819 = vmatpush1.msra.mxu0 %v2532
    %3820 = vmatprep.subr.mxu0 0.0
    %3821 = vmatpush1.msra.mxu0 %v2533
    %3822 = vmatprep.subr.mxu0 0.0
    %3823 = vmatpush1.msra.mxu0 %v2534
    %3824 = vmatprep.subr.mxu0 0.0
    %3825 = vmatpush1.msra.mxu0 0.0
    %3826 = vmatprep.subr.mxu0 0.0
    %3827 = vmatpush1.msra.mxu0 0.0
    %3828 = vmatprep.subr.mxu0 0.0
    %3829 = vmatpush1.msra.mxu0 0.0
    %3830 = vmatprep.subr.mxu0 0.0
    %3831 = vmatpush1.msra.mxu0 0.0
    %3832 = vmatprep.subr.mxu0 0.0
    %3833 = vmatpush1.msra.mxu0 0.0
    %3834 = vmatprep.subr.mxu0 0.0
    %3835 = vmatpush1.msra.mxu0 0.0
    %3836 = vmatprep.subr.mxu0 0.0
    %3837 = vmatpush1.msra.mxu0 0.0
    %3838 = vmatprep.subr.mxu0 0.0
    %3839 = vmatpush1.msra.mxu0 0.0
    %3840 = vmatprep.subr.mxu0 0.0
    %3841 = vmatpush1.msra.mxu0 0.0
    %3842 = vmatprep.subr.mxu0 0.0
    %3843 = vmatpush1.msra.mxu0 0.0
    %3844 = vmatprep.subr.mxu0 0.0
    %3845 = vmatpush1.msra.mxu0 0.0
    %3846 = vmatprep.subr.mxu0 0.0
    %3847 = vmatpush1.msra.mxu0 0.0
    %3848 = vmatprep.subr.mxu0 0.0
    %3849 = vmatpush1.msra.mxu0 0.0
    %3850 = vmatprep.subr.mxu0 0.0
    %3851 = vmatpush1.msra.mxu0 0.0
    %3852 = vmatprep.subr.mxu0 0.0
    %3853 = vmatpush1.msra.mxu0 0.0
    %3854 = vmatprep.subr.mxu0 0.0
    %3855 = vmatpush1.msra.mxu0 0.0
    %3856 = vmatprep.subr.mxu0 0.0
    %3857 = vmatpush1.msra.mxu0 0.0
    %3858 = vmatprep.subr.mxu0 0.0
    %3859 = vmatpush1.msra.mxu0 0.0
    %3860 = vmatprep.subr.mxu0 0.0
    %3861 = vmatpush1.msra.mxu0 0.0
    %3862 = vmatprep.subr.mxu0 0.0
    %3863 = vmatpush1.msra.mxu0 0.0
    %3864 = vmatprep.subr.mxu0 0.0
    %3865 = vmatpush1.msra.mxu0 0.0
    %3866 = vmatprep.subr.mxu0 0.0
    %3867 = vmatpush1.msra.mxu0 0.0
    %3868 = vmatprep.subr.mxu0 0.0
    %3869 = vmatpush1.msra.mxu0 0.0
    %3870 = vmatprep.subr.mxu0 0.0
    %3871 = vmatpush1.msra.mxu0 0.0
    %3872 = vmatprep.subr.mxu0 0.0
    %3873 = vmatpush1.msra.mxu0 0.0
    %3874 = vmatprep.subr.mxu0 0.0
    %3875 = vmatpush1.msra.mxu0 0.0
    %3876 = vmatprep.subr.mxu0 0.0
    %3877 = vmatpush1.msra.mxu0 0.0
    %3878 = vmatprep.subr.mxu0 0.0
    %3879 = vmatpush1.msra.mxu0 0.0
    %3880 = vmatprep.mubr.f32.mxu0 0.0
    %3881 = vmatmul.mubr.f32.gmra.mrb[0].mxu0 %v3769
    %v3882 = vpop.f32.mrb[0].mxu0
    %v3883 = vadd.f32 %v2784, %v3882
    %v3884 = vpop.f32.mrb[0].mxu0
    %3885 = vmatprep.mubr.f32.mxu0 0.0
    %3886 = vmatmul.mubr.f32.gmra.mrb[0].mxu0 %v3772
    %v3887 = vpop.f32.mrb[0].mxu0
    %v3888 = vadd.f32 %v2789, %v3887
    %v3889 = vpop.f32.mrb[0].mxu0
    %3890 = vmatprep.mubr.f32.mxu0 0.0
    %3891 = vmatmul.mubr.f32.gmra.mrb[0].mxu0 %v3775
    %v3892 = vpop.f32.mrb[0].mxu0
    %v3893 = vadd.f32 %v2794, %v3892
    %v3894 = vpop.f32.mrb[0].mxu0
    %3895 = vmatprep.mubr.f32.mxu0 0.0
    %3896 = vmatmul.mubr.f32.gmra.mrb[0].mxu0 %v3778
    %v3897 = vpop.f32.mrb[0].mxu0
    %v3898 = vadd.f32 %v2799, %v3897
    %v3899 = vpop.f32.mrb[0].mxu0
    %3900 = vmatprep.mubr.f32.mxu0 0.0
    %3901 = vmatmul.mubr.f32.gmra.mrb[0].mxu0 %v3781
    %v3902 = vpop.f32.mrb[0].mxu0
    %v3903 = vadd.f32 %v2804, %v3902
    %v3904 = vpop.f32.mrb[0].mxu0
    %3905 = vmatprep.mubr.f32.mxu0 0.0
    %3906 = vmatmul.mubr.f32.gmra.mrb[0].mxu0 %v3784
    %v3907 = vpop.f32.mrb[0].mxu0
    %v3908 = vadd.f32 %v2809, %v3907
    %v3909 = vpop.f32.mrb[0].mxu0
    %3910 = vmatprep.mubr.f32.mxu0 0.0
    %3911 = vmatmul.mubr.f32.gmra.mrb[0].mxu0 %v3787
    %v3912 = vpop.f32.mrb[0].mxu0
    %v3913 = vadd.f32 %v2814, %v3912
    %v3914 = vpop.f32.mrb[0].mxu0
    %3915 = vmatprep.mubr.f32.mxu0 0.0
    %3916 = vmatmul.mubr.f32.gmra.mrb[0].mxu0 %v3790
    %v3917 = vpop.f32.mrb[0].mxu0
    %v3918 = vadd.f32 %v2819, %v3917
    %v3919 = vpop.f32.mrb[0].mxu0
    %3920 = vmatprep.mubr.f32.mxu0 0.0
    %3921 = vmatmul.mubr.f32.gmra.mrb[0].mxu0 %v3793
    %v3922 = vpop.f32.mrb[0].mxu0
    %v3923 = vadd.f32 %v2824, %v3922
    %v3924 = vpop.f32.mrb[0].mxu0
    %3925 = vmatprep.mubr.f32.mxu0 0.0
    %3926 = vmatmul.mubr.f32.gmra.mrb[0].mxu0 %v3796
    %v3927 = vpop.f32.mrb[0].mxu0
    %v3928 = vadd.f32 %v2829, %v3927
    %v3929 = vpop.f32.mrb[0].mxu0
    %3930 = vmatprep.mubr.f32.mxu0 0.0
    %3931 = vmatmul.mubr.f32.gmra.mrb[0].mxu0 %v3799
    %v3932 = vpop.f32.mrb[0].mxu0
    %v3933 = vadd.f32 %v2834, %v3932
    %v3934 = vpop.f32.mrb[0].mxu0
    %3935 = vmatprep.mubr.f32.mxu0 0.0
    %3936 = vmatmul.mubr.f32.gmra.mrb[0].mxu0 %v3802
    %v3937 = vpop.f32.mrb[0].mxu0
    %v3938 = vadd.f32 %v2839, %v3937
    %v3939 = vpop.f32.mrb[0].mxu0
    %3940 = vmatprep.mubr.f32.mxu0 0.0
    %3941 = vmatmul.mubr.f32.gmra.mrb[0].mxu0 %v3805
    %v3942 = vpop.f32.mrb[0].mxu0
    %v3943 = vadd.f32 %v2844, %v3942
    %v3944 = vpop.f32.mrb[0].mxu0
    %3945 = vmatprep.mubr.f32.mxu0 0.0
    %3946 = vmatmul.mubr.f32.gmra.mrb[0].mxu0 %v3808
    %v3947 = vpop.f32.mrb[0].mxu0
    %v3948 = vadd.f32 %v2849, %v3947
    %v3949 = vpop.f32.mrb[0].mxu0
    %3950 = vmatprep.mubr.f32.mxu0 0.0
    %3951 = vmatmul.mubr.f32.gmra.mrb[0].mxu0 %v3811
    %v3952 = vpop.f32.mrb[0].mxu0
    %v3953 = vadd.f32 %v2854, %v3952
    %v3954 = vpop.f32.mrb[0].mxu0
    %3955 = vmatprep.mubr.f32.mxu0 0.0
    %3956 = vmatmul.mubr.f32.gmra.mrb[0].mxu0 %v3814
    %v3957 = vpop.f32.mrb[0].mxu0
    %v3958 = vadd.f32 %v2859, %v3957
    %v3959 = vpop.f32.mrb[0].mxu0
    %3960 = vdwg.mxu0
    %v3961 = vadd.f32 %v3304, %v3497
    %v3962 = vadd.f32 %v3309, %v3502
    %v3963 = vadd.f32 %v3314, %v3507
    %v3964 = vadd.f32 %v3319, %v3512
    %v3965 = vadd.f32 %v3324, %v3517
    %v3966 = vadd.f32 %v3329, %v3522
    %v3967 = vadd.f32 %v3334, %v3527
    %v3968 = vadd.f32 %v3339, %v3532
    %v3969 = vadd.f32 %v3344, %v3537
    %v3970 = vadd.f32 %v3349, %v3542
    %v3971 = vadd.f32 %v3354, %v3547
    %v3972 = vadd.f32 %v3359, %v3552
    %v3973 = vadd.f32 %v3364, %v3557
    %v3974 = vadd.f32 %v3369, %v3562
    %v3975 = vadd.f32 %v3374, %v3567
    %v3976 = vadd.f32 %v3379, %v3572
    %v3977 = vadd.f32 %v3690, %v3883
    %v3978 = vadd.f32 %v3695, %v3888
    %v3979 = vadd.f32 %v3700, %v3893
    %v3980 = vadd.f32 %v3705, %v3898
    %v3981 = vadd.f32 %v3710, %v3903
    %v3982 = vadd.f32 %v3715, %v3908
    %v3983 = vadd.f32 %v3720, %v3913
    %v3984 = vadd.f32 %v3725, %v3918
    %v3985 = vadd.f32 %v3730, %v3923
    %v3986 = vadd.f32 %v3735, %v3928
    %v3987 = vadd.f32 %v3740, %v3933
    %v3988 = vadd.f32 %v3745, %v3938
    %v3989 = vadd.f32 %v3750, %v3943
    %v3990 = vadd.f32 %v3755, %v3948
    %v3991 = vadd.f32 %v3760, %v3953
    %v3992 = vadd.f32 %v3765, %v3958
    %v3993 = vadd.f32 %v3961, %v3977
    %v3994 = vadd.f32 %v3962, %v3978
    %v3995 = vadd.f32 %v3963, %v3979
    %v3996 = vadd.f32 %v3964, %v3980
    %v3997 = vadd.f32 %v3965, %v3981
    %v3998 = vadd.f32 %v3966, %v3982
    %v3999 = vadd.f32 %v3967, %v3983
    %v4000 = vadd.f32 %v3968, %v3984
    %v4001 = vadd.f32 %v3969, %v3985
    %v4002 = vadd.f32 %v3970, %v3986
    %v4003 = vadd.f32 %v3971, %v3987
    %v4004 = vadd.f32 %v3972, %v3988
    %v4005 = vadd.f32 %v3973, %v3989
    %v4006 = vadd.f32 %v3974, %v3990
    %v4007 = vadd.f32 %v3975, %v3991
    %v4008 = vadd.f32 %v3976, %v3992
    %v4009 = vadd.f32 %v3993, %v3111
    %v4010 = vadd.f32 %v3994, %v3116
    %v4011 = vadd.f32 %v3995, %v3121
    %v4012 = vadd.f32 %v3996, %v3126
    %v4013 = vadd.f32 %v3997, %v3131
    %v4014 = vadd.f32 %v3998, %v3136
    %v4015 = vadd.f32 %v3999, %v3141
    %v4016 = vadd.f32 %v4000, %v3146
    %v4017 = vadd.f32 %v4001, %v3151
    %v4018 = vadd.f32 %v4002, %v3156
    %v4019 = vadd.f32 %v4003, %v3161
    %v4020 = vadd.f32 %v4004, %v3166
    %v4021 = vadd.f32 %v4005, %v3171
    %v4022 = vadd.f32 %v4006, %v3176
    %v4023 = vadd.f32 %v4007, %v3181
    %v4024 = vadd.f32 %v4008, %v3186
    %v4025 = vld [vmem:[%s4] sm:$0x1]
    %v4027 = vlaneseq
    %v4028 = vshrl.u32 %v4027, 7
    %v4029 = vsub.s32 0, %v4028
    %v4030 = vrot.slane %v4025, %v4029
    %v4032 = vadd.f32 %v4009, %v4030
    %v4033 = vadd.f32 %v4010, %v4030
    %v4034 = vadd.f32 %v4011, %v4030
    %v4035 = vadd.f32 %v4012, %v4030
    %v4036 = vadd.f32 %v4013, %v4030
    %v4037 = vadd.f32 %v4014, %v4030
    %v4038 = vadd.f32 %v4015, %v4030
    %v4039 = vadd.f32 %v4016, %v4030
    %v4040 = vadd.f32 %v4017, %v4030
    %v4041 = vadd.f32 %v4018, %v4030
    %v4042 = vadd.f32 %v4019, %v4030
    %v4043 = vadd.f32 %v4020, %v4030
    %v4044 = vadd.f32 %v4021, %v4030
    %v4045 = vadd.f32 %v4022, %v4030
    %v4046 = vadd.f32 %v4023, %v4030
    %v4047 = vadd.f32 %v4024, %v4030
    %v4048 = vmax.f32 %v4032, 0.0
    %v4049 = vmax.f32 %v4033, 0.0
    %v4050 = vmax.f32 %v4034, 0.0
    %v4051 = vmax.f32 %v4035, 0.0
    %v4052 = vmax.f32 %v4036, 0.0
    %v4053 = vmax.f32 %v4037, 0.0
    %v4054 = vmax.f32 %v4038, 0.0
    %v4055 = vmax.f32 %v4039, 0.0
    %v4056 = vmax.f32 %v4040, 0.0
    %v4057 = vmax.f32 %v4041, 0.0
    %v4058 = vmax.f32 %v4042, 0.0
    %v4059 = vmax.f32 %v4043, 0.0
    %v4060 = vmax.f32 %v4044, 0.0
    %v4061 = vmax.f32 %v4045, 0.0
    %v4062 = vmax.f32 %v4046, 0.0
    %v4063 = vmax.f32 %v4047, 0.0
    %v4064 = vld [vmem:[%s6] sm:$0xff]
    %v4065 = vld [vmem:[%s6 + $0x8] sm:$0xff]
    %v4066 = vld [vmem:[%s6 + $0x10] sm:$0xff]
    %v4067 = vld [vmem:[%s6 + $0x18] sm:$0xff]
    %v4068 = vld [vmem:[%s6 + $0x20] sm:$0xff]
    %v4069 = vld [vmem:[%s6 + $0x28] sm:$0xff]
    %v4070 = vld [vmem:[%s6 + $0x30] sm:$0xff]
    %v4071 = vld [vmem:[%s6 + $0x38] sm:$0xff]
    %v4072 = vld [vmem:[%s6 + $0x40] sm:$0xff]
    %v4073 = vld [vmem:[%s6 + $0x48] sm:$0xff]
    %v4074 = vld [vmem:[%s6 + $0x50] sm:$0xff]
    %v4075 = vld [vmem:[%s6 + $0x58] sm:$0xff]
    %v4076 = vld [vmem:[%s6 + $0x60] sm:$0xff]
    %v4077 = vld [vmem:[%s6 + $0x68] sm:$0xff]
    %v4078 = vld [vmem:[%s6 + $0x70] sm:$0xff]
    %v4079 = vld [vmem:[%s6 + $0x78] sm:$0xff]
    %4080 = vmatprep.subr.mxu0 0.0
    %4081 = vmatpush1.msra.mxu0 %v4048
    %4082 = vmatprep.subr.mxu0 0.0
    %4083 = vmatpush1.msra.mxu0 %v4049
    %4084 = vmatprep.subr.mxu0 0.0
    %4085 = vmatpush1.msra.mxu0 %v4050
    %4086 = vmatprep.subr.mxu0 0.0
    %4087 = vmatpush1.msra.mxu0 %v4051
    %4088 = vmatprep.subr.mxu0 0.0
    %4089 = vmatpush1.msra.mxu0 %v4052
    %4090 = vmatprep.subr.mxu0 0.0
    %4091 = vmatpush1.msra.mxu0 %v4053
    %4092 = vmatprep.subr.mxu0 0.0
    %4093 = vmatpush1.msra.mxu0 %v4054
    %4094 = vmatprep.subr.mxu0 0.0
    %4095 = vmatpush1.msra.mxu0 %v4055
    %4096 = vmatprep.subr.mxu0 0.0
    %4097 = vmatpush1.msra.mxu0 %v4056
    %4098 = vmatprep.subr.mxu0 0.0
    %4099 = vmatpush1.msra.mxu0 %v4057
    %4100 = vmatprep.subr.mxu0 0.0
    %4101 = vmatpush1.msra.mxu0 %v4058
    %4102 = vmatprep.subr.mxu0 0.0
    %4103 = vmatpush1.msra.mxu0 %v4059
    %4104 = vmatprep.subr.mxu0 0.0
    %4105 = vmatpush1.msra.mxu0 %v4060
    %4106 = vmatprep.subr.mxu0 0.0
    %4107 = vmatpush1.msra.mxu0 %v4061
    %4108 = vmatprep.subr.mxu0 0.0
    %4109 = vmatpush1.msra.mxu0 %v4062
    %4110 = vmatprep.subr.mxu0 0.0
    %4111 = vmatpush1.msra.mxu0 %v4063
    %4112 = vmatprep.subr.mxu0 0.0
    %4113 = vmatpush1.msra.mxu0 0.0
    %4114 = vmatprep.subr.mxu0 0.0
    %4115 = vmatpush1.msra.mxu0 0.0
    %4116 = vmatprep.subr.mxu0 0.0
    %4117 = vmatpush1.msra.mxu0 0.0
    %4118 = vmatprep.subr.mxu0 0.0
    %4119 = vmatpush1.msra.mxu0 0.0
    %4120 = vmatprep.subr.mxu0 0.0
    %4121 = vmatpush1.msra.mxu0 0.0
    %4122 = vmatprep.subr.mxu0 0.0
    %4123 = vmatpush1.msra.mxu0 0.0
    %4124 = vmatprep.subr.mxu0 0.0
    %4125 = vmatpush1.msra.mxu0 0.0
    %4126 = vmatprep.subr.mxu0 0.0
    %4127 = vmatpush1.msra.mxu0 0.0
    %4128 = vmatprep.subr.mxu0 0.0
    %4129 = vmatpush1.msra.mxu0 0.0
    %4130 = vmatprep.subr.mxu0 0.0
    %4131 = vmatpush1.msra.mxu0 0.0
    %4132 = vmatprep.subr.mxu0 0.0
    %4133 = vmatpush1.msra.mxu0 0.0
    %4134 = vmatprep.subr.mxu0 0.0
    %4135 = vmatpush1.msra.mxu0 0.0
    %4136 = vmatprep.subr.mxu0 0.0
    %4137 = vmatpush1.msra.mxu0 0.0
    %4138 = vmatprep.subr.mxu0 0.0
    %4139 = vmatpush1.msra.mxu0 0.0
    %4140 = vmatprep.subr.mxu0 0.0
    %4141 = vmatpush1.msra.mxu0 0.0
    %4142 = vmatprep.subr.mxu0 0.0
    %4143 = vmatpush1.msra.mxu0 0.0
    %4144 = vmatprep.mubr.f32.mxu0 0.0
    %4145 = vmatmul.mubr.f32.gmra.mrb[0].mxu0 %v4064
    %v4146 = vpop.f32.mrb[0].mxu0
    %v4147 = vadd.f32 0.0, %v4146
    %v4148 = vpop.f32.mrb[0].mxu0
    %4149 = vmatprep.mubr.f32.mxu0 0.0
    %4150 = vmatmul.mubr.f32.gmra.mrb[0].mxu0 %v4065
    %v4151 = vpop.f32.mrb[0].mxu0
    %v4152 = vadd.f32 0.0, %v4151
    %v4153 = vpop.f32.mrb[0].mxu0
    %4154 = vmatprep.mubr.f32.mxu0 0.0
    %4155 = vmatmul.mubr.f32.gmra.mrb[0].mxu0 %v4066
    %v4156 = vpop.f32.mrb[0].mxu0
    %v4157 = vadd.f32 0.0, %v4156
    %v4158 = vpop.f32.mrb[0].mxu0
    %4159 = vmatprep.mubr.f32.mxu0 0.0
    %4160 = vmatmul.mubr.f32.gmra.mrb[0].mxu0 %v4067
    %v4161 = vpop.f32.mrb[0].mxu0
    %v4162 = vadd.f32 0.0, %v4161
    %v4163 = vpop.f32.mrb[0].mxu0
    %4164 = vmatprep.mubr.f32.mxu0 0.0
    %4165 = vmatmul.mubr.f32.gmra.mrb[0].mxu0 %v4068
    %v4166 = vpop.f32.mrb[0].mxu0
    %v4167 = vadd.f32 0.0, %v4166
    %v4168 = vpop.f32.mrb[0].mxu0
    %4169 = vmatprep.mubr.f32.mxu0 0.0
    %4170 = vmatmul.mubr.f32.gmra.mrb[0].mxu0 %v4069
    %v4171 = vpop.f32.mrb[0].mxu0
    %v4172 = vadd.f32 0.0, %v4171
    %v4173 = vpop.f32.mrb[0].mxu0
    %4174 = vmatprep.mubr.f32.mxu0 0.0
    %4175 = vmatmul.mubr.f32.gmra.mrb[0].mxu0 %v4070
    %v4176 = vpop.f32.mrb[0].mxu0
    %v4177 = vadd.f32 0.0, %v4176
    %v4178 = vpop.f32.mrb[0].mxu0
    %4179 = vmatprep.mubr.f32.mxu0 0.0
    %4180 = vmatmul.mubr.f32.gmra.mrb[0].mxu0 %v4071
    %v4181 = vpop.f32.mrb[0].mxu0
    %v4182 = vadd.f32 0.0, %v4181
    %v4183 = vpop.f32.mrb[0].mxu0
    %4184 = vmatprep.mubr.f32.mxu0 0.0
    %4185 = vmatmul.mubr.f32.gmra.mrb[0].mxu0 %v4072
    %v4186 = vpop.f32.mrb[0].mxu0
    %v4187 = vadd.f32 0.0, %v4186
    %v4188 = vpop.f32.mrb[0].mxu0
    %4189 = vmatprep.mubr.f32.mxu0 0.0
    %4190 = vmatmul.mubr.f32.gmra.mrb[0].mxu0 %v4073
    %v4191 = vpop.f32.mrb[0].mxu0
    %v4192 = vadd.f32 0.0, %v4191
    %v4193 = vpop.f32.mrb[0].mxu0
    %4194 = vmatprep.mubr.f32.mxu0 0.0
    %4195 = vmatmul.mubr.f32.gmra.mrb[0].mxu0 %v4074
    %v4196 = vpop.f32.mrb[0].mxu0
    %v4197 = vadd.f32 0.0, %v4196
    %v4198 = vpop.f32.mrb[0].mxu0
    %4199 = vmatprep.mubr.f32.mxu0 0.0
    %4200 = vmatmul.mubr.f32.gmra.mrb[0].mxu0 %v4075
    %v4201 = vpop.f32.mrb[0].mxu0
    %v4202 = vadd.f32 0.0, %v4201
    %v4203 = vpop.f32.mrb[0].mxu0
    %4204 = vmatprep.mubr.f32.mxu0 0.0
    %4205 = vmatmul.mubr.f32.gmra.mrb[0].mxu0 %v4076
    %v4206 = vpop.f32.mrb[0].mxu0
    %v4207 = vadd.f32 0.0, %v4206
    %v4208 = vpop.f32.mrb[0].mxu0
    %4209 = vmatprep.mubr.f32.mxu0 0.0
    %4210 = vmatmul.mubr.f32.gmra.mrb[0].mxu0 %v4077
    %v4211 = vpop.f32.mrb[0].mxu0
    %v4212 = vadd.f32 0.0, %v4211
    %v4213 = vpop.f32.mrb[0].mxu0
    %4214 = vmatprep.mubr.f32.mxu0 0.0
    %4215 = vmatmul.mubr.f32.gmra.mrb[0].mxu0 %v4078
    %v4216 = vpop.f32.mrb[0].mxu0
    %v4217 = vadd.f32 0.0, %v4216
    %v4218 = vpop.f32.mrb[0].mxu0
    %4219 = vmatprep.mubr.f32.mxu0 0.0
    %4220 = vmatmul.mubr.f32.gmra.mrb[0].mxu0 %v4079
    %v4221 = vpop.f32.mrb[0].mxu0
    %v4222 = vadd.f32 0.0, %v4221
    %v4223 = vpop.f32.mrb[0].mxu0
    %4224 = vdwg.mxu0
    %v4225 = vmax.f32 %v4147, %v4167
    %v4226 = vmax.f32 %v4152, %v4172
    %v4227 = vmax.f32 %v4157, %v4177
    %v4228 = vmax.f32 %v4162, %v4182
    %v4229 = vmax.f32 %v4187, %v4207
    %v4230 = vmax.f32 %v4192, %v4212
    %v4231 = vmax.f32 %v4197, %v4217
    %v4232 = vmax.f32 %v4202, %v4222
    %v4233 = vmax.f32 %v4225, %v4229
    %v4234 = vmax.f32 %v4226, %v4230
    %v4235 = vmax.f32 %v4227, %v4231
    %v4236 = vmax.f32 %v4228, %v4232
    %v4237 = vld [vmem:[%s7] sm:$0xff]
    %v4238 = vld [vmem:[%s7 + $0x8] sm:$0xff]
    %v4239 = vld [vmem:[%s7 + $0x10] sm:$0xff]
    %v4240 = vld [vmem:[%s7 + $0x18] sm:$0xff]
    %v4241 = vld [vmem:[%s7 + $0x20] sm:$0xff]
    %v4242 = vld [vmem:[%s7 + $0x28] sm:$0xff]
    %v4243 = vld [vmem:[%s7 + $0x30] sm:$0xff]
    %v4244 = vld [vmem:[%s7 + $0x38] sm:$0xff]
    %v4245 = vld [vmem:[%s7 + $0x40] sm:$0xff]
    %v4246 = vld [vmem:[%s7 + $0x48] sm:$0xff]
    %v4247 = vld [vmem:[%s7 + $0x50] sm:$0xff]
    %v4248 = vld [vmem:[%s7 + $0x58] sm:$0xff]
    %v4249 = vld [vmem:[%s7 + $0x60] sm:$0xff]
    %v4250 = vld [vmem:[%s7 + $0x68] sm:$0xff]
    %v4251 = vld [vmem:[%s7 + $0x70] sm:$0xff]
    %v4252 = vld [vmem:[%s7 + $0x78] sm:$0xff]
    %v4253 = vld [vmem:[%s7 + $0x80] sm:$0xff]
    %v4254 = vld [vmem:[%s7 + $0x88] sm:$0xff]
    %v4255 = vld [vmem:[%s7 + $0x90] sm:$0xff]
    %v4256 = vld [vmem:[%s7 + $0x98] sm:$0xff]
    %v4257 = vld [vmem:[%s7 + $0xa0] sm:$0xff]
    %v4258 = vld [vmem:[%s7 + $0xa8] sm:$0xff]
    %v4259 = vld [vmem:[%s7 + $0xb0] sm:$0xff]
    %v4260 = vld [vmem:[%s7 + $0xb8] sm:$0xff]
    %v4261 = vld [vmem:[%s7 + $0xc0] sm:$0xff]
    %v4262 = vld [vmem:[%s7 + $0xc8] sm:$0xff]
    %v4263 = vld [vmem:[%s7 + $0xd0] sm:$0xff]
    %v4264 = vld [vmem:[%s7 + $0xd8] sm:$0xff]
    %v4265 = vld [vmem:[%s7 + $0xe0] sm:$0xff]
    %v4266 = vld [vmem:[%s7 + $0xe8] sm:$0xff]
    %v4267 = vld [vmem:[%s7 + $0xf0] sm:$0xff]
    %v4268 = vld [vmem:[%s7 + $0xf8] sm:$0xff]
    %v4270 = vrot.slane %v4233, 2
    %v4271 = vsel %vm118, %v4270, 0
    %4273 = vmatprep.subr.mxu0 %v4254
    %4274 = vmatpush1.msra.mxu0 %v4253
    %4275 = vmatprep.subr.mxu0 %v4256
    %4276 = vmatpush1.msra.mxu0 %v4255
    %4277 = vmatprep.subr.mxu0 %v4258
    %4278 = vmatpush1.msra.mxu0 %v4257
    %4279 = vmatprep.subr.mxu0 %v4260
    %4280 = vmatpush1.msra.mxu0 %v4259
    %4281 = vmatprep.subr.mxu0 %v4262
    %4282 = vmatpush1.msra.mxu0 %v4261
    %4283 = vmatprep.subr.mxu0 %v4264
    %4284 = vmatpush1.msra.mxu0 %v4263
    %4285 = vmatprep.subr.mxu0 %v4266
    %4286 = vmatpush1.msra.mxu0 %v4265
    %4287 = vmatprep.subr.mxu0 %v4268
    %4288 = vmatpush1.msra.mxu0 %v4267
    %4289 = vmatprep.subr.mxu0 0.0
    %4290 = vmatpush1.msra.mxu0 0.0
    %4291 = vmatprep.subr.mxu0 0.0
    %4292 = vmatpush1.msra.mxu0 0.0
    %4293 = vmatprep.subr.mxu0 0.0
    %4294 = vmatpush1.msra.mxu0 0.0
    %4295 = vmatprep.subr.mxu0 0.0
    %4296 = vmatpush1.msra.mxu0 0.0
    %4297 = vmatprep.subr.mxu0 0.0
    %4298 = vmatpush1.msra.mxu0 0.0
    %4299 = vmatprep.subr.mxu0 0.0
    %4300 = vmatpush1.msra.mxu0 0.0
    %4301 = vmatprep.subr.mxu0 0.0
    %4302 = vmatpush1.msra.mxu0 0.0
    %4303 = vmatprep.subr.mxu0 0.0
    %4304 = vmatpush1.msra.mxu0 0.0
    %4305 = vmatprep.subr.mxu0 0.0
    %4306 = vmatpush1.msra.mxu0 0.0
    %4307 = vmatprep.subr.mxu0 0.0
    %4308 = vmatpush1.msra.mxu0 0.0
    %4309 = vmatprep.subr.mxu0 0.0
    %4310 = vmatpush1.msra.mxu0 0.0
    %4311 = vmatprep.subr.mxu0 0.0
    %4312 = vmatpush1.msra.mxu0 0.0
    %4313 = vmatprep.subr.mxu0 0.0
    %4314 = vmatpush1.msra.mxu0 0.0
    %4315 = vmatprep.subr.mxu0 0.0
    %4316 = vmatpush1.msra.mxu0 0.0
    %4317 = vmatprep.subr.mxu0 0.0
    %4318 = vmatpush1.msra.mxu0 0.0
    %4319 = vmatprep.subr.mxu0 0.0
    %4320 = vmatpush1.msra.mxu0 0.0
    %4321 = vmatprep.subr.mxu0 0.0
    %4322 = vmatpush1.msra.mxu0 0.0
    %4323 = vmatprep.subr.mxu0 0.0
    %4324 = vmatpush1.msra.mxu0 0.0
    %4325 = vmatprep.subr.mxu0 0.0
    %4326 = vmatpush1.msra.mxu0 0.0
    %4327 = vmatprep.subr.mxu0 0.0
    %4328 = vmatpush1.msra.mxu0 0.0
    %4329 = vmatprep.subr.mxu0 0.0
    %4330 = vmatpush1.msra.mxu0 0.0
    %4331 = vmatprep.subr.mxu0 0.0
    %4332 = vmatpush1.msra.mxu0 0.0
    %4333 = vmatprep.subr.mxu0 0.0
    %4334 = vmatpush1.msra.mxu0 0.0
    %4335 = vmatprep.subr.mxu0 0.0
    %4336 = vmatpush1.msra.mxu0 0.0
    %4337 = vmatprep.mubr.f32.mxu0 0.0
    %4338 = vmatmul.mubr.f32.gmra.mrb[0].mxu0 %v4271
    %v4339 = vpop.f32.mrb[0].mxu0
    %v4340 = vadd.f32 0.0, %v4339
    %v4341 = vpop.f32.mrb[0].mxu0
    %v4342 = vadd.f32 0.0, %v4341
    %4343 = vdwg.mxu0
    %v4344 = vld [vmem:[%s7 + $0x100] sm:$0xff]
    %v4345 = vld [vmem:[%s7 + $0x108] sm:$0xff]
    %v4346 = vld [vmem:[%s7 + $0x110] sm:$0xff]
    %v4347 = vld [vmem:[%s7 + $0x118] sm:$0xff]
    %v4348 = vld [vmem:[%s7 + $0x120] sm:$0xff]
    %v4349 = vld [vmem:[%s7 + $0x128] sm:$0xff]
    %v4350 = vld [vmem:[%s7 + $0x130] sm:$0xff]
    %v4351 = vld [vmem:[%s7 + $0x138] sm:$0xff]
    %v4352 = vld [vmem:[%s7 + $0x140] sm:$0xff]
    %v4353 = vld [vmem:[%s7 + $0x148] sm:$0xff]
    %v4354 = vld [vmem:[%s7 + $0x150] sm:$0xff]
    %v4355 = vld [vmem:[%s7 + $0x158] sm:$0xff]
    %v4356 = vld [vmem:[%s7 + $0x160] sm:$0xff]
    %v4357 = vld [vmem:[%s7 + $0x168] sm:$0xff]
    %v4358 = vld [vmem:[%s7 + $0x170] sm:$0xff]
    %v4359 = vld [vmem:[%s7 + $0x178] sm:$0xff]
    %v4360 = vld [vmem:[%s7 + $0x180] sm:$0xff]
    %v4361 = vld [vmem:[%s7 + $0x188] sm:$0xff]
    %v4362 = vld [vmem:[%s7 + $0x190] sm:$0xff]
    %v4363 = vld [vmem:[%s7 + $0x198] sm:$0xff]
    %v4364 = vld [vmem:[%s7 + $0x1a0] sm:$0xff]
    %v4365 = vld [vmem:[%s7 + $0x1a8] sm:$0xff]
    %v4366 = vld [vmem:[%s7 + $0x1b0] sm:$0xff]
    %v4367 = vld [vmem:[%s7 + $0x1b8] sm:$0xff]
    %v4368 = vld [vmem:[%s7 + $0x1c0] sm:$0xff]
    %v4369 = vld [vmem:[%s7 + $0x1c8] sm:$0xff]
    %v4370 = vld [vmem:[%s7 + $0x1d0] sm:$0xff]
    %v4371 = vld [vmem:[%s7 + $0x1d8] sm:$0xff]
    %v4372 = vld [vmem:[%s7 + $0x1e0] sm:$0xff]
    %v4373 = vld [vmem:[%s7 + $0x1e8] sm:$0xff]
    %v4374 = vld [vmem:[%s7 + $0x1f0] sm:$0xff]
    %v4375 = vld [vmem:[%s7 + $0x1f8] sm:$0xff]
    %v4376 = vrot.slane %v4233, 6
    %v4377 = vsel %vm118, %v4376, 0
    %4379 = vmatprep.subr.mxu0 %v4361
    %4380 = vmatpush1.msra.mxu0 %v4360
    %4381 = vmatprep.subr.mxu0 %v4363
    %4382 = vmatpush1.msra.mxu0 %v4362
    %4383 = vmatprep.subr.mxu0 %v4365
    %4384 = vmatpush1.msra.mxu0 %v4364
    %4385 = vmatprep.subr.mxu0 %v4367
    %4386 = vmatpush1.msra.mxu0 %v4366
    %4387 = vmatprep.subr.mxu0 %v4369
    %4388 = vmatpush1.msra.mxu0 %v4368
    %4389 = vmatprep.subr.mxu0 %v4371
    %4390 = vmatpush1.msra.mxu0 %v4370
    %4391 = vmatprep.subr.mxu0 %v4373
    %4392 = vmatpush1.msra.mxu0 %v4372
    %4393 = vmatprep.subr.mxu0 %v4375
    %4394 = vmatpush1.msra.mxu0 %v4374
    %4395 = vmatprep.subr.mxu0 0.0
    %4396 = vmatpush1.msra.mxu0 0.0
    %4397 = vmatprep.subr.mxu0 0.0
    %4398 = vmatpush1.msra.mxu0 0.0
    %4399 = vmatprep.subr.mxu0 0.0
    %4400 = vmatpush1.msra.mxu0 0.0
    %4401 = vmatprep.subr.mxu0 0.0
    %4402 = vmatpush1.msra.mxu0 0.0
    %4403 = vmatprep.subr.mxu0 0.0
    %4404 = vmatpush1.msra.mxu0 0.0
    %4405 = vmatprep.subr.mxu0 0.0
    %4406 = vmatpush1.msra.mxu0 0.0
    %4407 = vmatprep.subr.mxu0 0.0
    %4408 = vmatpush1.msra.mxu0 0.0
    %4409 = vmatprep.subr.mxu0 0.0
    %4410 = vmatpush1.msra.mxu0 0.0
    %4411 = vmatprep.subr.mxu0 0.0
    %4412 = vmatpush1.msra.mxu0 0.0
    %4413 = vmatprep.subr.mxu0 0.0
    %4414 = vmatpush1.msra.mxu0 0.0
    %4415 = vmatprep.subr.mxu0 0.0
    %4416 = vmatpush1.msra.mxu0 0.0
    %4417 = vmatprep.subr.mxu0 0.0
    %4418 = vmatpush1.msra.mxu0 0.0
    %4419 = vmatprep.subr.mxu0 0.0
    %4420 = vmatpush1.msra.mxu0 0.0
    %4421 = vmatprep.subr.mxu0 0.0
    %4422 = vmatpush1.msra.mxu0 0.0
    %4423 = vmatprep.subr.mxu0 0.0
    %4424 = vmatpush1.msra.mxu0 0.0
    %4425 = vmatprep.subr.mxu0 0.0
    %4426 = vmatpush1.msra.mxu0 0.0
    %4427 = vmatprep.subr.mxu0 0.0
    %4428 = vmatpush1.msra.mxu0 0.0
    %4429 = vmatprep.subr.mxu0 0.0
    %4430 = vmatpush1.msra.mxu0 0.0
    %4431 = vmatprep.subr.mxu0 0.0
    %4432 = vmatpush1.msra.mxu0 0.0
    %4433 = vmatprep.subr.mxu0 0.0
    %4434 = vmatpush1.msra.mxu0 0.0
    %4435 = vmatprep.subr.mxu0 0.0
    %4436 = vmatpush1.msra.mxu0 0.0
    %4437 = vmatprep.subr.mxu0 0.0
    %4438 = vmatpush1.msra.mxu0 0.0
    %4439 = vmatprep.subr.mxu0 0.0
    %4440 = vmatpush1.msra.mxu0 0.0
    %4441 = vmatprep.subr.mxu0 0.0
    %4442 = vmatpush1.msra.mxu0 0.0
    %4443 = vmatprep.mubr.f32.mxu0 0.0
    %4444 = vmatmul.mubr.f32.gmra.mrb[0].mxu0 %v4377
    %v4445 = vpop.f32.mrb[0].mxu0
    %v4446 = vadd.f32 0.0, %v4445
    %v4447 = vpop.f32.mrb[0].mxu0
    %v4448 = vadd.f32 0.0, %v4447
    %4449 = vdwg.mxu0
    %v4450 = vld [vmem:[%s7 + $0x200] sm:$0xff]
    %v4451 = vld [vmem:[%s7 + $0x208] sm:$0xff]
    %v4452 = vld [vmem:[%s7 + $0x210] sm:$0xff]
    %v4453 = vld [vmem:[%s7 + $0x218] sm:$0xff]
    %v4454 = vld [vmem:[%s7 + $0x220] sm:$0xff]
    %v4455 = vld [vmem:[%s7 + $0x228] sm:$0xff]
    %v4456 = vld [vmem:[%s7 + $0x230] sm:$0xff]
    %v4457 = vld [vmem:[%s7 + $0x238] sm:$0xff]
    %v4458 = vld [vmem:[%s7 + $0x240] sm:$0xff]
    %v4459 = vld [vmem:[%s7 + $0x248] sm:$0xff]
    %v4460 = vld [vmem:[%s7 + $0x250] sm:$0xff]
    %v4461 = vld [vmem:[%s7 + $0x258] sm:$0xff]
    %v4462 = vld [vmem:[%s7 + $0x260] sm:$0xff]
    %v4463 = vld [vmem:[%s7 + $0x268] sm:$0xff]
    %v4464 = vld [vmem:[%s7 + $0x270] sm:$0xff]
    %v4465 = vld [vmem:[%s7 + $0x278] sm:$0xff]
    %v4466 = vld [vmem:[%s7 + $0x280] sm:$0xff]
    %v4467 = vld [vmem:[%s7 + $0x288] sm:$0xff]
    %v4468 = vld [vmem:[%s7 + $0x290] sm:$0xff]
    %v4469 = vld [vmem:[%s7 + $0x298] sm:$0xff]
    %v4470 = vld [vmem:[%s7 + $0x2a0] sm:$0xff]
    %v4471 = vld [vmem:[%s7 + $0x2a8] sm:$0xff]
    %v4472 = vld [vmem:[%s7 + $0x2b0] sm:$0xff]
    %v4473 = vld [vmem:[%s7 + $0x2b8] sm:$0xff]
    %v4474 = vld [vmem:[%s7 + $0x2c0] sm:$0xff]
    %v4475 = vld [vmem:[%s7 + $0x2c8] sm:$0xff]
    %v4476 = vld [vmem:[%s7 + $0x2d0] sm:$0xff]
    %v4477 = vld [vmem:[%s7 + $0x2d8] sm:$0xff]
    %v4478 = vld [vmem:[%s7 + $0x2e0] sm:$0xff]
    %v4479 = vld [vmem:[%s7 + $0x2e8] sm:$0xff]
    %v4480 = vld [vmem:[%s7 + $0x2f0] sm:$0xff]
    %v4481 = vld [vmem:[%s7 + $0x2f8] sm:$0xff]
    %v4483 = vrot.slane %v4234, 2
    %v4484 = vsel %vm118, %v4483, 0
    %4486 = vmatprep.subr.mxu0 %v4467
    %4487 = vmatpush1.msra.mxu0 %v4466
    %4488 = vmatprep.subr.mxu0 %v4469
    %4489 = vmatpush1.msra.mxu0 %v4468
    %4490 = vmatprep.subr.mxu0 %v4471
    %4491 = vmatpush1.msra.mxu0 %v4470
    %4492 = vmatprep.subr.mxu0 %v4473
    %4493 = vmatpush1.msra.mxu0 %v4472
    %4494 = vmatprep.subr.mxu0 %v4475
    %4495 = vmatpush1.msra.mxu0 %v4474
    %4496 = vmatprep.subr.mxu0 %v4477
    %4497 = vmatpush1.msra.mxu0 %v4476
    %4498 = vmatprep.subr.mxu0 %v4479
    %4499 = vmatpush1.msra.mxu0 %v4478
    %4500 = vmatprep.subr.mxu0 %v4481
    %4501 = vmatpush1.msra.mxu0 %v4480
    %4502 = vmatprep.subr.mxu0 0.0
    %4503 = vmatpush1.msra.mxu0 0.0
    %4504 = vmatprep.subr.mxu0 0.0
    %4505 = vmatpush1.msra.mxu0 0.0
    %4506 = vmatprep.subr.mxu0 0.0
    %4507 = vmatpush1.msra.mxu0 0.0
    %4508 = vmatprep.subr.mxu0 0.0
    %4509 = vmatpush1.msra.mxu0 0.0
    %4510 = vmatprep.subr.mxu0 0.0
    %4511 = vmatpush1.msra.mxu0 0.0
    %4512 = vmatprep.subr.mxu0 0.0
    %4513 = vmatpush1.msra.mxu0 0.0
    %4514 = vmatprep.subr.mxu0 0.0
    %4515 = vmatpush1.msra.mxu0 0.0
    %4516 = vmatprep.subr.mxu0 0.0
    %4517 = vmatpush1.msra.mxu0 0.0
    %4518 = vmatprep.subr.mxu0 0.0
    %4519 = vmatpush1.msra.mxu0 0.0
    %4520 = vmatprep.subr.mxu0 0.0
    %4521 = vmatpush1.msra.mxu0 0.0
    %4522 = vmatprep.subr.mxu0 0.0
    %4523 = vmatpush1.msra.mxu0 0.0
    %4524 = vmatprep.subr.mxu0 0.0
    %4525 = vmatpush1.msra.mxu0 0.0
    %4526 = vmatprep.subr.mxu0 0.0
    %4527 = vmatpush1.msra.mxu0 0.0
    %4528 = vmatprep.subr.mxu0 0.0
    %4529 = vmatpush1.msra.mxu0 0.0
    %4530 = vmatprep.subr.mxu0 0.0
    %4531 = vmatpush1.msra.mxu0 0.0
    %4532 = vmatprep.subr.mxu0 0.0
    %4533 = vmatpush1.msra.mxu0 0.0
    %4534 = vmatprep.subr.mxu0 0.0
    %4535 = vmatpush1.msra.mxu0 0.0
    %4536 = vmatprep.subr.mxu0 0.0
    %4537 = vmatpush1.msra.mxu0 0.0
    %4538 = vmatprep.subr.mxu0 0.0
    %4539 = vmatpush1.msra.mxu0 0.0
    %4540 = vmatprep.subr.mxu0 0.0
    %4541 = vmatpush1.msra.mxu0 0.0
    %4542 = vmatprep.subr.mxu0 0.0
    %4543 = vmatpush1.msra.mxu0 0.0
    %4544 = vmatprep.subr.mxu0 0.0
    %4545 = vmatpush1.msra.mxu0 0.0
    %4546 = vmatprep.subr.mxu0 0.0
    %4547 = vmatpush1.msra.mxu0 0.0
    %4548 = vmatprep.subr.mxu0 0.0
    %4549 = vmatpush1.msra.mxu0 0.0
    %4550 = vmatprep.mubr.f32.mxu0 0.0
    %4551 = vmatmul.mubr.f32.gmra.mrb[0].mxu0 %v4484
    %v4552 = vpop.f32.mrb[0].mxu0
    %v4553 = vadd.f32 0.0, %v4552
    %v4554 = vpop.f32.mrb[0].mxu0
    %v4555 = vadd.f32 0.0, %v4554
    %4556 = vdwg.mxu0
    %v4557 = vld [vmem:[%s7 + $0x300] sm:$0xff]
    %v4558 = vld [vmem:[%s7 + $0x308] sm:$0xff]
    %v4559 = vld [vmem:[%s7 + $0x310] sm:$0xff]
    %v4560 = vld [vmem:[%s7 + $0x318] sm:$0xff]
    %v4561 = vld [vmem:[%s7 + $0x320] sm:$0xff]
    %v4562 = vld [vmem:[%s7 + $0x328] sm:$0xff]
    %v4563 = vld [vmem:[%s7 + $0x330] sm:$0xff]
    %v4564 = vld [vmem:[%s7 + $0x338] sm:$0xff]
    %v4565 = vld [vmem:[%s7 + $0x340] sm:$0xff]
    %v4566 = vld [vmem:[%s7 + $0x348] sm:$0xff]
    %v4567 = vld [vmem:[%s7 + $0x350] sm:$0xff]
    %v4568 = vld [vmem:[%s7 + $0x358] sm:$0xff]
    %v4569 = vld [vmem:[%s7 + $0x360] sm:$0xff]
    %v4570 = vld [vmem:[%s7 + $0x368] sm:$0xff]
    %v4571 = vld [vmem:[%s7 + $0x370] sm:$0xff]
    %v4572 = vld [vmem:[%s7 + $0x378] sm:$0xff]
    %v4573 = vld [vmem:[%s7 + $0x380] sm:$0xff]
    %v4574 = vld [vmem:[%s7 + $0x388] sm:$0xff]
    %v4575 = vld [vmem:[%s7 + $0x390] sm:$0xff]
    %v4576 = vld [vmem:[%s7 + $0x398] sm:$0xff]
    %v4577 = vld [vmem:[%s7 + $0x3a0] sm:$0xff]
    %v4578 = vld [vmem:[%s7 + $0x3a8] sm:$0xff]
    %v4579 = vld [vmem:[%s7 + $0x3b0] sm:$0xff]
    %v4580 = vld [vmem:[%s7 + $0x3b8] sm:$0xff]
    %v4581 = vld [vmem:[%s7 + $0x3c0] sm:$0xff]
    %v4582 = vld [vmem:[%s7 + $0x3c8] sm:$0xff]
    %v4583 = vld [vmem:[%s7 + $0x3d0] sm:$0xff]
    %v4584 = vld [vmem:[%s7 + $0x3d8] sm:$0xff]
    %v4585 = vld [vmem:[%s7 + $0x3e0] sm:$0xff]
    %v4586 = vld [vmem:[%s7 + $0x3e8] sm:$0xff]
    %v4587 = vld [vmem:[%s7 + $0x3f0] sm:$0xff]
    %v4588 = vld [vmem:[%s7 + $0x3f8] sm:$0xff]
    %v4589 = vrot.slane %v4234, 6
    %v4590 = vsel %vm118, %v4589, 0
    %4592 = vmatprep.subr.mxu0 %v4574
    %4593 = vmatpush1.msra.mxu0 %v4573
    %4594 = vmatprep.subr.mxu0 %v4576
    %4595 = vmatpush1.msra.mxu0 %v4575
    %4596 = vmatprep.subr.mxu0 %v4578
    %4597 = vmatpush1.msra.mxu0 %v4577
    %4598 = vmatprep.subr.mxu0 %v4580
    %4599 = vmatpush1.msra.mxu0 %v4579
    %4600 = vmatprep.subr.mxu0 %v4582
    %4601 = vmatpush1.msra.mxu0 %v4581
    %4602 = vmatprep.subr.mxu0 %v4584
    %4603 = vmatpush1.msra.mxu0 %v4583
    %4604 = vmatprep.subr.mxu0 %v4586
    %4605 = vmatpush1.msra.mxu0 %v4585
    %4606 = vmatprep.subr.mxu0 %v4588
    %4607 = vmatpush1.msra.mxu0 %v4587
    %4608 = vmatprep.subr.mxu0 0.0
    %4609 = vmatpush1.msra.mxu0 0.0
    %4610 = vmatprep.subr.mxu0 0.0
    %4611 = vmatpush1.msra.mxu0 0.0
    %4612 = vmatprep.subr.mxu0 0.0
    %4613 = vmatpush1.msra.mxu0 0.0
    %4614 = vmatprep.subr.mxu0 0.0
    %4615 = vmatpush1.msra.mxu0 0.0
    %4616 = vmatprep.subr.mxu0 0.0
    %4617 = vmatpush1.msra.mxu0 0.0
    %4618 = vmatprep.subr.mxu0 0.0
    %4619 = vmatpush1.msra.mxu0 0.0
    %4620 = vmatprep.subr.mxu0 0.0
    %4621 = vmatpush1.msra.mxu0 0.0
    %4622 = vmatprep.subr.mxu0 0.0
    %4623 = vmatpush1.msra.mxu0 0.0
    %4624 = vmatprep.subr.mxu0 0.0
    %4625 = vmatpush1.msra.mxu0 0.0
    %4626 = vmatprep.subr.mxu0 0.0
    %4627 = vmatpush1.msra.mxu0 0.0
    %4628 = vmatprep.subr.mxu0 0.0
    %4629 = vmatpush1.msra.mxu0 0.0
    %4630 = vmatprep.subr.mxu0 0.0
    %4631 = vmatpush1.msra.mxu0 0.0
    %4632 = vmatprep.subr.mxu0 0.0
    %4633 = vmatpush1.msra.mxu0 0.0
    %4634 = vmatprep.subr.mxu0 0.0
    %4635 = vmatpush1.msra.mxu0 0.0
    %4636 = vmatprep.subr.mxu0 0.0
    %4637 = vmatpush1.msra.mxu0 0.0
    %4638 = vmatprep.subr.mxu0 0.0
    %4639 = vmatpush1.msra.mxu0 0.0
    %4640 = vmatprep.subr.mxu0 0.0
    %4641 = vmatpush1.msra.mxu0 0.0
    %4642 = vmatprep.subr.mxu0 0.0
    %4643 = vmatpush1.msra.mxu0 0.0
    %4644 = vmatprep.subr.mxu0 0.0
    %4645 = vmatpush1.msra.mxu0 0.0
    %4646 = vmatprep.subr.mxu0 0.0
    %4647 = vmatpush1.msra.mxu0 0.0
    %4648 = vmatprep.subr.mxu0 0.0
    %4649 = vmatpush1.msra.mxu0 0.0
    %4650 = vmatprep.subr.mxu0 0.0
    %4651 = vmatpush1.msra.mxu0 0.0
    %4652 = vmatprep.subr.mxu0 0.0
    %4653 = vmatpush1.msra.mxu0 0.0
    %4654 = vmatprep.subr.mxu0 0.0
    %4655 = vmatpush1.msra.mxu0 0.0
    %4656 = vmatprep.mubr.f32.mxu0 0.0
    %4657 = vmatmul.mubr.f32.gmra.mrb[0].mxu0 %v4590
    %v4658 = vpop.f32.mrb[0].mxu0
    %v4659 = vadd.f32 0.0, %v4658
    %v4660 = vpop.f32.mrb[0].mxu0
    %v4661 = vadd.f32 0.0, %v4660
    %4662 = vdwg.mxu0
    %v4663 = vld [vmem:[%s7 + $0x400] sm:$0xff]
    %v4664 = vld [vmem:[%s7 + $0x408] sm:$0xff]
    %v4665 = vld [vmem:[%s7 + $0x410] sm:$0xff]
    %v4666 = vld [vmem:[%s7 + $0x418] sm:$0xff]
    %v4667 = vld [vmem:[%s7 + $0x420] sm:$0xff]
    %v4668 = vld [vmem:[%s7 + $0x428] sm:$0xff]
    %v4669 = vld [vmem:[%s7 + $0x430] sm:$0xff]
    %v4670 = vld [vmem:[%s7 + $0x438] sm:$0xff]
    %v4671 = vld [vmem:[%s7 + $0x440] sm:$0xff]
    %v4672 = vld [vmem:[%s7 + $0x448] sm:$0xff]
    %v4673 = vld [vmem:[%s7 + $0x450] sm:$0xff]
    %v4674 = vld [vmem:[%s7 + $0x458] sm:$0xff]
    %v4675 = vld [vmem:[%s7 + $0x460] sm:$0xff]
    %v4676 = vld [vmem:[%s7 + $0x468] sm:$0xff]
    %v4677 = vld [vmem:[%s7 + $0x470] sm:$0xff]
    %v4678 = vld [vmem:[%s7 + $0x478] sm:$0xff]
    %v4679 = vld [vmem:[%s7 + $0x480] sm:$0xff]
    %v4680 = vld [vmem:[%s7 + $0x488] sm:$0xff]
    %v4681 = vld [vmem:[%s7 + $0x490] sm:$0xff]
    %v4682 = vld [vmem:[%s7 + $0x498] sm:$0xff]
    %v4683 = vld [vmem:[%s7 + $0x4a0] sm:$0xff]
    %v4684 = vld [vmem:[%s7 + $0x4a8] sm:$0xff]
    %v4685 = vld [vmem:[%s7 + $0x4b0] sm:$0xff]
    %v4686 = vld [vmem:[%s7 + $0x4b8] sm:$0xff]
    %v4687 = vld [vmem:[%s7 + $0x4c0] sm:$0xff]
    %v4688 = vld [vmem:[%s7 + $0x4c8] sm:$0xff]
    %v4689 = vld [vmem:[%s7 + $0x4d0] sm:$0xff]
    %v4690 = vld [vmem:[%s7 + $0x4d8] sm:$0xff]
    %v4691 = vld [vmem:[%s7 + $0x4e0] sm:$0xff]
    %v4692 = vld [vmem:[%s7 + $0x4e8] sm:$0xff]
    %v4693 = vld [vmem:[%s7 + $0x4f0] sm:$0xff]
    %v4694 = vld [vmem:[%s7 + $0x4f8] sm:$0xff]
    %v4696 = vrot.slane %v4235, 2
    %v4697 = vsel %vm118, %v4696, 0
    %4699 = vmatprep.subr.mxu0 %v4680
    %4700 = vmatpush1.msra.mxu0 %v4679
    %4701 = vmatprep.subr.mxu0 %v4682
    %4702 = vmatpush1.msra.mxu0 %v4681
    %4703 = vmatprep.subr.mxu0 %v4684
    %4704 = vmatpush1.msra.mxu0 %v4683
    %4705 = vmatprep.subr.mxu0 %v4686
    %4706 = vmatpush1.msra.mxu0 %v4685
    %4707 = vmatprep.subr.mxu0 %v4688
    %4708 = vmatpush1.msra.mxu0 %v4687
    %4709 = vmatprep.subr.mxu0 %v4690
    %4710 = vmatpush1.msra.mxu0 %v4689
    %4711 = vmatprep.subr.mxu0 %v4692
    %4712 = vmatpush1.msra.mxu0 %v4691
    %4713 = vmatprep.subr.mxu0 %v4694
    %4714 = vmatpush1.msra.mxu0 %v4693
    %4715 = vmatprep.subr.mxu0 0.0
    %4716 = vmatpush1.msra.mxu0 0.0
    %4717 = vmatprep.subr.mxu0 0.0
    %4718 = vmatpush1.msra.mxu0 0.0
    %4719 = vmatprep.subr.mxu0 0.0
    %4720 = vmatpush1.msra.mxu0 0.0
    %4721 = vmatprep.subr.mxu0 0.0
    %4722 = vmatpush1.msra.mxu0 0.0
    %4723 = vmatprep.subr.mxu0 0.0
    %4724 = vmatpush1.msra.mxu0 0.0
    %4725 = vmatprep.subr.mxu0 0.0
    %4726 = vmatpush1.msra.mxu0 0.0
    %4727 = vmatprep.subr.mxu0 0.0
    %4728 = vmatpush1.msra.mxu0 0.0
    %4729 = vmatprep.subr.mxu0 0.0
    %4730 = vmatpush1.msra.mxu0 0.0
    %4731 = vmatprep.subr.mxu0 0.0
    %4732 = vmatpush1.msra.mxu0 0.0
    %4733 = vmatprep.subr.mxu0 0.0
    %4734 = vmatpush1.msra.mxu0 0.0
    %4735 = vmatprep.subr.mxu0 0.0
    %4736 = vmatpush1.msra.mxu0 0.0
    %4737 = vmatprep.subr.mxu0 0.0
    %4738 = vmatpush1.msra.mxu0 0.0
    %4739 = vmatprep.subr.mxu0 0.0
    %4740 = vmatpush1.msra.mxu0 0.0
    %4741 = vmatprep.subr.mxu0 0.0
    %4742 = vmatpush1.msra.mxu0 0.0
    %4743 = vmatprep.subr.mxu0 0.0
    %4744 = vmatpush1.msra.mxu0 0.0
    %4745 = vmatprep.subr.mxu0 0.0
    %4746 = vmatpush1.msra.mxu0 0.0
    %4747 = vmatprep.subr.mxu0 0.0
    %4748 = vmatpush1.msra.mxu0 0.0
    %4749 = vmatprep.subr.mxu0 0.0
    %4750 = vmatpush1.msra.mxu0 0.0
    %4751 = vmatprep.subr.mxu0 0.0
    %4752 = vmatpush1.msra.mxu0 0.0
    %4753 = vmatprep.subr.mxu0 0.0
    %4754 = vmatpush1.msra.mxu0 0.0
    %4755 = vmatprep.subr.mxu0 0.0
    %4756 = vmatpush1.msra.mxu0 0.0
    %4757 = vmatprep.subr.mxu0 0.0
    %4758 = vmatpush1.msra.mxu0 0.0
    %4759 = vmatprep.subr.mxu0 0.0
    %4760 = vmatpush1.msra.mxu0 0.0
    %4761 = vmatprep.subr.mxu0 0.0
    %4762 = vmatpush1.msra.mxu0 0.0
    %4763 = vmatprep.mubr.f32.mxu0 0.0
    %4764 = vmatmul.mubr.f32.gmra.mrb[0].mxu0 %v4697
    %v4765 = vpop.f32.mrb[0].mxu0
    %v4766 = vadd.f32 0.0, %v4765
    %v4767 = vpop.f32.mrb[0].mxu0
    %v4768 = vadd.f32 0.0, %v4767
    %4769 = vdwg.mxu0
    %v4770 = vld [vmem:[%s7 + $0x500] sm:$0xff]
    %v4771 = vld [vmem:[%s7 + $0x508] sm:$0xff]
    %v4772 = vld [vmem:[%s7 + $0x510] sm:$0xff]
    %v4773 = vld [vmem:[%s7 + $0x518] sm:$0xff]
    %v4774 = vld [vmem:[%s7 + $0x520] sm:$0xff]
    %v4775 = vld [vmem:[%s7 + $0x528] sm:$0xff]
    %v4776 = vld [vmem:[%s7 + $0x530] sm:$0xff]
    %v4777 = vld [vmem:[%s7 + $0x538] sm:$0xff]
    %v4778 = vld [vmem:[%s7 + $0x540] sm:$0xff]
    %v4779 = vld [vmem:[%s7 + $0x548] sm:$0xff]
    %v4780 = vld [vmem:[%s7 + $0x550] sm:$0xff]
    %v4781 = vld [vmem:[%s7 + $0x558] sm:$0xff]
    %v4782 = vld [vmem:[%s7 + $0x560] sm:$0xff]
    %v4783 = vld [vmem:[%s7 + $0x568] sm:$0xff]
    %v4784 = vld [vmem:[%s7 + $0x570] sm:$0xff]
    %v4785 = vld [vmem:[%s7 + $0x578] sm:$0xff]
    %v4786 = vld [vmem:[%s7 + $0x580] sm:$0xff]
    %v4787 = vld [vmem:[%s7 + $0x588] sm:$0xff]
    %v4788 = vld [vmem:[%s7 + $0x590] sm:$0xff]
    %v4789 = vld [vmem:[%s7 + $0x598] sm:$0xff]
    %v4790 = vld [vmem:[%s7 + $0x5a0] sm:$0xff]
    %v4791 = vld [vmem:[%s7 + $0x5a8] sm:$0xff]
    %v4792 = vld [vmem:[%s7 + $0x5b0] sm:$0xff]
    %v4793 = vld [vmem:[%s7 + $0x5b8] sm:$0xff]
    %v4794 = vld [vmem:[%s7 + $0x5c0] sm:$0xff]
    %v4795 = vld [vmem:[%s7 + $0x5c8] sm:$0xff]
    %v4796 = vld [vmem:[%s7 + $0x5d0] sm:$0xff]
    %v4797 = vld [vmem:[%s7 + $0x5d8] sm:$0xff]
    %v4798 = vld [vmem:[%s7 + $0x5e0] sm:$0xff]
    %v4799 = vld [vmem:[%s7 + $0x5e8] sm:$0xff]
    %v4800 = vld [vmem:[%s7 + $0x5f0] sm:$0xff]
    %v4801 = vld [vmem:[%s7 + $0x5f8] sm:$0xff]
    %v4802 = vrot.slane %v4235, 6
    %v4803 = vsel %vm118, %v4802, 0
    %4805 = vmatprep.subr.mxu0 %v4787
    %4806 = vmatpush1.msra.mxu0 %v4786
    %4807 = vmatprep.subr.mxu0 %v4789
    %4808 = vmatpush1.msra.mxu0 %v4788
    %4809 = vmatprep.subr.mxu0 %v4791
    %4810 = vmatpush1.msra.mxu0 %v4790
    %4811 = vmatprep.subr.mxu0 %v4793
    %4812 = vmatpush1.msra.mxu0 %v4792
    %4813 = vmatprep.subr.mxu0 %v4795
    %4814 = vmatpush1.msra.mxu0 %v4794
    %4815 = vmatprep.subr.mxu0 %v4797
    %4816 = vmatpush1.msra.mxu0 %v4796
    %4817 = vmatprep.subr.mxu0 %v4799
    %4818 = vmatpush1.msra.mxu0 %v4798
    %4819 = vmatprep.subr.mxu0 %v4801
    %4820 = vmatpush1.msra.mxu0 %v4800
    %4821 = vmatprep.subr.mxu0 0.0
    %4822 = vmatpush1.msra.mxu0 0.0
    %4823 = vmatprep.subr.mxu0 0.0
    %4824 = vmatpush1.msra.mxu0 0.0
    %4825 = vmatprep.subr.mxu0 0.0
    %4826 = vmatpush1.msra.mxu0 0.0
    %4827 = vmatprep.subr.mxu0 0.0
    %4828 = vmatpush1.msra.mxu0 0.0
    %4829 = vmatprep.subr.mxu0 0.0
    %4830 = vmatpush1.msra.mxu0 0.0
    %4831 = vmatprep.subr.mxu0 0.0
    %4832 = vmatpush1.msra.mxu0 0.0
    %4833 = vmatprep.subr.mxu0 0.0
    %4834 = vmatpush1.msra.mxu0 0.0
    %4835 = vmatprep.subr.mxu0 0.0
    %4836 = vmatpush1.msra.mxu0 0.0
    %4837 = vmatprep.subr.mxu0 0.0
    %4838 = vmatpush1.msra.mxu0 0.0
    %4839 = vmatprep.subr.mxu0 0.0
    %4840 = vmatpush1.msra.mxu0 0.0
    %4841 = vmatprep.subr.mxu0 0.0
    %4842 = vmatpush1.msra.mxu0 0.0
    %4843 = vmatprep.subr.mxu0 0.0
    %4844 = vmatpush1.msra.mxu0 0.0
    %4845 = vmatprep.subr.mxu0 0.0
    %4846 = vmatpush1.msra.mxu0 0.0
    %4847 = vmatprep.subr.mxu0 0.0
    %4848 = vmatpush1.msra.mxu0 0.0
    %4849 = vmatprep.subr.mxu0 0.0
    %4850 = vmatpush1.msra.mxu0 0.0
    %4851 = vmatprep.subr.mxu0 0.0
    %4852 = vmatpush1.msra.mxu0 0.0
    %4853 = vmatprep.subr.mxu0 0.0
    %4854 = vmatpush1.msra.mxu0 0.0
    %4855 = vmatprep.subr.mxu0 0.0
    %4856 = vmatpush1.msra.mxu0 0.0
    %4857 = vmatprep.subr.mxu0 0.0
    %4858 = vmatpush1.msra.mxu0 0.0
    %4859 = vmatprep.subr.mxu0 0.0
    %4860 = vmatpush1.msra.mxu0 0.0
    %4861 = vmatprep.subr.mxu0 0.0
    %4862 = vmatpush1.msra.mxu0 0.0
    %4863 = vmatprep.subr.mxu0 0.0
    %4864 = vmatpush1.msra.mxu0 0.0
    %4865 = vmatprep.subr.mxu0 0.0
    %4866 = vmatpush1.msra.mxu0 0.0
    %4867 = vmatprep.subr.mxu0 0.0
    %4868 = vmatpush1.msra.mxu0 0.0
    %4869 = vmatprep.mubr.f32.mxu0 0.0
    %4870 = vmatmul.mubr.f32.gmra.mrb[0].mxu0 %v4803
    %v4871 = vpop.f32.mrb[0].mxu0
    %v4872 = vadd.f32 0.0, %v4871
    %v4873 = vpop.f32.mrb[0].mxu0
    %v4874 = vadd.f32 0.0, %v4873
    %4875 = vdwg.mxu0
    %v4876 = vld [vmem:[%s7 + $0x600] sm:$0xff]
    %v4877 = vld [vmem:[%s7 + $0x608] sm:$0xff]
    %v4878 = vld [vmem:[%s7 + $0x610] sm:$0xff]
    %v4879 = vld [vmem:[%s7 + $0x618] sm:$0xff]
    %v4880 = vld [vmem:[%s7 + $0x620] sm:$0xff]
    %v4881 = vld [vmem:[%s7 + $0x628] sm:$0xff]
    %v4882 = vld [vmem:[%s7 + $0x630] sm:$0xff]
    %v4883 = vld [vmem:[%s7 + $0x638] sm:$0xff]
    %v4884 = vld [vmem:[%s7 + $0x640] sm:$0xff]
    %v4885 = vld [vmem:[%s7 + $0x648] sm:$0xff]
    %v4886 = vld [vmem:[%s7 + $0x650] sm:$0xff]
    %v4887 = vld [vmem:[%s7 + $0x658] sm:$0xff]
    %v4888 = vld [vmem:[%s7 + $0x660] sm:$0xff]
    %v4889 = vld [vmem:[%s7 + $0x668] sm:$0xff]
    %v4890 = vld [vmem:[%s7 + $0x670] sm:$0xff]
    %v4891 = vld [vmem:[%s7 + $0x678] sm:$0xff]
    %v4892 = vld [vmem:[%s7 + $0x680] sm:$0xff]
    %v4893 = vld [vmem:[%s7 + $0x688] sm:$0xff]
    %v4894 = vld [vmem:[%s7 + $0x690] sm:$0xff]
    %v4895 = vld [vmem:[%s7 + $0x698] sm:$0xff]
    %v4896 = vld [vmem:[%s7 + $0x6a0] sm:$0xff]
    %v4897 = vld [vmem:[%s7 + $0x6a8] sm:$0xff]
    %v4898 = vld [vmem:[%s7 + $0x6b0] sm:$0xff]
    %v4899 = vld [vmem:[%s7 + $0x6b8] sm:$0xff]
    %v4900 = vld [vmem:[%s7 + $0x6c0] sm:$0xff]
    %v4901 = vld [vmem:[%s7 + $0x6c8] sm:$0xff]
    %v4902 = vld [vmem:[%s7 + $0x6d0] sm:$0xff]
    %v4903 = vld [vmem:[%s7 + $0x6d8] sm:$0xff]
    %v4904 = vld [vmem:[%s7 + $0x6e0] sm:$0xff]
    %v4905 = vld [vmem:[%s7 + $0x6e8] sm:$0xff]
    %v4906 = vld [vmem:[%s7 + $0x6f0] sm:$0xff]
    %v4907 = vld [vmem:[%s7 + $0x6f8] sm:$0xff]
    %v4909 = vrot.slane %v4236, 2
    %v4910 = vsel %vm118, %v4909, 0
    %4912 = vmatprep.subr.mxu0 %v4893
    %4913 = vmatpush1.msra.mxu0 %v4892
    %4914 = vmatprep.subr.mxu0 %v4895
    %4915 = vmatpush1.msra.mxu0 %v4894
    %4916 = vmatprep.subr.mxu0 %v4897
    %4917 = vmatpush1.msra.mxu0 %v4896
    %4918 = vmatprep.subr.mxu0 %v4899
    %4919 = vmatpush1.msra.mxu0 %v4898
    %4920 = vmatprep.subr.mxu0 %v4901
    %4921 = vmatpush1.msra.mxu0 %v4900
    %4922 = vmatprep.subr.mxu0 %v4903
    %4923 = vmatpush1.msra.mxu0 %v4902
    %4924 = vmatprep.subr.mxu0 %v4905
    %4925 = vmatpush1.msra.mxu0 %v4904
    %4926 = vmatprep.subr.mxu0 %v4907
    %4927 = vmatpush1.msra.mxu0 %v4906
    %4928 = vmatprep.subr.mxu0 0.0
    %4929 = vmatpush1.msra.mxu0 0.0
    %4930 = vmatprep.subr.mxu0 0.0
    %4931 = vmatpush1.msra.mxu0 0.0
    %4932 = vmatprep.subr.mxu0 0.0
    %4933 = vmatpush1.msra.mxu0 0.0
    %4934 = vmatprep.subr.mxu0 0.0
    %4935 = vmatpush1.msra.mxu0 0.0
    %4936 = vmatprep.subr.mxu0 0.0
    %4937 = vmatpush1.msra.mxu0 0.0
    %4938 = vmatprep.subr.mxu0 0.0
    %4939 = vmatpush1.msra.mxu0 0.0
    %4940 = vmatprep.subr.mxu0 0.0
    %4941 = vmatpush1.msra.mxu0 0.0
    %4942 = vmatprep.subr.mxu0 0.0
    %4943 = vmatpush1.msra.mxu0 0.0
    %4944 = vmatprep.subr.mxu0 0.0
    %4945 = vmatpush1.msra.mxu0 0.0
    %4946 = vmatprep.subr.mxu0 0.0
    %4947 = vmatpush1.msra.mxu0 0.0
    %4948 = vmatprep.subr.mxu0 0.0
    %4949 = vmatpush1.msra.mxu0 0.0
    %4950 = vmatprep.subr.mxu0 0.0
    %4951 = vmatpush1.msra.mxu0 0.0
    %4952 = vmatprep.subr.mxu0 0.0
    %4953 = vmatpush1.msra.mxu0 0.0
    %4954 = vmatprep.subr.mxu0 0.0
    %4955 = vmatpush1.msra.mxu0 0.0
    %4956 = vmatprep.subr.mxu0 0.0
    %4957 = vmatpush1.msra.mxu0 0.0
    %4958 = vmatprep.subr.mxu0 0.0
    %4959 = vmatpush1.msra.mxu0 0.0
    %4960 = vmatprep.subr.mxu0 0.0
    %4961 = vmatpush1.msra.mxu0 0.0
    %4962 = vmatprep.subr.mxu0 0.0
    %4963 = vmatpush1.msra.mxu0 0.0
    %4964 = vmatprep.subr.mxu0 0.0
    %4965 = vmatpush1.msra.mxu0 0.0
    %4966 = vmatprep.subr.mxu0 0.0
    %4967 = vmatpush1.msra.mxu0 0.0
    %4968 = vmatprep.subr.mxu0 0.0
    %4969 = vmatpush1.msra.mxu0 0.0
    %4970 = vmatprep.subr.mxu0 0.0
    %4971 = vmatpush1.msra.mxu0 0.0
    %4972 = vmatprep.subr.mxu0 0.0
    %4973 = vmatpush1.msra.mxu0 0.0
    %4974 = vmatprep.subr.mxu0 0.0
    %4975 = vmatpush1.msra.mxu0 0.0
    %4976 = vmatprep.mubr.f32.mxu0 0.0
    %4977 = vmatmul.mubr.f32.gmra.mrb[0].mxu0 %v4910
    %v4978 = vpop.f32.mrb[0].mxu0
    %v4979 = vadd.f32 0.0, %v4978
    %v4980 = vpop.f32.mrb[0].mxu0
    %v4981 = vadd.f32 0.0, %v4980
    %4982 = vdwg.mxu0
    %v4983 = vld [vmem:[%s7 + $0x700] sm:$0xff]
    %v4984 = vld [vmem:[%s7 + $0x708] sm:$0xff]
    %v4985 = vld [vmem:[%s7 + $0x710] sm:$0xff]
    %v4986 = vld [vmem:[%s7 + $0x718] sm:$0xff]
    %v4987 = vld [vmem:[%s7 + $0x720] sm:$0xff]
    %v4988 = vld [vmem:[%s7 + $0x728] sm:$0xff]
    %v4989 = vld [vmem:[%s7 + $0x730] sm:$0xff]
    %v4990 = vld [vmem:[%s7 + $0x738] sm:$0xff]
    %v4991 = vld [vmem:[%s7 + $0x740] sm:$0xff]
    %v4992 = vld [vmem:[%s7 + $0x748] sm:$0xff]
    %v4993 = vld [vmem:[%s7 + $0x750] sm:$0xff]
    %v4994 = vld [vmem:[%s7 + $0x758] sm:$0xff]
    %v4995 = vld [vmem:[%s7 + $0x760] sm:$0xff]
    %v4996 = vld [vmem:[%s7 + $0x768] sm:$0xff]
    %v4997 = vld [vmem:[%s7 + $0x770] sm:$0xff]
    %v4998 = vld [vmem:[%s7 + $0x778] sm:$0xff]
    %v4999 = vld [vmem:[%s7 + $0x780] sm:$0xff]
    %v5000 = vld [vmem:[%s7 + $0x788] sm:$0xff]
    %v5001 = vld [vmem:[%s7 + $0x790] sm:$0xff]
    %v5002 = vld [vmem:[%s7 + $0x798] sm:$0xff]
    %v5003 = vld [vmem:[%s7 + $0x7a0] sm:$0xff]
    %v5004 = vld [vmem:[%s7 + $0x7a8] sm:$0xff]
    %v5005 = vld [vmem:[%s7 + $0x7b0] sm:$0xff]
    %v5006 = vld [vmem:[%s7 + $0x7b8] sm:$0xff]
    %v5007 = vld [vmem:[%s7 + $0x7c0] sm:$0xff]
    %v5008 = vld [vmem:[%s7 + $0x7c8] sm:$0xff]
    %v5009 = vld [vmem:[%s7 + $0x7d0] sm:$0xff]
    %v5010 = vld [vmem:[%s7 + $0x7d8] sm:$0xff]
    %v5011 = vld [vmem:[%s7 + $0x7e0] sm:$0xff]
    %v5012 = vld [vmem:[%s7 + $0x7e8] sm:$0xff]
    %v5013 = vld [vmem:[%s7 + $0x7f0] sm:$0xff]
    %v5014 = vld [vmem:[%s7 + $0x7f8] sm:$0xff]
    %v5015 = vrot.slane %v4236, 6
    %v5016 = vsel %vm118, %v5015, 0
    %5018 = vmatprep.subr.mxu0 %v5000
    %5019 = vmatpush1.msra.mxu0 %v4999
    %5020 = vmatprep.subr.mxu0 %v5002
    %5021 = vmatpush1.msra.mxu0 %v5001
    %5022 = vmatprep.subr.mxu0 %v5004
    %5023 = vmatpush1.msra.mxu0 %v5003
    %5024 = vmatprep.subr.mxu0 %v5006
    %5025 = vmatpush1.msra.mxu0 %v5005
    %5026 = vmatprep.subr.mxu0 %v5008
    %5027 = vmatpush1.msra.mxu0 %v5007
    %5028 = vmatprep.subr.mxu0 %v5010
    %5029 = vmatpush1.msra.mxu0 %v5009
    %5030 = vmatprep.subr.mxu0 %v5012
    %5031 = vmatpush1.msra.mxu0 %v5011
    %5032 = vmatprep.subr.mxu0 %v5014
    %5033 = vmatpush1.msra.mxu0 %v5013
    %5034 = vmatprep.subr.mxu0 0.0
    %5035 = vmatpush1.msra.mxu0 0.0
    %5036 = vmatprep.subr.mxu0 0.0
    %5037 = vmatpush1.msra.mxu0 0.0
    %5038 = vmatprep.subr.mxu0 0.0
    %5039 = vmatpush1.msra.mxu0 0.0
    %5040 = vmatprep.subr.mxu0 0.0
    %5041 = vmatpush1.msra.mxu0 0.0
    %5042 = vmatprep.subr.mxu0 0.0
    %5043 = vmatpush1.msra.mxu0 0.0
    %5044 = vmatprep.subr.mxu0 0.0
    %5045 = vmatpush1.msra.mxu0 0.0
    %5046 = vmatprep.subr.mxu0 0.0
    %5047 = vmatpush1.msra.mxu0 0.0
    %5048 = vmatprep.subr.mxu0 0.0
    %5049 = vmatpush1.msra.mxu0 0.0
    %5050 = vmatprep.subr.mxu0 0.0
    %5051 = vmatpush1.msra.mxu0 0.0
    %5052 = vmatprep.subr.mxu0 0.0
    %5053 = vmatpush1.msra.mxu0 0.0
    %5054 = vmatprep.subr.mxu0 0.0
    %5055 = vmatpush1.msra.mxu0 0.0
    %5056 = vmatprep.subr.mxu0 0.0
    %5057 = vmatpush1.msra.mxu0 0.0
    %5058 = vmatprep.subr.mxu0 0.0
    %5059 = vmatpush1.msra.mxu0 0.0
    %5060 = vmatprep.subr.mxu0 0.0
    %5061 = vmatpush1.msra.mxu0 0.0
    %5062 = vmatprep.subr.mxu0 0.0
    %5063 = vmatpush1.msra.mxu0 0.0
    %5064 = vmatprep.subr.mxu0 0.0
    %5065 = vmatpush1.msra.mxu0 0.0
    %5066 = vmatprep.subr.mxu0 0.0
    %5067 = vmatpush1.msra.mxu0 0.0
    %5068 = vmatprep.subr.mxu0 0.0
    %5069 = vmatpush1.msra.mxu0 0.0
    %5070 = vmatprep.subr.mxu0 0.0
    %5071 = vmatpush1.msra.mxu0 0.0
    %5072 = vmatprep.subr.mxu0 0.0
    %5073 = vmatpush1.msra.mxu0 0.0
    %5074 = vmatprep.subr.mxu0 0.0
    %5075 = vmatpush1.msra.mxu0 0.0
    %5076 = vmatprep.subr.mxu0 0.0
    %5077 = vmatpush1.msra.mxu0 0.0
    %5078 = vmatprep.subr.mxu0 0.0
    %5079 = vmatpush1.msra.mxu0 0.0
    %5080 = vmatprep.subr.mxu0 0.0
    %5081 = vmatpush1.msra.mxu0 0.0
    %5082 = vmatprep.mubr.f32.mxu0 0.0
    %5083 = vmatmul.mubr.f32.gmra.mrb[0].mxu0 %v5016
    %v5084 = vpop.f32.mrb[0].mxu0
    %v5085 = vadd.f32 0.0, %v5084
    %v5086 = vpop.f32.mrb[0].mxu0
    %v5087 = vadd.f32 0.0, %v5086
    %5088 = vdwg.mxu0
    %v5089 = vsel %vm118, %v4233, 0
    %5091 = vmatprep.subr.mxu0 %v4238
    %5092 = vmatpush1.msra.mxu0 %v4237
    %5093 = vmatprep.subr.mxu0 %v4240
    %5094 = vmatpush1.msra.mxu0 %v4239
    %5095 = vmatprep.subr.mxu0 %v4242
    %5096 = vmatpush1.msra.mxu0 %v4241
    %5097 = vmatprep.subr.mxu0 %v4244
    %5098 = vmatpush1.msra.mxu0 %v4243
    %5099 = vmatprep.subr.mxu0 %v4246
    %5100 = vmatpush1.msra.mxu0 %v4245
    %5101 = vmatprep.subr.mxu0 %v4248
    %5102 = vmatpush1.msra.mxu0 %v4247
    %5103 = vmatprep.subr.mxu0 %v4250
    %5104 = vmatpush1.msra.mxu0 %v4249
    %5105 = vmatprep.subr.mxu0 %v4252
    %5106 = vmatpush1.msra.mxu0 %v4251
    %5107 = vmatprep.subr.mxu0 0.0
    %5108 = vmatpush1.msra.mxu0 0.0
    %5109 = vmatprep.subr.mxu0 0.0
    %5110 = vmatpush1.msra.mxu0 0.0
    %5111 = vmatprep.subr.mxu0 0.0
    %5112 = vmatpush1.msra.mxu0 0.0
    %5113 = vmatprep.subr.mxu0 0.0
    %5114 = vmatpush1.msra.mxu0 0.0
    %5115 = vmatprep.subr.mxu0 0.0
    %5116 = vmatpush1.msra.mxu0 0.0
    %5117 = vmatprep.subr.mxu0 0.0
    %5118 = vmatpush1.msra.mxu0 0.0
    %5119 = vmatprep.subr.mxu0 0.0
    %5120 = vmatpush1.msra.mxu0 0.0
    %5121 = vmatprep.subr.mxu0 0.0
    %5122 = vmatpush1.msra.mxu0 0.0
    %5123 = vmatprep.subr.mxu0 0.0
    %5124 = vmatpush1.msra.mxu0 0.0
    %5125 = vmatprep.subr.mxu0 0.0
    %5126 = vmatpush1.msra.mxu0 0.0
    %5127 = vmatprep.subr.mxu0 0.0
    %5128 = vmatpush1.msra.mxu0 0.0
    %5129 = vmatprep.subr.mxu0 0.0
    %5130 = vmatpush1.msra.mxu0 0.0
    %5131 = vmatprep.subr.mxu0 0.0
    %5132 = vmatpush1.msra.mxu0 0.0
    %5133 = vmatprep.subr.mxu0 0.0
    %5134 = vmatpush1.msra.mxu0 0.0
    %5135 = vmatprep.subr.mxu0 0.0
    %5136 = vmatpush1.msra.mxu0 0.0
    %5137 = vmatprep.subr.mxu0 0.0
    %5138 = vmatpush1.msra.mxu0 0.0
    %5139 = vmatprep.subr.mxu0 0.0
    %5140 = vmatpush1.msra.mxu0 0.0
    %5141 = vmatprep.subr.mxu0 0.0
    %5142 = vmatpush1.msra.mxu0 0.0
    %5143 = vmatprep.subr.mxu0 0.0
    %5144 = vmatpush1.msra.mxu0 0.0
    %5145 = vmatprep.subr.mxu0 0.0
    %5146 = vmatpush1.msra.mxu0 0.0
    %5147 = vmatprep.subr.mxu0 0.0
    %5148 = vmatpush1.msra.mxu0 0.0
    %5149 = vmatprep.subr.mxu0 0.0
    %5150 = vmatpush1.msra.mxu0 0.0
    %5151 = vmatprep.subr.mxu0 0.0
    %5152 = vmatpush1.msra.mxu0 0.0
    %5153 = vmatprep.subr.mxu0 0.0
    %5154 = vmatpush1.msra.mxu0 0.0
    %5155 = vmatprep.mubr.f32.mxu0 0.0
    %5156 = vmatmul.mubr.f32.gmra.mrb[0].mxu0 %v5089
    %v5157 = vpop.f32.mrb[0].mxu0
    %v5158 = vadd.f32 %v4340, %v5157
    %v5159 = vpop.f32.mrb[0].mxu0
    %v5160 = vadd.f32 %v4342, %v5159
    %5161 = vdwg.mxu0
    %v5162 = vrot.slane %v4233, 4
    %v5163 = vsel %vm118, %v5162, 0
    %5165 = vmatprep.subr.mxu0 %v4345
    %5166 = vmatpush1.msra.mxu0 %v4344
    %5167 = vmatprep.subr.mxu0 %v4347
    %5168 = vmatpush1.msra.mxu0 %v4346
    %5169 = vmatprep.subr.mxu0 %v4349
    %5170 = vmatpush1.msra.mxu0 %v4348
    %5171 = vmatprep.subr.mxu0 %v4351
    %5172 = vmatpush1.msra.mxu0 %v4350
    %5173 = vmatprep.subr.mxu0 %v4353
    %5174 = vmatpush1.msra.mxu0 %v4352
    %5175 = vmatprep.subr.mxu0 %v4355
    %5176 = vmatpush1.msra.mxu0 %v4354
    %5177 = vmatprep.subr.mxu0 %v4357
    %5178 = vmatpush1.msra.mxu0 %v4356
    %5179 = vmatprep.subr.mxu0 %v4359
    %5180 = vmatpush1.msra.mxu0 %v4358
    %5181 = vmatprep.subr.mxu0 0.0
    %5182 = vmatpush1.msra.mxu0 0.0
    %5183 = vmatprep.subr.mxu0 0.0
    %5184 = vmatpush1.msra.mxu0 0.0
    %5185 = vmatprep.subr.mxu0 0.0
    %5186 = vmatpush1.msra.mxu0 0.0
    %5187 = vmatprep.subr.mxu0 0.0
    %5188 = vmatpush1.msra.mxu0 0.0
    %5189 = vmatprep.subr.mxu0 0.0
    %5190 = vmatpush1.msra.mxu0 0.0
    %5191 = vmatprep.subr.mxu0 0.0
    %5192 = vmatpush1.msra.mxu0 0.0
    %5193 = vmatprep.subr.mxu0 0.0
    %5194 = vmatpush1.msra.mxu0 0.0
    %5195 = vmatprep.subr.mxu0 0.0
    %5196 = vmatpush1.msra.mxu0 0.0
    %5197 = vmatprep.subr.mxu0 0.0
    %5198 = vmatpush1.msra.mxu0 0.0
    %5199 = vmatprep.subr.mxu0 0.0
    %5200 = vmatpush1.msra.mxu0 0.0
    %5201 = vmatprep.subr.mxu0 0.0
    %5202 = vmatpush1.msra.mxu0 0.0
    %5203 = vmatprep.subr.mxu0 0.0
    %5204 = vmatpush1.msra.mxu0 0.0
    %5205 = vmatprep.subr.mxu0 0.0
    %5206 = vmatpush1.msra.mxu0 0.0
    %5207 = vmatprep.subr.mxu0 0.0
    %5208 = vmatpush1.msra.mxu0 0.0
    %5209 = vmatprep.subr.mxu0 0.0
    %5210 = vmatpush1.msra.mxu0 0.0
    %5211 = vmatprep.subr.mxu0 0.0
    %5212 = vmatpush1.msra.mxu0 0.0
    %5213 = vmatprep.subr.mxu0 0.0
    %5214 = vmatpush1.msra.mxu0 0.0
    %5215 = vmatprep.subr.mxu0 0.0
    %5216 = vmatpush1.msra.mxu0 0.0
    %5217 = vmatprep.subr.mxu0 0.0
    %5218 = vmatpush1.msra.mxu0 0.0
    %5219 = vmatprep.subr.mxu0 0.0
    %5220 = vmatpush1.msra.mxu0 0.0
    %5221 = vmatprep.subr.mxu0 0.0
    %5222 = vmatpush1.msra.mxu0 0.0
    %5223 = vmatprep.subr.mxu0 0.0
    %5224 = vmatpush1.msra.mxu0 0.0
    %5225 = vmatprep.subr.mxu0 0.0
    %5226 = vmatpush1.msra.mxu0 0.0
    %5227 = vmatprep.subr.mxu0 0.0
    %5228 = vmatpush1.msra.mxu0 0.0
    %5229 = vmatprep.mubr.f32.mxu0 0.0
    %5230 = vmatmul.mubr.f32.gmra.mrb[0].mxu0 %v5163
    %v5231 = vpop.f32.mrb[0].mxu0
    %v5232 = vadd.f32 %v4446, %v5231
    %v5233 = vpop.f32.mrb[0].mxu0
    %v5234 = vadd.f32 %v4448, %v5233
    %5235 = vdwg.mxu0
    %v5236 = vsel %vm118, %v4234, 0
    %5238 = vmatprep.subr.mxu0 %v4451
    %5239 = vmatpush1.msra.mxu0 %v4450
    %5240 = vmatprep.subr.mxu0 %v4453
    %5241 = vmatpush1.msra.mxu0 %v4452
    %5242 = vmatprep.subr.mxu0 %v4455
    %5243 = vmatpush1.msra.mxu0 %v4454
    %5244 = vmatprep.subr.mxu0 %v4457
    %5245 = vmatpush1.msra.mxu0 %v4456
    %5246 = vmatprep.subr.mxu0 %v4459
    %5247 = vmatpush1.msra.mxu0 %v4458
    %5248 = vmatprep.subr.mxu0 %v4461
    %5249 = vmatpush1.msra.mxu0 %v4460
    %5250 = vmatprep.subr.mxu0 %v4463
    %5251 = vmatpush1.msra.mxu0 %v4462
    %5252 = vmatprep.subr.mxu0 %v4465
    %5253 = vmatpush1.msra.mxu0 %v4464
    %5254 = vmatprep.subr.mxu0 0.0
    %5255 = vmatpush1.msra.mxu0 0.0
    %5256 = vmatprep.subr.mxu0 0.0
    %5257 = vmatpush1.msra.mxu0 0.0
    %5258 = vmatprep.subr.mxu0 0.0
    %5259 = vmatpush1.msra.mxu0 0.0
    %5260 = vmatprep.subr.mxu0 0.0
    %5261 = vmatpush1.msra.mxu0 0.0
    %5262 = vmatprep.subr.mxu0 0.0
    %5263 = vmatpush1.msra.mxu0 0.0
    %5264 = vmatprep.subr.mxu0 0.0
    %5265 = vmatpush1.msra.mxu0 0.0
    %5266 = vmatprep.subr.mxu0 0.0
    %5267 = vmatpush1.msra.mxu0 0.0
    %5268 = vmatprep.subr.mxu0 0.0
    %5269 = vmatpush1.msra.mxu0 0.0
    %5270 = vmatprep.subr.mxu0 0.0
    %5271 = vmatpush1.msra.mxu0 0.0
    %5272 = vmatprep.subr.mxu0 0.0
    %5273 = vmatpush1.msra.mxu0 0.0
    %5274 = vmatprep.subr.mxu0 0.0
    %5275 = vmatpush1.msra.mxu0 0.0
    %5276 = vmatprep.subr.mxu0 0.0
    %5277 = vmatpush1.msra.mxu0 0.0
    %5278 = vmatprep.subr.mxu0 0.0
    %5279 = vmatpush1.msra.mxu0 0.0
    %5280 = vmatprep.subr.mxu0 0.0
    %5281 = vmatpush1.msra.mxu0 0.0
    %5282 = vmatprep.subr.mxu0 0.0
    %5283 = vmatpush1.msra.mxu0 0.0
    %5284 = vmatprep.subr.mxu0 0.0
    %5285 = vmatpush1.msra.mxu0 0.0
    %5286 = vmatprep.subr.mxu0 0.0
    %5287 = vmatpush1.msra.mxu0 0.0
    %5288 = vmatprep.subr.mxu0 0.0
    %5289 = vmatpush1.msra.mxu0 0.0
    %5290 = vmatprep.subr.mxu0 0.0
    %5291 = vmatpush1.msra.mxu0 0.0
    %5292 = vmatprep.subr.mxu0 0.0
    %5293 = vmatpush1.msra.mxu0 0.0
    %5294 = vmatprep.subr.mxu0 0.0
    %5295 = vmatpush1.msra.mxu0 0.0
    %5296 = vmatprep.subr.mxu0 0.0
    %5297 = vmatpush1.msra.mxu0 0.0
    %5298 = vmatprep.subr.mxu0 0.0
    %5299 = vmatpush1.msra.mxu0 0.0
    %5300 = vmatprep.subr.mxu0 0.0
    %5301 = vmatpush1.msra.mxu0 0.0
    %5302 = vmatprep.mubr.f32.mxu0 0.0
    %5303 = vmatmul.mubr.f32.gmra.mrb[0].mxu0 %v5236
    %v5304 = vpop.f32.mrb[0].mxu0
    %v5305 = vadd.f32 %v4553, %v5304
    %v5306 = vpop.f32.mrb[0].mxu0
    %v5307 = vadd.f32 %v4555, %v5306
    %5308 = vdwg.mxu0
    %v5309 = vrot.slane %v4234, 4
    %v5310 = vsel %vm118, %v5309, 0
    %5312 = vmatprep.subr.mxu0 %v4558
    %5313 = vmatpush1.msra.mxu0 %v4557
    %5314 = vmatprep.subr.mxu0 %v4560
    %5315 = vmatpush1.msra.mxu0 %v4559
    %5316 = vmatprep.subr.mxu0 %v4562
    %5317 = vmatpush1.msra.mxu0 %v4561
    %5318 = vmatprep.subr.mxu0 %v4564
    %5319 = vmatpush1.msra.mxu0 %v4563
    %5320 = vmatprep.subr.mxu0 %v4566
    %5321 = vmatpush1.msra.mxu0 %v4565
    %5322 = vmatprep.subr.mxu0 %v4568
    %5323 = vmatpush1.msra.mxu0 %v4567
    %5324 = vmatprep.subr.mxu0 %v4570
    %5325 = vmatpush1.msra.mxu0 %v4569
    %5326 = vmatprep.subr.mxu0 %v4572
    %5327 = vmatpush1.msra.mxu0 %v4571
    %5328 = vmatprep.subr.mxu0 0.0
    %5329 = vmatpush1.msra.mxu0 0.0
    %5330 = vmatprep.subr.mxu0 0.0
    %5331 = vmatpush1.msra.mxu0 0.0
    %5332 = vmatprep.subr.mxu0 0.0
    %5333 = vmatpush1.msra.mxu0 0.0
    %5334 = vmatprep.subr.mxu0 0.0
    %5335 = vmatpush1.msra.mxu0 0.0
    %5336 = vmatprep.subr.mxu0 0.0
    %5337 = vmatpush1.msra.mxu0 0.0
    %5338 = vmatprep.subr.mxu0 0.0
    %5339 = vmatpush1.msra.mxu0 0.0
    %5340 = vmatprep.subr.mxu0 0.0
    %5341 = vmatpush1.msra.mxu0 0.0
    %5342 = vmatprep.subr.mxu0 0.0
    %5343 = vmatpush1.msra.mxu0 0.0
    %5344 = vmatprep.subr.mxu0 0.0
    %5345 = vmatpush1.msra.mxu0 0.0
    %5346 = vmatprep.subr.mxu0 0.0
    %5347 = vmatpush1.msra.mxu0 0.0
    %5348 = vmatprep.subr.mxu0 0.0
    %5349 = vmatpush1.msra.mxu0 0.0
    %5350 = vmatprep.subr.mxu0 0.0
    %5351 = vmatpush1.msra.mxu0 0.0
    %5352 = vmatprep.subr.mxu0 0.0
    %5353 = vmatpush1.msra.mxu0 0.0
    %5354 = vmatprep.subr.mxu0 0.0
    %5355 = vmatpush1.msra.mxu0 0.0
    %5356 = vmatprep.subr.mxu0 0.0
    %5357 = vmatpush1.msra.mxu0 0.0
    %5358 = vmatprep.subr.mxu0 0.0
    %5359 = vmatpush1.msra.mxu0 0.0
    %5360 = vmatprep.subr.mxu0 0.0
    %5361 = vmatpush1.msra.mxu0 0.0
    %5362 = vmatprep.subr.mxu0 0.0
    %5363 = vmatpush1.msra.mxu0 0.0
    %5364 = vmatprep.subr.mxu0 0.0
    %5365 = vmatpush1.msra.mxu0 0.0
    %5366 = vmatprep.subr.mxu0 0.0
    %5367 = vmatpush1.msra.mxu0 0.0
    %5368 = vmatprep.subr.mxu0 0.0
    %5369 = vmatpush1.msra.mxu0 0.0
    %5370 = vmatprep.subr.mxu0 0.0
    %5371 = vmatpush1.msra.mxu0 0.0
    %5372 = vmatprep.subr.mxu0 0.0
    %5373 = vmatpush1.msra.mxu0 0.0
    %5374 = vmatprep.subr.mxu0 0.0
    %5375 = vmatpush1.msra.mxu0 0.0
    %5376 = vmatprep.mubr.f32.mxu0 0.0
    %5377 = vmatmul.mubr.f32.gmra.mrb[0].mxu0 %v5310
    %v5378 = vpop.f32.mrb[0].mxu0
    %v5379 = vadd.f32 %v4659, %v5378
    %v5380 = vpop.f32.mrb[0].mxu0
    %v5381 = vadd.f32 %v4661, %v5380
    %5382 = vdwg.mxu0
    %v5383 = vsel %vm118, %v4235, 0
    %5385 = vmatprep.subr.mxu0 %v4664
    %5386 = vmatpush1.msra.mxu0 %v4663
    %5387 = vmatprep.subr.mxu0 %v4666
    %5388 = vmatpush1.msra.mxu0 %v4665
    %5389 = vmatprep.subr.mxu0 %v4668
    %5390 = vmatpush1.msra.mxu0 %v4667
    %5391 = vmatprep.subr.mxu0 %v4670
    %5392 = vmatpush1.msra.mxu0 %v4669
    %5393 = vmatprep.subr.mxu0 %v4672
    %5394 = vmatpush1.msra.mxu0 %v4671
    %5395 = vmatprep.subr.mxu0 %v4674
    %5396 = vmatpush1.msra.mxu0 %v4673
    %5397 = vmatprep.subr.mxu0 %v4676
    %5398 = vmatpush1.msra.mxu0 %v4675
    %5399 = vmatprep.subr.mxu0 %v4678
    %5400 = vmatpush1.msra.mxu0 %v4677
    %5401 = vmatprep.subr.mxu0 0.0
    %5402 = vmatpush1.msra.mxu0 0.0
    %5403 = vmatprep.subr.mxu0 0.0
    %5404 = vmatpush1.msra.mxu0 0.0
    %5405 = vmatprep.subr.mxu0 0.0
    %5406 = vmatpush1.msra.mxu0 0.0
    %5407 = vmatprep.subr.mxu0 0.0
    %5408 = vmatpush1.msra.mxu0 0.0
    %5409 = vmatprep.subr.mxu0 0.0
    %5410 = vmatpush1.msra.mxu0 0.0
    %5411 = vmatprep.subr.mxu0 0.0
    %5412 = vmatpush1.msra.mxu0 0.0
    %5413 = vmatprep.subr.mxu0 0.0
    %5414 = vmatpush1.msra.mxu0 0.0
    %5415 = vmatprep.subr.mxu0 0.0
    %5416 = vmatpush1.msra.mxu0 0.0
    %5417 = vmatprep.subr.mxu0 0.0
    %5418 = vmatpush1.msra.mxu0 0.0
    %5419 = vmatprep.subr.mxu0 0.0
    %5420 = vmatpush1.msra.mxu0 0.0
    %5421 = vmatprep.subr.mxu0 0.0
    %5422 = vmatpush1.msra.mxu0 0.0
    %5423 = vmatprep.subr.mxu0 0.0
    %5424 = vmatpush1.msra.mxu0 0.0
    %5425 = vmatprep.subr.mxu0 0.0
    %5426 = vmatpush1.msra.mxu0 0.0
    %5427 = vmatprep.subr.mxu0 0.0
    %5428 = vmatpush1.msra.mxu0 0.0
    %5429 = vmatprep.subr.mxu0 0.0
    %5430 = vmatpush1.msra.mxu0 0.0
    %5431 = vmatprep.subr.mxu0 0.0
    %5432 = vmatpush1.msra.mxu0 0.0
    %5433 = vmatprep.subr.mxu0 0.0
    %5434 = vmatpush1.msra.mxu0 0.0
    %5435 = vmatprep.subr.mxu0 0.0
    %5436 = vmatpush1.msra.mxu0 0.0
    %5437 = vmatprep.subr.mxu0 0.0
    %5438 = vmatpush1.msra.mxu0 0.0
    %5439 = vmatprep.subr.mxu0 0.0
    %5440 = vmatpush1.msra.mxu0 0.0
    %5441 = vmatprep.subr.mxu0 0.0
    %5442 = vmatpush1.msra.mxu0 0.0
    %5443 = vmatprep.subr.mxu0 0.0
    %5444 = vmatpush1.msra.mxu0 0.0
    %5445 = vmatprep.subr.mxu0 0.0
    %5446 = vmatpush1.msra.mxu0 0.0
    %5447 = vmatprep.subr.mxu0 0.0
    %5448 = vmatpush1.msra.mxu0 0.0
    %5449 = vmatprep.mubr.f32.mxu0 0.0
    %5450 = vmatmul.mubr.f32.gmra.mrb[0].mxu0 %v5383
    %v5451 = vpop.f32.mrb[0].mxu0
    %v5452 = vadd.f32 %v4766, %v5451
    %v5453 = vpop.f32.mrb[0].mxu0
    %v5454 = vadd.f32 %v4768, %v5453
    %5455 = vdwg.mxu0
    %v5456 = vrot.slane %v4235, 4
    %v5457 = vsel %vm118, %v5456, 0
    %5459 = vmatprep.subr.mxu0 %v4771
    %5460 = vmatpush1.msra.mxu0 %v4770
    %5461 = vmatprep.subr.mxu0 %v4773
    %5462 = vmatpush1.msra.mxu0 %v4772
    %5463 = vmatprep.subr.mxu0 %v4775
    %5464 = vmatpush1.msra.mxu0 %v4774
    %5465 = vmatprep.subr.mxu0 %v4777
    %5466 = vmatpush1.msra.mxu0 %v4776
    %5467 = vmatprep.subr.mxu0 %v4779
    %5468 = vmatpush1.msra.mxu0 %v4778
    %5469 = vmatprep.subr.mxu0 %v4781
    %5470 = vmatpush1.msra.mxu0 %v4780
    %5471 = vmatprep.subr.mxu0 %v4783
    %5472 = vmatpush1.msra.mxu0 %v4782
    %5473 = vmatprep.subr.mxu0 %v4785
    %5474 = vmatpush1.msra.mxu0 %v4784
    %5475 = vmatprep.subr.mxu0 0.0
    %5476 = vmatpush1.msra.mxu0 0.0
    %5477 = vmatprep.subr.mxu0 0.0
    %5478 = vmatpush1.msra.mxu0 0.0
    %5479 = vmatprep.subr.mxu0 0.0
    %5480 = vmatpush1.msra.mxu0 0.0
    %5481 = vmatprep.subr.mxu0 0.0
    %5482 = vmatpush1.msra.mxu0 0.0
    %5483 = vmatprep.subr.mxu0 0.0
    %5484 = vmatpush1.msra.mxu0 0.0
    %5485 = vmatprep.subr.mxu0 0.0
    %5486 = vmatpush1.msra.mxu0 0.0
    %5487 = vmatprep.subr.mxu0 0.0
    %5488 = vmatpush1.msra.mxu0 0.0
    %5489 = vmatprep.subr.mxu0 0.0
    %5490 = vmatpush1.msra.mxu0 0.0
    %5491 = vmatprep.subr.mxu0 0.0
    %5492 = vmatpush1.msra.mxu0 0.0
    %5493 = vmatprep.subr.mxu0 0.0
    %5494 = vmatpush1.msra.mxu0 0.0
    %5495 = vmatprep.subr.mxu0 0.0
    %5496 = vmatpush1.msra.mxu0 0.0
    %5497 = vmatprep.subr.mxu0 0.0
    %5498 = vmatpush1.msra.mxu0 0.0
    %5499 = vmatprep.subr.mxu0 0.0
    %5500 = vmatpush1.msra.mxu0 0.0
    %5501 = vmatprep.subr.mxu0 0.0
    %5502 = vmatpush1.msra.mxu0 0.0
    %5503 = vmatprep.subr.mxu0 0.0
    %5504 = vmatpush1.msra.mxu0 0.0
    %5505 = vmatprep.subr.mxu0 0.0
    %5506 = vmatpush1.msra.mxu0 0.0
    %5507 = vmatprep.subr.mxu0 0.0
    %5508 = vmatpush1.msra.mxu0 0.0
    %5509 = vmatprep.subr.mxu0 0.0
    %5510 = vmatpush1.msra.mxu0 0.0
    %5511 = vmatprep.subr.mxu0 0.0
    %5512 = vmatpush1.msra.mxu0 0.0
    %5513 = vmatprep.subr.mxu0 0.0
    %5514 = vmatpush1.msra.mxu0 0.0
    %5515 = vmatprep.subr.mxu0 0.0
    %5516 = vmatpush1.msra.mxu0 0.0
    %5517 = vmatprep.subr.mxu0 0.0
    %5518 = vmatpush1.msra.mxu0 0.0
    %5519 = vmatprep.subr.mxu0 0.0
    %5520 = vmatpush1.msra.mxu0 0.0
    %5521 = vmatprep.subr.mxu0 0.0
    %5522 = vmatpush1.msra.mxu0 0.0
    %5523 = vmatprep.mubr.f32.mxu0 0.0
    %5524 = vmatmul.mubr.f32.gmra.mrb[0].mxu0 %v5457
    %v5525 = vpop.f32.mrb[0].mxu0
    %v5526 = vadd.f32 %v4872, %v5525
    %v5527 = vpop.f32.mrb[0].mxu0
    %v5528 = vadd.f32 %v4874, %v5527
    %5529 = vdwg.mxu0
    %v5530 = vsel %vm118, %v4236, 0
    %5532 = vmatprep.subr.mxu0 %v4877
    %5533 = vmatpush1.msra.mxu0 %v4876
    %5534 = vmatprep.subr.mxu0 %v4879
    %5535 = vmatpush1.msra.mxu0 %v4878
    %5536 = vmatprep.subr.mxu0 %v4881
    %5537 = vmatpush1.msra.mxu0 %v4880
    %5538 = vmatprep.subr.mxu0 %v4883
    %5539 = vmatpush1.msra.mxu0 %v4882
    %5540 = vmatprep.subr.mxu0 %v4885
    %5541 = vmatpush1.msra.mxu0 %v4884
    %5542 = vmatprep.subr.mxu0 %v4887
    %5543 = vmatpush1.msra.mxu0 %v4886
    %5544 = vmatprep.subr.mxu0 %v4889
    %5545 = vmatpush1.msra.mxu0 %v4888
    %5546 = vmatprep.subr.mxu0 %v4891
    %5547 = vmatpush1.msra.mxu0 %v4890
    %5548 = vmatprep.subr.mxu0 0.0
    %5549 = vmatpush1.msra.mxu0 0.0
    %5550 = vmatprep.subr.mxu0 0.0
    %5551 = vmatpush1.msra.mxu0 0.0
    %5552 = vmatprep.subr.mxu0 0.0
    %5553 = vmatpush1.msra.mxu0 0.0
    %5554 = vmatprep.subr.mxu0 0.0
    %5555 = vmatpush1.msra.mxu0 0.0
    %5556 = vmatprep.subr.mxu0 0.0
    %5557 = vmatpush1.msra.mxu0 0.0
    %5558 = vmatprep.subr.mxu0 0.0
    %5559 = vmatpush1.msra.mxu0 0.0
    %5560 = vmatprep.subr.mxu0 0.0
    %5561 = vmatpush1.msra.mxu0 0.0
    %5562 = vmatprep.subr.mxu0 0.0
    %5563 = vmatpush1.msra.mxu0 0.0
    %5564 = vmatprep.subr.mxu0 0.0
    %5565 = vmatpush1.msra.mxu0 0.0
    %5566 = vmatprep.subr.mxu0 0.0
    %5567 = vmatpush1.msra.mxu0 0.0
    %5568 = vmatprep.subr.mxu0 0.0
    %5569 = vmatpush1.msra.mxu0 0.0
    %5570 = vmatprep.subr.mxu0 0.0
    %5571 = vmatpush1.msra.mxu0 0.0
    %5572 = vmatprep.subr.mxu0 0.0
    %5573 = vmatpush1.msra.mxu0 0.0
    %5574 = vmatprep.subr.mxu0 0.0
    %5575 = vmatpush1.msra.mxu0 0.0
    %5576 = vmatprep.subr.mxu0 0.0
    %5577 = vmatpush1.msra.mxu0 0.0
    %5578 = vmatprep.subr.mxu0 0.0
    %5579 = vmatpush1.msra.mxu0 0.0
    %5580 = vmatprep.subr.mxu0 0.0
    %5581 = vmatpush1.msra.mxu0 0.0
    %5582 = vmatprep.subr.mxu0 0.0
    %5583 = vmatpush1.msra.mxu0 0.0
    %5584 = vmatprep.subr.mxu0 0.0
    %5585 = vmatpush1.msra.mxu0 0.0
    %5586 = vmatprep.subr.mxu0 0.0
    %5587 = vmatpush1.msra.mxu0 0.0
    %5588 = vmatprep.subr.mxu0 0.0
    %5589 = vmatpush1.msra.mxu0 0.0
    %5590 = vmatprep.subr.mxu0 0.0
    %5591 = vmatpush1.msra.mxu0 0.0
    %5592 = vmatprep.subr.mxu0 0.0
    %5593 = vmatpush1.msra.mxu0 0.0
    %5594 = vmatprep.subr.mxu0 0.0
    %5595 = vmatpush1.msra.mxu0 0.0
    %5596 = vmatprep.mubr.f32.mxu0 0.0
    %5597 = vmatmul.mubr.f32.gmra.mrb[0].mxu0 %v5530
    %v5598 = vpop.f32.mrb[0].mxu0
    %v5599 = vadd.f32 %v4979, %v5598
    %v5600 = vpop.f32.mrb[0].mxu0
    %v5601 = vadd.f32 %v4981, %v5600
    %5602 = vdwg.mxu0
    %v5603 = vrot.slane %v4236, 4
    %v5604 = vsel %vm118, %v5603, 0
    %5606 = vmatprep.subr.mxu0 %v4984
    %5607 = vmatpush1.msra.mxu0 %v4983
    %5608 = vmatprep.subr.mxu0 %v4986
    %5609 = vmatpush1.msra.mxu0 %v4985
    %5610 = vmatprep.subr.mxu0 %v4988
    %5611 = vmatpush1.msra.mxu0 %v4987
    %5612 = vmatprep.subr.mxu0 %v4990
    %5613 = vmatpush1.msra.mxu0 %v4989
    %5614 = vmatprep.subr.mxu0 %v4992
    %5615 = vmatpush1.msra.mxu0 %v4991
    %5616 = vmatprep.subr.mxu0 %v4994
    %5617 = vmatpush1.msra.mxu0 %v4993
    %5618 = vmatprep.subr.mxu0 %v4996
    %5619 = vmatpush1.msra.mxu0 %v4995
    %5620 = vmatprep.subr.mxu0 %v4998
    %5621 = vmatpush1.msra.mxu0 %v4997
    %5622 = vmatprep.subr.mxu0 0.0
    %5623 = vmatpush1.msra.mxu0 0.0
    %5624 = vmatprep.subr.mxu0 0.0
    %5625 = vmatpush1.msra.mxu0 0.0
    %5626 = vmatprep.subr.mxu0 0.0
    %5627 = vmatpush1.msra.mxu0 0.0
    %5628 = vmatprep.subr.mxu0 0.0
    %5629 = vmatpush1.msra.mxu0 0.0
    %5630 = vmatprep.subr.mxu0 0.0
    %5631 = vmatpush1.msra.mxu0 0.0
    %5632 = vmatprep.subr.mxu0 0.0
    %5633 = vmatpush1.msra.mxu0 0.0
    %5634 = vmatprep.subr.mxu0 0.0
    %5635 = vmatpush1.msra.mxu0 0.0
    %5636 = vmatprep.subr.mxu0 0.0
    %5637 = vmatpush1.msra.mxu0 0.0
    %5638 = vmatprep.subr.mxu0 0.0
    %5639 = vmatpush1.msra.mxu0 0.0
    %5640 = vmatprep.subr.mxu0 0.0
    %5641 = vmatpush1.msra.mxu0 0.0
    %5642 = vmatprep.subr.mxu0 0.0
    %5643 = vmatpush1.msra.mxu0 0.0
    %5644 = vmatprep.subr.mxu0 0.0
    %5645 = vmatpush1.msra.mxu0 0.0
    %5646 = vmatprep.subr.mxu0 0.0
    %5647 = vmatpush1.msra.mxu0 0.0
    %5648 = vmatprep.subr.mxu0 0.0
    %5649 = vmatpush1.msra.mxu0 0.0
    %5650 = vmatprep.subr.mxu0 0.0
    %5651 = vmatpush1.msra.mxu0 0.0
    %5652 = vmatprep.subr.mxu0 0.0
    %5653 = vmatpush1.msra.mxu0 0.0
    %5654 = vmatprep.subr.mxu0 0.0
    %5655 = vmatpush1.msra.mxu0 0.0
    %5656 = vmatprep.subr.mxu0 0.0
    %5657 = vmatpush1.msra.mxu0 0.0
    %5658 = vmatprep.subr.mxu0 0.0
    %5659 = vmatpush1.msra.mxu0 0.0
    %5660 = vmatprep.subr.mxu0 0.0
    %5661 = vmatpush1.msra.mxu0 0.0
    %5662 = vmatprep.subr.mxu0 0.0
    %5663 = vmatpush1.msra.mxu0 0.0
    %5664 = vmatprep.subr.mxu0 0.0
    %5665 = vmatpush1.msra.mxu0 0.0
    %5666 = vmatprep.subr.mxu0 0.0
    %5667 = vmatpush1.msra.mxu0 0.0
    %5668 = vmatprep.subr.mxu0 0.0
    %5669 = vmatpush1.msra.mxu0 0.0
    %5670 = vmatprep.mubr.f32.mxu0 0.0
    %5671 = vmatmul.mubr.f32.gmra.mrb[0].mxu0 %v5604
    %v5672 = vpop.f32.mrb[0].mxu0
    %v5673 = vadd.f32 %v5085, %v5672
    %v5674 = vpop.f32.mrb[0].mxu0
    %v5675 = vadd.f32 %v5087, %v5674
    %5676 = vdwg.mxu0
    %v5677 = vadd.f32 %v5158, %v5232
    %v5678 = vadd.f32 %v5160, %v5234
    %v5679 = vadd.f32 %v5305, %v5379
    %v5680 = vadd.f32 %v5307, %v5381
    %v5681 = vadd.f32 %v5452, %v5526
    %v5682 = vadd.f32 %v5454, %v5528
    %v5683 = vadd.f32 %v5599, %v5673
    %v5684 = vadd.f32 %v5601, %v5675
    %v5685 = vadd.f32 %v5677, %v5679
    %v5686 = vadd.f32 %v5678, %v5680
    %v5687 = vadd.f32 %v5681, %v5683
    %v5688 = vadd.f32 %v5682, %v5684
    %v5689 = vadd.f32 %v5685, %v5687
    %v5690 = vadd.f32 %v5686, %v5688
    %v5691 = vld [vmem:[%s8] sm:$0x3]
    %v5693 = vlaneseq
    %v5694 = vshrl.u32 %v5693, 7
    %v5695 = vsub.s32 0, %v5694
    %v5696 = vrot.slane %v5691, %v5695
    %v5697 = vlaneseq
    %v5698 = vshrl.u32 %v5697, 7
    %v5699 = vsub.s32 1, %v5698
    %v5700 = vrot.slane %v5691, %v5699
    %v5703 = vadd.f32 %v5689, %v5696
    %v5704 = vadd.f32 %v5690, %v5700
    %v5705 = vmax.f32 %v5703, 0.0
    %v5706 = vmax.f32 %v5704, 0.0
    %v5707 = vld [vmem:[%s9] sm:$0xff]
    %v5708 = vld [vmem:[%s9 + $0x8] sm:$0xff]
    %v5709 = vld [vmem:[%s9 + $0x10] sm:$0xff]
    %v5710 = vld [vmem:[%s9 + $0x18] sm:$0xff]
    %v5711 = vld [vmem:[%s9 + $0x20] sm:$0xff]
    %v5712 = vld [vmem:[%s9 + $0x28] sm:$0xff]
    %v5713 = vld [vmem:[%s9 + $0x30] sm:$0xff]
    %v5714 = vld [vmem:[%s9 + $0x38] sm:$0xff]
    %v5715 = vld [vmem:[%s9 + $0x40] sm:$0xff]
    %v5716 = vld [vmem:[%s9 + $0x48] sm:$0xff]
    %v5717 = vld [vmem:[%s9 + $0x50] sm:$0xff]
    %v5718 = vld [vmem:[%s9 + $0x58] sm:$0xff]
    %v5719 = vld [vmem:[%s9 + $0x60] sm:$0xff]
    %v5720 = vld [vmem:[%s9 + $0x68] sm:$0xff]
    %v5721 = vld [vmem:[%s9 + $0x70] sm:$0xff]
    %v5722 = vld [vmem:[%s9 + $0x78] sm:$0xff]
    %v5723 = vld [vmem:[%s9 + $0x80] sm:$0xff]
    %v5724 = vld [vmem:[%s9 + $0x88] sm:$0xff]
    %v5725 = vld [vmem:[%s9 + $0x90] sm:$0xff]
    %v5726 = vld [vmem:[%s9 + $0x98] sm:$0xff]
    %v5727 = vld [vmem:[%s9 + $0xa0] sm:$0xff]
    %v5728 = vld [vmem:[%s9 + $0xa8] sm:$0xff]
    %v5729 = vld [vmem:[%s9 + $0xb0] sm:$0xff]
    %v5730 = vld [vmem:[%s9 + $0xb8] sm:$0xff]
    %v5731 = vld [vmem:[%s9 + $0xc0] sm:$0xff]
    %v5732 = vld [vmem:[%s9 + $0xc8] sm:$0xff]
    %v5733 = vld [vmem:[%s9 + $0xd0] sm:$0xff]
    %v5734 = vld [vmem:[%s9 + $0xd8] sm:$0xff]
    %v5735 = vld [vmem:[%s9 + $0xe0] sm:$0xff]
    %v5736 = vld [vmem:[%s9 + $0xe8] sm:$0xff]
    %v5737 = vld [vmem:[%s9 + $0xf0] sm:$0xff]
    %v5738 = vld [vmem:[%s9 + $0xf8] sm:$0xff]
    %v5739 = vld [vmem:[%s10] sm:$0x1]
    %v5741 = vlaneseq
    %v5742 = vshrl.u32 %v5741, 7
    %v5743 = vsub.s32 0, %v5742
    %v5744 = vrot.slane %v5739, %v5743
    %5746 = vmatprep.subr.mxu0 0.0
    %5747 = vmatpush1.msra.mxu0 %v5707
    %5748 = vmatprep.subr.mxu0 0.0
    %5749 = vmatpush1.msra.mxu0 %v5708
    %5750 = vmatprep.subr.mxu0 0.0
    %5751 = vmatpush1.msra.mxu0 %v5709
    %5752 = vmatprep.subr.mxu0 0.0
    %5753 = vmatpush1.msra.mxu0 %v5710
    %5754 = vmatprep.subr.mxu0 0.0
    %5755 = vmatpush1.msra.mxu0 %v5711
    %5756 = vmatprep.subr.mxu0 0.0
    %5757 = vmatpush1.msra.mxu0 %v5712
    %5758 = vmatprep.subr.mxu0 0.0
    %5759 = vmatpush1.msra.mxu0 %v5713
    %5760 = vmatprep.subr.mxu0 0.0
    %5761 = vmatpush1.msra.mxu0 %v5714
    %5762 = vmatprep.subr.mxu0 0.0
    %5763 = vmatpush1.msra.mxu0 %v5715
    %5764 = vmatprep.subr.mxu0 0.0
    %5765 = vmatpush1.msra.mxu0 %v5716
    %5766 = vmatprep.subr.mxu0 0.0
    %5767 = vmatpush1.msra.mxu0 %v5717
    %5768 = vmatprep.subr.mxu0 0.0
    %5769 = vmatpush1.msra.mxu0 %v5718
    %5770 = vmatprep.subr.mxu0 0.0
    %5771 = vmatpush1.msra.mxu0 %v5719
    %5772 = vmatprep.subr.mxu0 0.0
    %5773 = vmatpush1.msra.mxu0 %v5720
    %5774 = vmatprep.subr.mxu0 0.0
    %5775 = vmatpush1.msra.mxu0 %v5721
    %5776 = vmatprep.subr.mxu0 0.0
    %5777 = vmatpush1.msra.mxu0 %v5722
    %5778 = vmatprep.subr.mxu0 0.0
    %5779 = vmatpush1.msra.mxu0 %v5723
    %5780 = vmatprep.subr.mxu0 0.0
    %5781 = vmatpush1.msra.mxu0 %v5724
    %5782 = vmatprep.subr.mxu0 0.0
    %5783 = vmatpush1.msra.mxu0 %v5725
    %5784 = vmatprep.subr.mxu0 0.0
    %5785 = vmatpush1.msra.mxu0 %v5726
    %5786 = vmatprep.subr.mxu0 0.0
    %5787 = vmatpush1.msra.mxu0 %v5727
    %5788 = vmatprep.subr.mxu0 0.0
    %5789 = vmatpush1.msra.mxu0 %v5728
    %5790 = vmatprep.subr.mxu0 0.0
    %5791 = vmatpush1.msra.mxu0 %v5729
    %5792 = vmatprep.subr.mxu0 0.0
    %5793 = vmatpush1.msra.mxu0 %v5730
    %5794 = vmatprep.subr.mxu0 0.0
    %5795 = vmatpush1.msra.mxu0 %v5731
    %5796 = vmatprep.subr.mxu0 0.0
    %5797 = vmatpush1.msra.mxu0 %v5732
    %5798 = vmatprep.subr.mxu0 0.0
    %5799 = vmatpush1.msra.mxu0 %v5733
    %5800 = vmatprep.subr.mxu0 0.0
    %5801 = vmatpush1.msra.mxu0 %v5734
    %5802 = vmatprep.subr.mxu0 0.0
    %5803 = vmatpush1.msra.mxu0 %v5735
    %5804 = vmatprep.subr.mxu0 0.0
    %5805 = vmatpush1.msra.mxu0 %v5736
    %5806 = vmatprep.subr.mxu0 0.0
    %5807 = vmatpush1.msra.mxu0 %v5737
    %5808 = vmatprep.subr.mxu0 0.0
    %5809 = vmatpush1.msra.mxu0 %v5738
    %5810 = vmatprep.mubr.f32.mxu0 %v5706
    %5811 = vmatmul.mubr.f32.gmra.mrb[0].mxu0 %v5705
    %v5812 = vpop.f32.mrb[0].mxu0
    %v5813 = vadd.f32 %v5744, %v5812
    %v5814 = vpop.f32.mrb[0].mxu0
    %5815 = vdwg.mxu0
    %v5816 = vlaneseq
    %v5817 = vand.u32 %v5816, 127
    %vm5818 = vcmp.lt.s32.totalorder %v5817, 10
    %v5819 = vsel %vm5818, %v5813, -1e+30
    %vm5820 = vcmask 1041408
    %v5821 = vsel %vm5820, %v5819, -inf
    %5822 = vmax.xlane.f32.xlu0 %v5821
    %v5823 = vpop.xlane.xlu0 %5822
    %v5824 = vsub.f32 %v5813, %v5823
    %v5825 = vmul.f32 %v5824, 1.442695
    %v5826 = vpow.pop %v5825
    %v5827 = vsel %vm5818, %v5826, 0.0
    %v5828 = vsel %vm5820, %v5827, 0.0
    %5829 = vadd.xlane.f32.xlu0 %v5828
    %v5830 = vpop.xlane.xlu0 %5829
    %v5831 = vrcp.pop %v5830
    %v5832 = vmul.f32 %v5827, %v5831
    %5833 = vst [vmem:[#allocation4] sm:$0x3] %v5832
    // Predicated region
    $region46: #{model2_forward.1} parent=1 // pred_check
      _
    $region47: #{model2_forward.1} parent=1 // pred_check_branch
      %5835 = sbr.rel (0) target = $region49
    $region48: #{model2_forward.1} parent=1 // pred_region
      %s5837 = ssub.s32 32, 32
      %5838 = vsyncadd [#allocation5], %s5837
      %s5840 = sshll.u32 [#allocation4], 4
      %s5841 = int_to_ptr.vmem [resolvable:$true] %s5840
      %5843 = dma.vmem_to_hbm [thread:$0]  %s5841, 32, %s11, [#allocation5]
    $region49: #{model2_forward.1} parent=1 // pred_fallthru
      _
    // Predicated region
    $region50: #{model2_forward.1} parent=1 // pred_check
      _
    $region51: #{model2_forward.1} parent=1 // pred_check_branch
      %5845 = sbr.rel (0) target = $region53
    $region52: #{model2_forward.1} parent=1 // pred_region
      %5846 = dma.done [#allocation5], 32
    $region53: #{model2_forward.1} parent=1 // pred_fallthru
      _
    %5847 = vsyncpa [#allocation5], 1

</llo_original>
